<compile_context>
chip_gen: v7x
topology: tpu7x:2x2x1
jax: 0.10.0
libtpu: 0.0.40
codegen_flags: <defaults>
</compile_context>

<pallas_src>
import functools

import jax
import jax.numpy as jnp
import numpy as np
from jax.experimental import pallas as pl
from jax.experimental.pallas import tpu as pltpu

BERT_HIDDEN  = 768                               # BertModel hidden size
NUM_METRICS  = 1
MAX_PRED_POS = 16
NUM_FEAT     = NUM_METRICS * MAX_PRED_POS + 1    # 17 numerical features
HIDDEN       = BERT_HIDDEN + NUM_FEAT            # 785 == self.hidden_size (logical)
HIDDEN_PAD   = 896                               # 7*128 lane-dense padding of 785
NUM_FEAT_PAD = 128                               # lane-dense padding of 17
VOCAB        = 1000
MAX_SEQ      = 64


def _round_up(x, m):
    return (x + m - 1) // m * m


def _dyme_head_kernel(cls_ref, num_ref,
                      wp_ref, bp_ref,
                      wd_a_ref, wd_b_ref, bd_ref,
                      wo_ref, bo_ref,
                      out_ref, *, bf16_epilogue):
    """BertPooler + DYME regression head for one batch tile.

    cls_ref : [TM, 768]  bf16  CLS-token hidden state (last_hidden_state[:, 0])
    num_ref : [TM, 128]  bf16  zero-padded numerical features
    out_ref : [1,  TM]   f32   logits, transposed so the store is lane-dense
    Matmuls run on the bf16 MXU path with f32 accumulation.
    """
    # BertPooler: pooled_output = tanh(cls @ Wp + bp)
    acc = (jnp.dot(cls_ref[...], wp_ref[...], preferred_element_type=jnp.float32)
           + bp_ref[...])
    if bf16_epilogue:
        # v6e/v7x: bf16 EUP/VALU -> ~2x tanh rate, no separate f32->bf16 cast.
        pooled = jnp.tanh(acc.astype(jnp.bfloat16))
    else:
        # v5e: no bf16 VPU/EUP -> keep the transcendental in f32.
        pooled = jnp.tanh(acc).astype(jnp.bfloat16)

    # dropout(p=0.1) -> identity (eval mode)

    # dense(concat([pooled, numerical], axis=1))
    #   == pooled @ Wd[:768, :] + numerical @ Wd[768:, :] + bd
    # (split matmul avoids an in-kernel concatenate; zero-padded rows/cols of
    #  Wd / bd contribute exactly zero)
    h = (jnp.dot(pooled, wd_a_ref[...], preferred_element_type=jnp.float32)
         + jnp.dot(num_ref[...], wd_b_ref[...], preferred_element_type=jnp.float32)
         + bd_ref[...])
    h = jnp.maximum(h, 0.0)                      # torch.relu

    # second dropout -> identity (eval mode)

    # logits = self.out(h): N=1, so use a VPU multiply + cross-lane reduction
    # instead of a 1-column MXU pass, then transpose the (tm,1) column to a
    # lane-dense (1,tm) row so the output store is unmasked.
    col = jnp.sum(h * wo_ref[...], axis=-1, keepdims=True)      # (tm, 1) f32
    out_ref[...] = jnp.transpose(col) + bo_ref[...]             # (1, tm)


def _pick_batch_tile(B):
    """Batch-tile rows.

    B <= 128 : single tile, rounded to 16 rows (bf16 native (16,128) packing).
    B  > 128 : >= 2 tiles (so v7x's 2nd TC shares the batch axis), tile a
               multiple of 128 (lane-dense output blocks), as large as possible
               up to 1024 while keeping batch-padding waste <= 12.5%.
    """
    if B <= 128:
        return _round_up(max(B, 1), 16)
    best = 128                                    # always gives >= 2 tiles here
    for tm in (256, 512, 1024):
        bp = _round_up(B, tm)
        if bp // tm >= 2 and (bp - B) * 8 <= B:
            best = tm
    return best


def dyme_head(cls_hidden, numerical_features, params):
    """Batch-tiled pallas_call; weights stay VMEM-resident across batch tiles."""
    B = cls_hidden.shape[0]
    tm = _pick_batch_tile(B)
    bp = _round_up(B, tm)

    # Fused zero-pad (no zeros+scatter pass over HBM): batch -> tile multiple,
    # numerical features -> lane-dense 128.
    cls_p = jnp.pad(cls_hidden.astype(jnp.bfloat16), ((0, bp - B), (0, 0)))
    num_p = jnp.pad(numerical_features.astype(jnp.bfloat16),
                    ((0, bp - B), (0, NUM_FEAT_PAD - NUM_FEAT)))

    grid = (bp // tm,)
    act_spec  = lambda cols: pl.BlockSpec((tm, cols), lambda i: (i, 0))
    full_spec = lambda r, c: pl.BlockSpec((r, c), lambda i: (0, 0))  # VMEM-resident

    # bf16 tanh epilogue only where the VPU/EUP support bf16 (v6e / v7x).
    kind = getattr(jax.devices()[0], "device_kind", "").lower()
    bf16_epilogue = any(t in kind for t in ("v6", "v7", "7x"))

    flops = 2 * bp * (BERT_HIDDEN * BERT_HIDDEN
                      + BERT_HIDDEN * HIDDEN_PAD
                      + NUM_FEAT_PAD * HIDDEN_PAD
                      + HIDDEN_PAD)
    bytes_accessed = (
        2 * (BERT_HIDDEN * BERT_HIDDEN + BERT_HIDDEN * HIDDEN_PAD
             + NUM_FEAT_PAD * HIDDEN_PAD)                    # bf16 weights
        + 4 * (BERT_HIDDEN + 2 * HIDDEN_PAD + NUM_METRICS)   # f32 biases + w_out row
        + 2 * bp * (BERT_HIDDEN + NUM_FEAT_PAD)              # bf16 activations
        + 4 * bp)                                            # f32 output row

    out = pl.pallas_call(
        functools.partial(_dyme_head_kernel, bf16_epilogue=bf16_epilogue),
        out_shape=jax.ShapeDtypeStruct((1, bp), jnp.float32),
        grid=grid,
        in_specs=[
            act_spec(BERT_HIDDEN),                  # cls hidden  (bf16)
            act_spec(NUM_FEAT_PAD),                 # numerical   (bf16)
            full_spec(BERT_HIDDEN, BERT_HIDDEN),    # w_pool      (bf16)
            full_spec(1, BERT_HIDDEN),              # b_pool      (f32)
            full_spec(BERT_HIDDEN, HIDDEN_PAD),     # w_dense_a   (bf16)
            full_spec(NUM_FEAT_PAD, HIDDEN_PAD),    # w_dense_b   (bf16)
            full_spec(1, HIDDEN_PAD),               # b_dense     (f32)
            full_spec(1, HIDDEN_PAD),               # w_out row   (f32)
            full_spec(1, NUM_METRICS),              # b_out       (f32)
        ],
        out_specs=pl.BlockSpec((1, tm), lambda i: (0, i)),   # lane-dense store
        compiler_params=pltpu.CompilerParams(
            dimension_semantics=("parallel",),      # v7x: shard batch over 2 TCs
            vmem_limit_bytes=32 * 1024 * 1024),     # safe on v5e/v6e/v7x
        cost_estimate=pl.CostEstimate(
            flops=flops,
            transcendentals=bp * BERT_HIDDEN,       # tanh
            bytes_accessed=bytes_accessed),
    )(cls_p, num_p,
      params["w_pool"], params["b_pool"],
      params["w_dense_a"], params["w_dense_b"], params["b_dense"],
      params["w_out_row"], params["b_out"])

    return out[0, :B][:, None]                      # -> [B, NUM_METRICS]


def init_params(key):
    """Deterministic torch.nn.Linear-style init (uniform +/-1/sqrt(fan_in)).

    Kernel-side weights are cast to bf16 and zero-padded ONCE here (not per
    call); full-precision copies are kept only for the reference check.
    """
    ks = jax.random.split(key, 6)

    def lin_w(k, fan_in, fan_out):
        b = 1.0 / np.sqrt(fan_in)
        return jax.random.uniform(k, (fan_in, fan_out), jnp.float32, -b, b)

    def lin_b(k, fan_in, fan_out):
        b = 1.0 / np.sqrt(fan_in)
        return jax.random.uniform(k, (1, fan_out), jnp.float32, -b, b)

    w_pool  = lin_w(ks[0], BERT_HIDDEN, BERT_HIDDEN)
    b_pool  = lin_b(ks[1], BERT_HIDDEN, BERT_HIDDEN)
    w_dense = lin_w(ks[2], HIDDEN, HIDDEN)
    b_dense = lin_b(ks[3], HIDDEN, HIDDEN)
    w_out   = lin_w(ks[4], HIDDEN, NUM_METRICS)
    b_out   = lin_b(ks[5], HIDDEN, NUM_METRICS)

    # Lane-dense zero padding: hidden 785->896, numerical-feature rows 17->128.
    wd_a = jnp.zeros((BERT_HIDDEN, HIDDEN_PAD), jnp.float32)
    wd_a = wd_a.at[:, :HIDDEN].set(w_dense[:BERT_HIDDEN, :])
    wd_b = jnp.zeros((NUM_FEAT_PAD, HIDDEN_PAD), jnp.float32)
    wd_b = wd_b.at[:NUM_FEAT, :HIDDEN].set(w_dense[BERT_HIDDEN:, :])
    bd   = jnp.zeros((1, HIDDEN_PAD), jnp.float32).at[:, :HIDDEN].set(b_dense)
    # NUM_METRICS == 1: store w_out as a lane-dense row for the VPU reduction.
    wo_row = jnp.zeros((1, HIDDEN_PAD), jnp.float32)
    wo_row = wo_row.at[:, :HIDDEN].set(w_out[:, 0][None, :])

    return dict(
        # kernel operands
        w_pool=w_pool.astype(jnp.bfloat16), b_pool=b_pool,
        w_dense_a=wd_a.astype(jnp.bfloat16),
        w_dense_b=wd_b.astype(jnp.bfloat16),
        b_dense=bd, w_out_row=wo_row, b_out=b_out,
        # full-precision copies for the reference check
        ref_w_pool=w_pool, ref_b_pool=b_pool,
        ref_w_dense=w_dense, ref_b_dense=b_dense,
        ref_w_out=w_out, ref_b_out=b_out,
    )


def synthetic_bert_cls(input_ids, token_type_ids, emb_params):
    # TODO(synk): the pretrained 12-layer BERT encoder is a checkpoint load and
    # cannot be reproduced in-script; this deterministic embedding + layernorm
    # stand-in supplies the CLS hidden state that feeds the Pallas head kernel.
    word_emb, pos_emb, type_emb = emb_params
    S = input_ids.shape[1]
    h = word_emb[input_ids] + pos_emb[None, :S, :] + type_emb[token_type_ids]
    mu = jnp.mean(h, axis=-1, keepdims=True)
    var = jnp.var(h, axis=-1, keepdims=True)
    h = (h - mu) / jnp.sqrt(var + 1e-12)
    return h[:, 0, :]                            # [B, 768] CLS hidden state


if __name__ == "__main__":
    key = jax.random.PRNGKey(0)
    k_param, k_emb, k_ids, k_num = jax.random.split(key, 4)

    params = init_params(k_param)

    ke1, ke2, ke3 = jax.random.split(k_emb, 3)
    word_emb = 0.02 * jax.random.normal(ke1, (VOCAB, BERT_HIDDEN), jnp.float32)
    pos_emb  = 0.02 * jax.random.normal(ke2, (MAX_SEQ, BERT_HIDDEN), jnp.float32)
    type_emb = 0.02 * jax.random.normal(ke3, (2, BERT_HIDDEN), jnp.float32)

    B, S = 2, 8
    input_ids          = jax.random.randint(k_ids, (B, S), 0, VOCAB)
    attention_mask     = jnp.ones((B, S), jnp.int32)   # unused by the stand-in encoder
    token_type_ids     = jnp.zeros((B, S), jnp.int32)
    numerical_features = jax.random.normal(k_num, (B, NUM_FEAT), jnp.float32)

    cls_hidden = synthetic_bert_cls(input_ids, token_type_ids,
                                    (word_emb, pos_emb, type_emb))

    logits = dyme_head(cls_hidden, numerical_features, params)
    logits = jax.block_until_ready(logits)

    # pure-JAX f32 reference of the head (pooler -> concat -> dense -> relu -> out)
    pooled = jnp.tanh(cls_hidden @ params["ref_w_pool"] + params["ref_b_pool"])
    feat   = jnp.concatenate([pooled, numerical_features], axis=1)
    h_ref  = jnp.maximum(feat @ params["ref_w_dense"] + params["ref_b_dense"], 0.0)
    ref    = h_ref @ params["ref_w_out"] + params["ref_b_out"]

    assert logits.shape == (B, NUM_METRICS)
    np.testing.assert_allclose(np.asarray(logits), np.asarray(ref),
                               atol=3e-2, rtol=3e-2)
    print("KERNEL_OK")
</pallas_src>

<mosaic_0001>
module attributes {stable_mosaic.version = 11 : i64} {
  func.func @_dyme_head_kernel(%arg0: i32, %arg1: memref<16x768xbf16, #tpu.memory_space<vmem>>, %arg2: memref<16x128xbf16, #tpu.memory_space<vmem>>, %arg3: memref<768x768xbf16, #tpu.memory_space<vmem>>, %arg4: memref<1x768xf32, #tpu.memory_space<vmem>>, %arg5: memref<768x896xbf16, #tpu.memory_space<vmem>>, %arg6: memref<128x896xbf16, #tpu.memory_space<vmem>>, %arg7: memref<1x896xf32, #tpu.memory_space<vmem>>, %arg8: memref<1x896xf32, #tpu.memory_space<vmem>>, %arg9: memref<1x1xf32, #tpu.memory_space<vmem>>, %arg10: memref<1x16xf32, #tpu.memory_space<vmem>>) attributes {dimension_semantics = [#tpu.dimension_semantics<parallel>], iteration_bounds = array<i64: 1>, scalar_prefetch = 0 : i64, scratch_operands = 0 : i64, tpu.core_type = #tpu.core_type<tc>, window_params = [{transform_indices = @transform_0, window_bounds = array<i64: 16, 768>}, {transform_indices = @transform_1, window_bounds = array<i64: 16, 128>}, {pipeline_mode = #tpu.pipeline_mode<synchronous>, transform_indices = @transform_2, window_bounds = array<i64: 768, 768>}, {pipeline_mode = #tpu.pipeline_mode<synchronous>, transform_indices = @transform_3, window_bounds = array<i64: 1, 768>}, {pipeline_mode = #tpu.pipeline_mode<synchronous>, transform_indices = @transform_4, window_bounds = array<i64: 768, 896>}, {pipeline_mode = #tpu.pipeline_mode<synchronous>, transform_indices = @transform_5, window_bounds = array<i64: 128, 896>}, {pipeline_mode = #tpu.pipeline_mode<synchronous>, transform_indices = @transform_6, window_bounds = array<i64: 1, 896>}, {pipeline_mode = #tpu.pipeline_mode<synchronous>, transform_indices = @transform_7, window_bounds = array<i64: 1, 896>}, {pipeline_mode = #tpu.pipeline_mode<synchronous>, transform_indices = @transform_8, window_bounds = array<i64: 1, 1>}, {transform_indices = @transform_9, window_bounds = array<i64: 1, 16>}]} {
    %c0 = arith.constant 0 : index
    %c0_0 = arith.constant 0 : index
    %0 = vector.load %arg1[%c0, %c0_0] : memref<16x768xbf16, #tpu.memory_space<vmem>>, vector<16x768xbf16>
    %c0_1 = arith.constant 0 : index
    %c0_2 = arith.constant 0 : index
    %1 = vector.load %arg3[%c0_1, %c0_2] : memref<768x768xbf16, #tpu.memory_space<vmem>>, vector<768x768xbf16>
    %cst = arith.constant dense<0.000000e+00> : vector<16x768xf32>
    %2 = tpu.matmul %0, %1, %cst {dimension_numbers = #tpu.dot_dimension_numbers<[1], [0], [0], [1], [0, 0, 1, 1], [], []>} : vector<16x768xbf16>, vector<768x768xbf16>, vector<16x768xf32> -> vector<16x768xf32>
    %c0_3 = arith.constant 0 : index
    %c0_4 = arith.constant 0 : index
    %3 = vector.load %arg4[%c0_3, %c0_4] : memref<1x768xf32, #tpu.memory_space<vmem>>, vector<1x768xf32>
    %4 = vector.broadcast %3 : vector<1x768xf32> to vector<16x768xf32>
    %5 = arith.addf %2, %4 : vector<16x768xf32>
    %6 = math.tanh %5 : vector<16x768xf32>
    %7 = arith.truncf %6 : vector<16x768xf32> to vector<16x768xbf16>
    %c0_5 = arith.constant 0 : index
    %c0_6 = arith.constant 0 : index
    %8 = vector.load %arg5[%c0_5, %c0_6] : memref<768x896xbf16, #tpu.memory_space<vmem>>, vector<768x896xbf16>
    %cst_7 = arith.constant dense<0.000000e+00> : vector<16x896xf32>
    %9 = tpu.matmul %7, %8, %cst_7 {dimension_numbers = #tpu.dot_dimension_numbers<[1], [0], [0], [1], [0, 0, 1, 1], [], []>} : vector<16x768xbf16>, vector<768x896xbf16>, vector<16x896xf32> -> vector<16x896xf32>
    %c0_8 = arith.constant 0 : index
    %c0_9 = arith.constant 0 : index
    %10 = vector.load %arg2[%c0_8, %c0_9] : memref<16x128xbf16, #tpu.memory_space<vmem>>, vector<16x128xbf16>
    %c0_10 = arith.constant 0 : index
    %c0_11 = arith.constant 0 : index
    %11 = vector.load %arg6[%c0_10, %c0_11] : memref<128x896xbf16, #tpu.memory_space<vmem>>, vector<128x896xbf16>
    %cst_12 = arith.constant dense<0.000000e+00> : vector<16x896xf32>
    %12 = tpu.matmul %10, %11, %cst_12 {dimension_numbers = #tpu.dot_dimension_numbers<[1], [0], [0], [1], [0, 0, 1, 1], [], []>} : vector<16x128xbf16>, vector<128x896xbf16>, vector<16x896xf32> -> vector<16x896xf32>
    %13 = arith.addf %9, %12 : vector<16x896xf32>
    %c0_13 = arith.constant 0 : index
    %c0_14 = arith.constant 0 : index
    %14 = vector.load %arg7[%c0_13, %c0_14] : memref<1x896xf32, #tpu.memory_space<vmem>>, vector<1x896xf32>
    %15 = vector.broadcast %14 : vector<1x896xf32> to vector<16x896xf32>
    %16 = arith.addf %13, %15 : vector<16x896xf32>
    %cst_15 = arith.constant 0.000000e+00 : f32
    %17 = vector.broadcast %cst_15 : f32 to vector<16x896xf32>
    %18 = arith.maximumf %16, %17 : vector<16x896xf32>
    %c0_16 = arith.constant 0 : index
    %c0_17 = arith.constant 0 : index
    %19 = vector.load %arg8[%c0_16, %c0_17] : memref<1x896xf32, #tpu.memory_space<vmem>>, vector<1x896xf32>
    %20 = vector.broadcast %19 : vector<1x896xf32> to vector<16x896xf32>
    %21 = arith.mulf %18, %20 : vector<16x896xf32>
    %cst_18 = arith.constant dense<0.000000e+00> : vector<16xf32>
    %22 = vector.multi_reduction <add>, %21, %cst_18 [1] : vector<16x896xf32> to vector<16xf32>
    %23 = vector.shape_cast %22 : vector<16xf32> to vector<16x1xf32>
    %24 = tpu.transpose %23, [1, 0] : vector<16x1xf32> -> vector<1x16xf32>
    %c0_19 = arith.constant 0 : index
    %c0_20 = arith.constant 0 : index
    %25 = vector.load %arg9[%c0_19, %c0_20] : memref<1x1xf32, #tpu.memory_space<vmem>>, vector<1x1xf32>
    %26 = vector.broadcast %25 : vector<1x1xf32> to vector<1x16xf32>
    %27 = arith.addf %24, %26 : vector<1x16xf32>
    %c0_21 = arith.constant 0 : index
    %c0_22 = arith.constant 0 : index
    %28 = vector.load %arg10[%c0_21, %c0_22] : memref<1x16xf32, #tpu.memory_space<vmem>>, vector<1x16xf32>
    tpu.vector_store %arg10[%c0_21, %c0_22], %27 {strides = array<i32>} : memref<1x16xf32, #tpu.memory_space<vmem>>, vector<1x16xf32>,
    return
  }
  func.func @transform_0(%arg0: i32) -> (i32, i32) {
    %c0_i32 = arith.constant 0 : i32
    %c0_i32_0 = arith.constant 0 : i32
    return %arg0, %c0_i32 : i32, i32
  }
  func.func @transform_1(%arg0: i32) -> (i32, i32) {
    %c0_i32 = arith.constant 0 : i32
    %c0_i32_0 = arith.constant 0 : i32
    return %arg0, %c0_i32 : i32, i32
  }
  func.func @transform_2(%arg0: i32) -> (i32, i32) {
    %c0_i32 = arith.constant 0 : i32
    %c0_i32_0 = arith.constant 0 : i32
    %c0_i32_1 = arith.constant 0 : i32
    return %c0_i32, %c0_i32_0 : i32, i32
  }
  func.func @transform_3(%arg0: i32) -> (i32, i32) {
    %c0_i32 = arith.constant 0 : i32
    %c0_i32_0 = arith.constant 0 : i32
    %c0_i32_1 = arith.constant 0 : i32
    return %c0_i32, %c0_i32_0 : i32, i32
  }
  func.func @transform_4(%arg0: i32) -> (i32, i32) {
    %c0_i32 = arith.constant 0 : i32
    %c0_i32_0 = arith.constant 0 : i32
    %c0_i32_1 = arith.constant 0 : i32
    return %c0_i32, %c0_i32_0 : i32, i32
  }
  func.func @transform_5(%arg0: i32) -> (i32, i32) {
    %c0_i32 = arith.constant 0 : i32
    %c0_i32_0 = arith.constant 0 : i32
    %c0_i32_1 = arith.constant 0 : i32
    return %c0_i32, %c0_i32_0 : i32, i32
  }
  func.func @transform_6(%arg0: i32) -> (i32, i32) {
    %c0_i32 = arith.constant 0 : i32
    %c0_i32_0 = arith.constant 0 : i32
    %c0_i32_1 = arith.constant 0 : i32
    return %c0_i32, %c0_i32_0 : i32, i32
  }
  func.func @transform_7(%arg0: i32) -> (i32, i32) {
    %c0_i32 = arith.constant 0 : i32
    %c0_i32_0 = arith.constant 0 : i32
    %c0_i32_1 = arith.constant 0 : i32
    return %c0_i32, %c0_i32_0 : i32, i32
  }
  func.func @transform_8(%arg0: i32) -> (i32, i32) {
    %c0_i32 = arith.constant 0 : i32
    %c0_i32_0 = arith.constant 0 : i32
    %c0_i32_1 = arith.constant 0 : i32
    return %c0_i32, %c0_i32_0 : i32, i32
  }
  func.func @transform_9(%arg0: i32) -> (i32, i32) {
    %c0_i32 = arith.constant 0 : i32
    %c0_i32_0 = arith.constant 0 : i32
    return %c0_i32, %arg0 : i32, i32
  }
}

</mosaic_0001>

<llo_original>
// kernel: tpu_custom_call.1
$region0: #{tpu_custom_call.1}
  #allocation0 [shape = 'u32[]', space=smem, size = 0x4, offset = 0x4, fixed_abs, tag = 'smem constant byte address 0x4 - core index']
  #allocation1 [shape = 'u32[144,128]{1,0:T(1,128)}', space=vmem, size = 0x12000, scoped, tag = 'internal scratch']
  #allocation2 [shape = 'f32[1,1]{1,0:T(1,128)S(1)}', space=vmem, size = 0x200, scoped, tag = 'scoped memory for tpu_custom_call.1']
  %s0 = inlined_call_operand.hbm [shape: bf16[16,768], index: 0, kind: input, shape index: {}]
  %s1 = inlined_call_operand.hbm [shape: bf16[16,128], index: 1, kind: input, shape index: {}]
  %s2 = inlined_call_operand.hbm [shape: bf16[768,768], index: 2, kind: input, shape index: {}]
  %s3 = inlined_call_operand.hbm [shape: f32[1,768], index: 3, kind: input, shape index: {}]
  %s4 = inlined_call_operand.hbm [shape: bf16[768,896], index: 4, kind: input, shape index: {}]
  %s5 = inlined_call_operand.hbm [shape: bf16[128,896], index: 5, kind: input, shape index: {}]
  %s6 = inlined_call_operand.hbm [shape: f32[1,896], index: 6, kind: input, shape index: {}]
  %s7 = inlined_call_operand.hbm [shape: f32[1,896], index: 7, kind: input, shape index: {}]
  %s8 = inlined_call_operand.<no memory space> [shape: f32[1,1], index: 8, kind: input, shape index: {}]
  %s9 = inlined_call_operand.hbm [shape: f32[1,16], index: 9, kind: output, shape index: {}]
  %s10 = sld [smem:[#allocation0]]
  $region78: #{tpu_custom_call.1} parent=0
    _
  %s12 = ssub.s32 1, %s10
  %s13 = scalar_select 0, %s12, %s10
  %v14 = vstv %s8
  %15 = vst [vmem:[#allocation2] sm:$0x1] %v14
  $region1: #{tpu_custom_call.1} parent=0
    #allocation3 [shape = 'u8[24576]{0}', space=vmem, size = 0x6000, scoped, tag = 'input window, operand 0, single buffered']
    #allocation4 [shape = 's32[1]{0}', space=sflag, size = 0x4, scoped, tag = 'scoped memory for tpu_custom_call.1']
    #allocation5 [shape = 's32[1]{0}', space=sflag, size = 0x4, scoped, tag = 'scoped memory for tpu_custom_call.1']
    #allocation6 [shape = 'u8[4096]{0}', space=vmem, size = 0x1000, scoped, tag = 'input window, operand 1, single buffered']
    #allocation7 [shape = 's32[1]{0}', space=sflag, size = 0x4, scoped, tag = 'scoped memory for tpu_custom_call.1']
    #allocation8 [shape = 'u8[1179648]{0}', space=vmem, size = 0x120000, scoped, tag = 'input window, operand 2, single buffered']
    #allocation9 [shape = 'u8[3072]{0}', space=vmem, size = 0xc00, scoped, tag = 'input window, operand 3, single buffered']
    #allocation10 [shape = 's32[1]{0}', space=sflag, size = 0x4, scoped, tag = 'scoped memory for tpu_custom_call.1']
    #allocation11 [shape = 'u8[1376256]{0}', space=vmem, size = 0x150000, scoped, tag = 'input window, operand 4, single buffered']
    #allocation12 [shape = 'u8[229376]{0}', space=vmem, size = 0x38000, scoped, tag = 'input window, operand 5, single buffered']
    #allocation13 [shape = 's32[1]{0}', space=sflag, size = 0x4, scoped, tag = 'scoped memory for tpu_custom_call.1']
    #allocation14 [shape = 'u8[3584]{0}', space=vmem, size = 0x1000, scoped, tag = 'input window, operand 6, single buffered']
    #allocation15 [shape = 'u8[3584]{0}', space=vmem, size = 0x1000, scoped, tag = 'input window, operand 7, single buffered']
    #allocation16 [shape = 's32[1]{0}', space=sflag, size = 0x4, scoped, tag = 'scoped memory for tpu_custom_call.1']
    #allocation17 [shape = 'u8[512]{0}', space=vmem, size = 0x400, scoped, tag = 'output window, operand 0, single buffered']
    %16 = vsyncpa [#allocation4], 0
    %17 = vsyncpa [#allocation7], 0
    %18 = vsyncpa [#allocation10], 0
    %19 = vsyncpa [#allocation13], 0
    %20 = vsyncpa [#allocation16], 0
    %21 = vsyncpa [#allocation5], 0
    // Predicated region
    $region2: #{tpu_custom_call.1} parent=1 // pred_check
      _
    $region3: #{tpu_custom_call.1} parent=1 // pred_check_branch
      %23 = sbr.rel (0) target = $region5
    $region4: #{tpu_custom_call.1} parent=1 // pred_region
      %s25 = ssub.s32 768, 768
      %26 = vsyncadd [#allocation4], %s25
      %s27 = sshll.u32 [#allocation3], 4
      %s28 = int_to_ptr.vmem [resolvable:$true] %s27
      %33 = dma.hbm_to_vmem [thread:$0]  %s0, 768, %s28, [#allocation4], 384, 384, 24
    $region5: #{tpu_custom_call.1} parent=1 // pred_fallthru
      _
    // Predicated region
    $region6: #{tpu_custom_call.1} parent=1 // pred_check
      _
    $region7: #{tpu_custom_call.1} parent=1 // pred_check_branch
      %35 = sbr.rel (0) target = $region9
    $region8: #{tpu_custom_call.1} parent=1 // pred_region
      %s37 = ssub.s32 128, 128
      %38 = vsyncadd [#allocation7], %s37
      %s39 = sshll.u32 [#allocation6], 4
      %s40 = int_to_ptr.vmem [resolvable:$true] %s39
      %45 = dma.hbm_to_vmem [thread:$0]  %s1, 128, %s40, [#allocation7], 64, 64, 4
    $region9: #{tpu_custom_call.1} parent=1 // pred_fallthru
      _
    // Predicated region
    $region10: #{tpu_custom_call.1} parent=1 // pred_check
      _
    $region11: #{tpu_custom_call.1} parent=1 // pred_check_branch
      %47 = sbr.rel (0) target = $region13
    $region12: #{tpu_custom_call.1} parent=1 // pred_region
      %s49 = ssub.s32 36864, 36864
      %50 = vsyncadd [#allocation7], %s49
      %s51 = sshll.u32 [#allocation8], 4
      %s52 = int_to_ptr.vmem [resolvable:$true] %s51
      %57 = dma.hbm_to_vmem [thread:$0]  %s2, 36864, %s52, [#allocation7], 384, 384, 24
    $region13: #{tpu_custom_call.1} parent=1 // pred_fallthru
      _
    // Predicated region
    $region14: #{tpu_custom_call.1} parent=1 // pred_check
      _
    $region15: #{tpu_custom_call.1} parent=1 // pred_check_branch
      %59 = sbr.rel (0) target = $region17
    $region16: #{tpu_custom_call.1} parent=1 // pred_region
      %s61 = ssub.s32 96, 96
      %62 = vsyncadd [#allocation10], %s61
      %s64 = sshll.u32 [#allocation9], 4
      %s65 = int_to_ptr.vmem [resolvable:$true] %s64
      %67 = dma.hbm_to_vmem [thread:$0]  %s3, 96, %s65, [#allocation10]
    $region17: #{tpu_custom_call.1} parent=1 // pred_fallthru
      _
    // Predicated region
    $region18: #{tpu_custom_call.1} parent=1 // pred_check
      _
    $region19: #{tpu_custom_call.1} parent=1 // pred_check_branch
      %69 = sbr.rel (0) target = $region21
    $region20: #{tpu_custom_call.1} parent=1 // pred_region
      %s71 = ssub.s32 43008, 43008
      %72 = vsyncadd [#allocation10], %s71
      %s73 = sshll.u32 [#allocation11], 4
      %s74 = int_to_ptr.vmem [resolvable:$true] %s73
      %79 = dma.hbm_to_vmem [thread:$0]  %s4, 43008, %s74, [#allocation10], 448, 448, 28
    $region21: #{tpu_custom_call.1} parent=1 // pred_fallthru
      _
    // Predicated region
    $region22: #{tpu_custom_call.1} parent=1 // pred_check
      _
    $region23: #{tpu_custom_call.1} parent=1 // pred_check_branch
      %81 = sbr.rel (0) target = $region25
    $region24: #{tpu_custom_call.1} parent=1 // pred_region
      %s83 = ssub.s32 7168, 7168
      %84 = vsyncadd [#allocation13], %s83
      %s85 = sshll.u32 [#allocation12], 4
      %s86 = int_to_ptr.vmem [resolvable:$true] %s85
      %91 = dma.hbm_to_vmem [thread:$0]  %s5, 7168, %s86, [#allocation13], 448, 448, 28
    $region25: #{tpu_custom_call.1} parent=1 // pred_fallthru
      _
    // Predicated region
    $region26: #{tpu_custom_call.1} parent=1 // pred_check
      _
    $region27: #{tpu_custom_call.1} parent=1 // pred_check_branch
      %93 = sbr.rel (0) target = $region29
    $region28: #{tpu_custom_call.1} parent=1 // pred_region
      %s95 = ssub.s32 112, 112
      %96 = vsyncadd [#allocation13], %s95
      %s98 = sshll.u32 [#allocation14], 4
      %s99 = int_to_ptr.vmem [resolvable:$true] %s98
      %101 = dma.hbm_to_vmem [thread:$0]  %s6, 112, %s99, [#allocation13]
    $region29: #{tpu_custom_call.1} parent=1 // pred_fallthru
      _
    // Predicated region
    $region30: #{tpu_custom_call.1} parent=1 // pred_check
      _
    $region31: #{tpu_custom_call.1} parent=1 // pred_check_branch
      %103 = sbr.rel (0) target = $region33
    $region32: #{tpu_custom_call.1} parent=1 // pred_region
      %s105 = ssub.s32 112, 112
      %106 = vsyncadd [#allocation16], %s105
      %s108 = sshll.u32 [#allocation15], 4
      %s109 = int_to_ptr.vmem [resolvable:$true] %s108
      %111 = dma.hbm_to_vmem [thread:$0]  %s7, 112, %s109, [#allocation16]
    $region33: #{tpu_custom_call.1} parent=1 // pred_fallthru
      _
    // Predicated region
    $region34: #{tpu_custom_call.1} parent=1 // pred_check
      _
    $region35: #{tpu_custom_call.1} parent=1 // pred_check_branch
      %113 = sbr.rel (0) target = $region37
    $region36: #{tpu_custom_call.1} parent=1 // pred_region
      _
    $region37: #{tpu_custom_call.1} parent=1 // pred_fallthru
      _
    // Predicated region
    $region38: #{tpu_custom_call.1} parent=1 // pred_check
      _
    $region39: #{tpu_custom_call.1} parent=1 // pred_check_branch
      %115 = sbr.rel (0) target = $region41
    $region40: #{tpu_custom_call.1} parent=1 // pred_region
      %116 = dma.done [#allocation4], 768
    $region41: #{tpu_custom_call.1} parent=1 // pred_fallthru
      _
    // Predicated region
    $region42: #{tpu_custom_call.1} parent=1 // pred_check
      _
    $region43: #{tpu_custom_call.1} parent=1 // pred_check_branch
      %118 = sbr.rel (0) target = $region45
    $region44: #{tpu_custom_call.1} parent=1 // pred_region
      %119 = dma.done [#allocation7], 128
    $region45: #{tpu_custom_call.1} parent=1 // pred_fallthru
      _
    // Predicated region
    $region46: #{tpu_custom_call.1} parent=1 // pred_check
      _
    $region47: #{tpu_custom_call.1} parent=1 // pred_check_branch
      %121 = sbr.rel (0) target = $region49
    $region48: #{tpu_custom_call.1} parent=1 // pred_region
      %122 = dma.done [#allocation7], 36864
    $region49: #{tpu_custom_call.1} parent=1 // pred_fallthru
      _
    // Predicated region
    $region50: #{tpu_custom_call.1} parent=1 // pred_check
      _
    $region51: #{tpu_custom_call.1} parent=1 // pred_check_branch
      %124 = sbr.rel (0) target = $region53
    $region52: #{tpu_custom_call.1} parent=1 // pred_region
      %125 = dma.done [#allocation10], 96
    $region53: #{tpu_custom_call.1} parent=1 // pred_fallthru
      _
    // Predicated region
    $region54: #{tpu_custom_call.1} parent=1 // pred_check
      _
    $region55: #{tpu_custom_call.1} parent=1 // pred_check_branch
      %127 = sbr.rel (0) target = $region57
    $region56: #{tpu_custom_call.1} parent=1 // pred_region
      %128 = dma.done [#allocation10], 43008
    $region57: #{tpu_custom_call.1} parent=1 // pred_fallthru
      _
    // Predicated region
    $region58: #{tpu_custom_call.1} parent=1 // pred_check
      _
    $region59: #{tpu_custom_call.1} parent=1 // pred_check_branch
      %130 = sbr.rel (0) target = $region61
    $region60: #{tpu_custom_call.1} parent=1 // pred_region
      %131 = dma.done [#allocation13], 7168
    $region61: #{tpu_custom_call.1} parent=1 // pred_fallthru
      _
    // Predicated region
    $region62: #{tpu_custom_call.1} parent=1 // pred_check
      _
    $region63: #{tpu_custom_call.1} parent=1 // pred_check_branch
      %133 = sbr.rel (0) target = $region65
    $region64: #{tpu_custom_call.1} parent=1 // pred_region
      %134 = dma.done [#allocation13], 112
    $region65: #{tpu_custom_call.1} parent=1 // pred_fallthru
      _
    // Predicated region
    $region66: #{tpu_custom_call.1} parent=1 // pred_check
      _
    $region67: #{tpu_custom_call.1} parent=1 // pred_check_branch
      %136 = sbr.rel (0) target = $region69
    $region68: #{tpu_custom_call.1} parent=1 // pred_region
      %137 = dma.done [#allocation16], 112
    $region69: #{tpu_custom_call.1} parent=1 // pred_fallthru
      _
    %v139 = vld [vmem:[#allocation3] sm:$0xff]
    %v140 = vld [vmem:[#allocation3 + $0x8] sm:$0xff]
    %v141 = vld [vmem:[#allocation3 + $0x10] sm:$0xff]
    %v142 = vld [vmem:[#allocation3 + $0x18] sm:$0xff]
    %v143 = vld [vmem:[#allocation3 + $0x20] sm:$0xff]
    %v144 = vld [vmem:[#allocation3 + $0x28] sm:$0xff]
    %v145 = vld [vmem:[#allocation8] sm:$0xff]
    %v146 = vld [vmem:[#allocation8 + $0x8] sm:$0xff]
    %v147 = vld [vmem:[#allocation8 + $0x10] sm:$0xff]
    %v148 = vld [vmem:[#allocation8 + $0x18] sm:$0xff]
    %v149 = vld [vmem:[#allocation8 + $0x20] sm:$0xff]
    %v150 = vld [vmem:[#allocation8 + $0x28] sm:$0xff]
    %v151 = vld [vmem:[#allocation8 + $0x30] sm:$0xff]
    %v152 = vld [vmem:[#allocation8 + $0x38] sm:$0xff]
    %v153 = vld [vmem:[#allocation8 + $0x40] sm:$0xff]
    %v154 = vld [vmem:[#allocation8 + $0x48] sm:$0xff]
    %v155 = vld [vmem:[#allocation8 + $0x50] sm:$0xff]
    %v156 = vld [vmem:[#allocation8 + $0x58] sm:$0xff]
    %v157 = vld [vmem:[#allocation8 + $0x60] sm:$0xff]
    %v158 = vld [vmem:[#allocation8 + $0x68] sm:$0xff]
    %v159 = vld [vmem:[#allocation8 + $0x70] sm:$0xff]
    %v160 = vld [vmem:[#allocation8 + $0x78] sm:$0xff]
    %v161 = vld [vmem:[#allocation8 + $0x80] sm:$0xff]
    %v162 = vld [vmem:[#allocation8 + $0x88] sm:$0xff]
    %v163 = vld [vmem:[#allocation8 + $0x90] sm:$0xff]
    %v164 = vld [vmem:[#allocation8 + $0x98] sm:$0xff]
    %v165 = vld [vmem:[#allocation8 + $0xa0] sm:$0xff]
    %v166 = vld [vmem:[#allocation8 + $0xa8] sm:$0xff]
    %v167 = vld [vmem:[#allocation8 + $0xb0] sm:$0xff]
    %v168 = vld [vmem:[#allocation8 + $0xb8] sm:$0xff]
    %v169 = vld [vmem:[#allocation8 + $0xc0] sm:$0xff]
    %v170 = vld [vmem:[#allocation8 + $0xc8] sm:$0xff]
    %v171 = vld [vmem:[#allocation8 + $0xd0] sm:$0xff]
    %v172 = vld [vmem:[#allocation8 + $0xd8] sm:$0xff]
    %v173 = vld [vmem:[#allocation8 + $0xe0] sm:$0xff]
    %v174 = vld [vmem:[#allocation8 + $0xe8] sm:$0xff]
    %v175 = vld [vmem:[#allocation8 + $0xf0] sm:$0xff]
    %v176 = vld [vmem:[#allocation8 + $0xf8] sm:$0xff]
    %v177 = vld [vmem:[#allocation8 + $0x100] sm:$0xff]
    %v178 = vld [vmem:[#allocation8 + $0x108] sm:$0xff]
    %v179 = vld [vmem:[#allocation8 + $0x110] sm:$0xff]
    %v180 = vld [vmem:[#allocation8 + $0x118] sm:$0xff]
    %v181 = vld [vmem:[#allocation8 + $0x120] sm:$0xff]
    %v182 = vld [vmem:[#allocation8 + $0x128] sm:$0xff]
    %v183 = vld [vmem:[#allocation8 + $0x130] sm:$0xff]
    %v184 = vld [vmem:[#allocation8 + $0x138] sm:$0xff]
    %v185 = vld [vmem:[#allocation8 + $0x140] sm:$0xff]
    %v186 = vld [vmem:[#allocation8 + $0x148] sm:$0xff]
    %v187 = vld [vmem:[#allocation8 + $0x150] sm:$0xff]
    %v188 = vld [vmem:[#allocation8 + $0x158] sm:$0xff]
    %v189 = vld [vmem:[#allocation8 + $0x160] sm:$0xff]
    %v190 = vld [vmem:[#allocation8 + $0x168] sm:$0xff]
    %v191 = vld [vmem:[#allocation8 + $0x170] sm:$0xff]
    %v192 = vld [vmem:[#allocation8 + $0x178] sm:$0xff]
    %v193 = vld [vmem:[#allocation8 + $0x180] sm:$0xff]
    %v194 = vld [vmem:[#allocation8 + $0x188] sm:$0xff]
    %v195 = vld [vmem:[#allocation8 + $0x190] sm:$0xff]
    %v196 = vld [vmem:[#allocation8 + $0x198] sm:$0xff]
    %v197 = vld [vmem:[#allocation8 + $0x1a0] sm:$0xff]
    %v198 = vld [vmem:[#allocation8 + $0x1a8] sm:$0xff]
    %v199 = vld [vmem:[#allocation8 + $0x1b0] sm:$0xff]
    %v200 = vld [vmem:[#allocation8 + $0x1b8] sm:$0xff]
    %v201 = vld [vmem:[#allocation8 + $0x1c0] sm:$0xff]
    %v202 = vld [vmem:[#allocation8 + $0x1c8] sm:$0xff]
    %v203 = vld [vmem:[#allocation8 + $0x1d0] sm:$0xff]
    %v204 = vld [vmem:[#allocation8 + $0x1d8] sm:$0xff]
    %v205 = vld [vmem:[#allocation8 + $0x1e0] sm:$0xff]
    %v206 = vld [vmem:[#allocation8 + $0x1e8] sm:$0xff]
    %v207 = vld [vmem:[#allocation8 + $0x1f0] sm:$0xff]
    %v208 = vld [vmem:[#allocation8 + $0x1f8] sm:$0xff]
    %v209 = vld [vmem:[#allocation8 + $0x200] sm:$0xff]
    %v210 = vld [vmem:[#allocation8 + $0x208] sm:$0xff]
    %v211 = vld [vmem:[#allocation8 + $0x210] sm:$0xff]
    %v212 = vld [vmem:[#allocation8 + $0x218] sm:$0xff]
    %v213 = vld [vmem:[#allocation8 + $0x220] sm:$0xff]
    %v214 = vld [vmem:[#allocation8 + $0x228] sm:$0xff]
    %v215 = vld [vmem:[#allocation8 + $0x230] sm:$0xff]
    %v216 = vld [vmem:[#allocation8 + $0x238] sm:$0xff]
    %v217 = vld [vmem:[#allocation8 + $0x240] sm:$0xff]
    %v218 = vld [vmem:[#allocation8 + $0x248] sm:$0xff]
    %v219 = vld [vmem:[#allocation8 + $0x250] sm:$0xff]
    %v220 = vld [vmem:[#allocation8 + $0x258] sm:$0xff]
    %v221 = vld [vmem:[#allocation8 + $0x260] sm:$0xff]
    %v222 = vld [vmem:[#allocation8 + $0x268] sm:$0xff]
    %v223 = vld [vmem:[#allocation8 + $0x270] sm:$0xff]
    %v224 = vld [vmem:[#allocation8 + $0x278] sm:$0xff]
    %v225 = vld [vmem:[#allocation8 + $0x280] sm:$0xff]
    %v226 = vld [vmem:[#allocation8 + $0x288] sm:$0xff]
    %v227 = vld [vmem:[#allocation8 + $0x290] sm:$0xff]
    %v228 = vld [vmem:[#allocation8 + $0x298] sm:$0xff]
    %v229 = vld [vmem:[#allocation8 + $0x2a0] sm:$0xff]
    %v230 = vld [vmem:[#allocation8 + $0x2a8] sm:$0xff]
    %v231 = vld [vmem:[#allocation8 + $0x2b0] sm:$0xff]
    %v232 = vld [vmem:[#allocation8 + $0x2b8] sm:$0xff]
    %v233 = vld [vmem:[#allocation8 + $0x2c0] sm:$0xff]
    %v234 = vld [vmem:[#allocation8 + $0x2c8] sm:$0xff]
    %v235 = vld [vmem:[#allocation8 + $0x2d0] sm:$0xff]
    %v236 = vld [vmem:[#allocation8 + $0x2d8] sm:$0xff]
    %v237 = vld [vmem:[#allocation8 + $0x2e0] sm:$0xff]
    %v238 = vld [vmem:[#allocation8 + $0x2e8] sm:$0xff]
    %v239 = vld [vmem:[#allocation8 + $0x2f0] sm:$0xff]
    %v240 = vld [vmem:[#allocation8 + $0x2f8] sm:$0xff]
    %v241 = vld [vmem:[#allocation8 + $0x300] sm:$0xff]
    %v242 = vld [vmem:[#allocation8 + $0x308] sm:$0xff]
    %v243 = vld [vmem:[#allocation8 + $0x310] sm:$0xff]
    %v244 = vld [vmem:[#allocation8 + $0x318] sm:$0xff]
    %v245 = vld [vmem:[#allocation8 + $0x320] sm:$0xff]
    %v246 = vld [vmem:[#allocation8 + $0x328] sm:$0xff]
    %v247 = vld [vmem:[#allocation8 + $0x330] sm:$0xff]
    %v248 = vld [vmem:[#allocation8 + $0x338] sm:$0xff]
    %v249 = vld [vmem:[#allocation8 + $0x340] sm:$0xff]
    %v250 = vld [vmem:[#allocation8 + $0x348] sm:$0xff]
    %v251 = vld [vmem:[#allocation8 + $0x350] sm:$0xff]
    %v252 = vld [vmem:[#allocation8 + $0x358] sm:$0xff]
    %v253 = vld [vmem:[#allocation8 + $0x360] sm:$0xff]
    %v254 = vld [vmem:[#allocation8 + $0x368] sm:$0xff]
    %v255 = vld [vmem:[#allocation8 + $0x370] sm:$0xff]
    %v256 = vld [vmem:[#allocation8 + $0x378] sm:$0xff]
    %v257 = vld [vmem:[#allocation8 + $0x380] sm:$0xff]
    %v258 = vld [vmem:[#allocation8 + $0x388] sm:$0xff]
    %v259 = vld [vmem:[#allocation8 + $0x390] sm:$0xff]
    %v260 = vld [vmem:[#allocation8 + $0x398] sm:$0xff]
    %v261 = vld [vmem:[#allocation8 + $0x3a0] sm:$0xff]
    %v262 = vld [vmem:[#allocation8 + $0x3a8] sm:$0xff]
    %v263 = vld [vmem:[#allocation8 + $0x3b0] sm:$0xff]
    %v264 = vld [vmem:[#allocation8 + $0x3b8] sm:$0xff]
    %v265 = vld [vmem:[#allocation8 + $0x3c0] sm:$0xff]
    %v266 = vld [vmem:[#allocation8 + $0x3c8] sm:$0xff]
    %v267 = vld [vmem:[#allocation8 + $0x3d0] sm:$0xff]
    %v268 = vld [vmem:[#allocation8 + $0x3d8] sm:$0xff]
    %v269 = vld [vmem:[#allocation8 + $0x3e0] sm:$0xff]
    %v270 = vld [vmem:[#allocation8 + $0x3e8] sm:$0xff]
    %v271 = vld [vmem:[#allocation8 + $0x3f0] sm:$0xff]
    %v272 = vld [vmem:[#allocation8 + $0x3f8] sm:$0xff]
    %v273 = vld [vmem:[#allocation8 + $0x400] sm:$0xff]
    %v274 = vld [vmem:[#allocation8 + $0x408] sm:$0xff]
    %v275 = vld [vmem:[#allocation8 + $0x410] sm:$0xff]
    %v276 = vld [vmem:[#allocation8 + $0x418] sm:$0xff]
    %v277 = vld [vmem:[#allocation8 + $0x420] sm:$0xff]
    %v278 = vld [vmem:[#allocation8 + $0x428] sm:$0xff]
    %v279 = vld [vmem:[#allocation8 + $0x430] sm:$0xff]
    %v280 = vld [vmem:[#allocation8 + $0x438] sm:$0xff]
    %v281 = vld [vmem:[#allocation8 + $0x440] sm:$0xff]
    %v282 = vld [vmem:[#allocation8 + $0x448] sm:$0xff]
    %v283 = vld [vmem:[#allocation8 + $0x450] sm:$0xff]
    %v284 = vld [vmem:[#allocation8 + $0x458] sm:$0xff]
    %v285 = vld [vmem:[#allocation8 + $0x460] sm:$0xff]
    %v286 = vld [vmem:[#allocation8 + $0x468] sm:$0xff]
    %v287 = vld [vmem:[#allocation8 + $0x470] sm:$0xff]
    %v288 = vld [vmem:[#allocation8 + $0x478] sm:$0xff]
    %v289 = vld [vmem:[#allocation8 + $0x480] sm:$0xff]
    %v290 = vld [vmem:[#allocation8 + $0x488] sm:$0xff]
    %v291 = vld [vmem:[#allocation8 + $0x490] sm:$0xff]
    %v292 = vld [vmem:[#allocation8 + $0x498] sm:$0xff]
    %v293 = vld [vmem:[#allocation8 + $0x4a0] sm:$0xff]
    %v294 = vld [vmem:[#allocation8 + $0x4a8] sm:$0xff]
    %v295 = vld [vmem:[#allocation8 + $0x4b0] sm:$0xff]
    %v296 = vld [vmem:[#allocation8 + $0x4b8] sm:$0xff]
    %v297 = vld [vmem:[#allocation8 + $0x4c0] sm:$0xff]
    %v298 = vld [vmem:[#allocation8 + $0x4c8] sm:$0xff]
    %v299 = vld [vmem:[#allocation8 + $0x4d0] sm:$0xff]
    %v300 = vld [vmem:[#allocation8 + $0x4d8] sm:$0xff]
    %v301 = vld [vmem:[#allocation8 + $0x4e0] sm:$0xff]
    %v302 = vld [vmem:[#allocation8 + $0x4e8] sm:$0xff]
    %v303 = vld [vmem:[#allocation8 + $0x4f0] sm:$0xff]
    %v304 = vld [vmem:[#allocation8 + $0x4f8] sm:$0xff]
    %v305 = vld [vmem:[#allocation8 + $0x500] sm:$0xff]
    %v306 = vld [vmem:[#allocation8 + $0x508] sm:$0xff]
    %v307 = vld [vmem:[#allocation8 + $0x510] sm:$0xff]
    %v308 = vld [vmem:[#allocation8 + $0x518] sm:$0xff]
    %v309 = vld [vmem:[#allocation8 + $0x520] sm:$0xff]
    %v310 = vld [vmem:[#allocation8 + $0x528] sm:$0xff]
    %v311 = vld [vmem:[#allocation8 + $0x530] sm:$0xff]
    %v312 = vld [vmem:[#allocation8 + $0x538] sm:$0xff]
    %v313 = vld [vmem:[#allocation8 + $0x540] sm:$0xff]
    %v314 = vld [vmem:[#allocation8 + $0x548] sm:$0xff]
    %v315 = vld [vmem:[#allocation8 + $0x550] sm:$0xff]
    %v316 = vld [vmem:[#allocation8 + $0x558] sm:$0xff]
    %v317 = vld [vmem:[#allocation8 + $0x560] sm:$0xff]
    %v318 = vld [vmem:[#allocation8 + $0x568] sm:$0xff]
    %v319 = vld [vmem:[#allocation8 + $0x570] sm:$0xff]
    %v320 = vld [vmem:[#allocation8 + $0x578] sm:$0xff]
    %v321 = vld [vmem:[#allocation8 + $0x580] sm:$0xff]
    %v322 = vld [vmem:[#allocation8 + $0x588] sm:$0xff]
    %v323 = vld [vmem:[#allocation8 + $0x590] sm:$0xff]
    %v324 = vld [vmem:[#allocation8 + $0x598] sm:$0xff]
    %v325 = vld [vmem:[#allocation8 + $0x5a0] sm:$0xff]
    %v326 = vld [vmem:[#allocation8 + $0x5a8] sm:$0xff]
    %v327 = vld [vmem:[#allocation8 + $0x5b0] sm:$0xff]
    %v328 = vld [vmem:[#allocation8 + $0x5b8] sm:$0xff]
    %v329 = vld [vmem:[#allocation8 + $0x5c0] sm:$0xff]
    %v330 = vld [vmem:[#allocation8 + $0x5c8] sm:$0xff]
    %v331 = vld [vmem:[#allocation8 + $0x5d0] sm:$0xff]
    %v332 = vld [vmem:[#allocation8 + $0x5d8] sm:$0xff]
    %v333 = vld [vmem:[#allocation8 + $0x5e0] sm:$0xff]
    %v334 = vld [vmem:[#allocation8 + $0x5e8] sm:$0xff]
    %v335 = vld [vmem:[#allocation8 + $0x5f0] sm:$0xff]
    %v336 = vld [vmem:[#allocation8 + $0x5f8] sm:$0xff]
    %v337 = vld [vmem:[#allocation8 + $0x600] sm:$0xff]
    %v338 = vld [vmem:[#allocation8 + $0x608] sm:$0xff]
    %v339 = vld [vmem:[#allocation8 + $0x610] sm:$0xff]
    %v340 = vld [vmem:[#allocation8 + $0x618] sm:$0xff]
    %v341 = vld [vmem:[#allocation8 + $0x620] sm:$0xff]
    %v342 = vld [vmem:[#allocation8 + $0x628] sm:$0xff]
    %v343 = vld [vmem:[#allocation8 + $0x630] sm:$0xff]
    %v344 = vld [vmem:[#allocation8 + $0x638] sm:$0xff]
    %v345 = vld [vmem:[#allocation8 + $0x640] sm:$0xff]
    %v346 = vld [vmem:[#allocation8 + $0x648] sm:$0xff]
    %v347 = vld [vmem:[#allocation8 + $0x650] sm:$0xff]
    %v348 = vld [vmem:[#allocation8 + $0x658] sm:$0xff]
    %v349 = vld [vmem:[#allocation8 + $0x660] sm:$0xff]
    %v350 = vld [vmem:[#allocation8 + $0x668] sm:$0xff]
    %v351 = vld [vmem:[#allocation8 + $0x670] sm:$0xff]
    %v352 = vld [vmem:[#allocation8 + $0x678] sm:$0xff]
    %v353 = vld [vmem:[#allocation8 + $0x680] sm:$0xff]
    %v354 = vld [vmem:[#allocation8 + $0x688] sm:$0xff]
    %v355 = vld [vmem:[#allocation8 + $0x690] sm:$0xff]
    %v356 = vld [vmem:[#allocation8 + $0x698] sm:$0xff]
    %v357 = vld [vmem:[#allocation8 + $0x6a0] sm:$0xff]
    %v358 = vld [vmem:[#allocation8 + $0x6a8] sm:$0xff]
    %v359 = vld [vmem:[#allocation8 + $0x6b0] sm:$0xff]
    %v360 = vld [vmem:[#allocation8 + $0x6b8] sm:$0xff]
    %v361 = vld [vmem:[#allocation8 + $0x6c0] sm:$0xff]
    %v362 = vld [vmem:[#allocation8 + $0x6c8] sm:$0xff]
    %v363 = vld [vmem:[#allocation8 + $0x6d0] sm:$0xff]
    %v364 = vld [vmem:[#allocation8 + $0x6d8] sm:$0xff]
    %v365 = vld [vmem:[#allocation8 + $0x6e0] sm:$0xff]
    %v366 = vld [vmem:[#allocation8 + $0x6e8] sm:$0xff]
    %v367 = vld [vmem:[#allocation8 + $0x6f0] sm:$0xff]
    %v368 = vld [vmem:[#allocation8 + $0x6f8] sm:$0xff]
    %v369 = vld [vmem:[#allocation8 + $0x700] sm:$0xff]
    %v370 = vld [vmem:[#allocation8 + $0x708] sm:$0xff]
    %v371 = vld [vmem:[#allocation8 + $0x710] sm:$0xff]
    %v372 = vld [vmem:[#allocation8 + $0x718] sm:$0xff]
    %v373 = vld [vmem:[#allocation8 + $0x720] sm:$0xff]
    %v374 = vld [vmem:[#allocation8 + $0x728] sm:$0xff]
    %v375 = vld [vmem:[#allocation8 + $0x730] sm:$0xff]
    %v376 = vld [vmem:[#allocation8 + $0x738] sm:$0xff]
    %v377 = vld [vmem:[#allocation8 + $0x740] sm:$0xff]
    %v378 = vld [vmem:[#allocation8 + $0x748] sm:$0xff]
    %v379 = vld [vmem:[#allocation8 + $0x750] sm:$0xff]
    %v380 = vld [vmem:[#allocation8 + $0x758] sm:$0xff]
    %v381 = vld [vmem:[#allocation8 + $0x760] sm:$0xff]
    %v382 = vld [vmem:[#allocation8 + $0x768] sm:$0xff]
    %v383 = vld [vmem:[#allocation8 + $0x770] sm:$0xff]
    %v384 = vld [vmem:[#allocation8 + $0x778] sm:$0xff]
    %v385 = vld [vmem:[#allocation8 + $0x780] sm:$0xff]
    %v386 = vld [vmem:[#allocation8 + $0x788] sm:$0xff]
    %v387 = vld [vmem:[#allocation8 + $0x790] sm:$0xff]
    %v388 = vld [vmem:[#allocation8 + $0x798] sm:$0xff]
    %v389 = vld [vmem:[#allocation8 + $0x7a0] sm:$0xff]
    %v390 = vld [vmem:[#allocation8 + $0x7a8] sm:$0xff]
    %v391 = vld [vmem:[#allocation8 + $0x7b0] sm:$0xff]
    %v392 = vld [vmem:[#allocation8 + $0x7b8] sm:$0xff]
    %v393 = vld [vmem:[#allocation8 + $0x7c0] sm:$0xff]
    %v394 = vld [vmem:[#allocation8 + $0x7c8] sm:$0xff]
    %v395 = vld [vmem:[#allocation8 + $0x7d0] sm:$0xff]
    %v396 = vld [vmem:[#allocation8 + $0x7d8] sm:$0xff]
    %v397 = vld [vmem:[#allocation8 + $0x7e0] sm:$0xff]
    %v398 = vld [vmem:[#allocation8 + $0x7e8] sm:$0xff]
    %v399 = vld [vmem:[#allocation8 + $0x7f0] sm:$0xff]
    %v400 = vld [vmem:[#allocation8 + $0x7f8] sm:$0xff]
    %v401 = vld [vmem:[#allocation8 + $0x800] sm:$0xff]
    %v402 = vld [vmem:[#allocation8 + $0x808] sm:$0xff]
    %v403 = vld [vmem:[#allocation8 + $0x810] sm:$0xff]
    %v404 = vld [vmem:[#allocation8 + $0x818] sm:$0xff]
    %v405 = vld [vmem:[#allocation8 + $0x820] sm:$0xff]
    %v406 = vld [vmem:[#allocation8 + $0x828] sm:$0xff]
    %v407 = vld [vmem:[#allocation8 + $0x830] sm:$0xff]
    %v408 = vld [vmem:[#allocation8 + $0x838] sm:$0xff]
    %v409 = vld [vmem:[#allocation8 + $0x840] sm:$0xff]
    %v410 = vld [vmem:[#allocation8 + $0x848] sm:$0xff]
    %v411 = vld [vmem:[#allocation8 + $0x850] sm:$0xff]
    %v412 = vld [vmem:[#allocation8 + $0x858] sm:$0xff]
    %v413 = vld [vmem:[#allocation8 + $0x860] sm:$0xff]
    %v414 = vld [vmem:[#allocation8 + $0x868] sm:$0xff]
    %v415 = vld [vmem:[#allocation8 + $0x870] sm:$0xff]
    %v416 = vld [vmem:[#allocation8 + $0x878] sm:$0xff]
    %v417 = vld [vmem:[#allocation8 + $0x880] sm:$0xff]
    %v418 = vld [vmem:[#allocation8 + $0x888] sm:$0xff]
    %v419 = vld [vmem:[#allocation8 + $0x890] sm:$0xff]
    %v420 = vld [vmem:[#allocation8 + $0x898] sm:$0xff]
    %v421 = vld [vmem:[#allocation8 + $0x8a0] sm:$0xff]
    %v422 = vld [vmem:[#allocation8 + $0x8a8] sm:$0xff]
    %v423 = vld [vmem:[#allocation8 + $0x8b0] sm:$0xff]
    %v424 = vld [vmem:[#allocation8 + $0x8b8] sm:$0xff]
    %v425 = vld [vmem:[#allocation8 + $0x8c0] sm:$0xff]
    %v426 = vld [vmem:[#allocation8 + $0x8c8] sm:$0xff]
    %v427 = vld [vmem:[#allocation8 + $0x8d0] sm:$0xff]
    %v428 = vld [vmem:[#allocation8 + $0x8d8] sm:$0xff]
    %v429 = vld [vmem:[#allocation8 + $0x8e0] sm:$0xff]
    %v430 = vld [vmem:[#allocation8 + $0x8e8] sm:$0xff]
    %v431 = vld [vmem:[#allocation8 + $0x8f0] sm:$0xff]
    %v432 = vld [vmem:[#allocation8 + $0x8f8] sm:$0xff]
    %v433 = vld [vmem:[#allocation9] sm:$0x3f]
    %v435 = vlaneseq
    %v436 = vshrl.u32 %v435, 7
    %v437 = vsub.s32 0, %v436
    %v438 = vrot.slane %v433, %v437
    %v439 = vlaneseq
    %v440 = vshrl.u32 %v439, 7
    %v441 = vsub.s32 1, %v440
    %v442 = vrot.slane %v433, %v441
    %v443 = vlaneseq
    %v444 = vshrl.u32 %v443, 7
    %v445 = vsub.s32 2, %v444
    %v446 = vrot.slane %v433, %v445
    %v447 = vlaneseq
    %v448 = vshrl.u32 %v447, 7
    %v449 = vsub.s32 3, %v448
    %v450 = vrot.slane %v433, %v449
    %v451 = vlaneseq
    %v452 = vshrl.u32 %v451, 7
    %v453 = vsub.s32 4, %v452
    %v454 = vrot.slane %v433, %v453
    %v455 = vlaneseq
    %v456 = vshrl.u32 %v455, 7
    %v457 = vsub.s32 5, %v456
    %v458 = vrot.slane %v433, %v457
    %v471 = vunpack.c.l.b16 %v139
    %v472 = vunpack.c.h.b16 %v139
    %v473 = vunpack.c.l.b16 %v140
    %v474 = vunpack.c.h.b16 %v140
    %v475 = vunpack.c.l.b16 %v141
    %v476 = vunpack.c.h.b16 %v141
    %v477 = vunpack.c.l.b16 %v142
    %v478 = vunpack.c.h.b16 %v142
    %v479 = vunpack.c.l.b16 %v143
    %v480 = vunpack.c.h.b16 %v143
    %v481 = vunpack.c.l.b16 %v144
    %v482 = vunpack.c.h.b16 %v144
    %v483 = vpack.c.b16 %v477, %v471
    %v484 = vpack.c.b16 %v478, %v472
    %v485 = vpack.c.b16 %v479, %v473
    %v486 = vpack.c.b16 %v480, %v474
    %v487 = vpack.c.b16 %v481, %v475
    %v488 = vpack.c.b16 %v482, %v476
    %v783 = vunpack.c.l.b16 %v145
    %v784 = vunpack.c.h.b16 %v145
    %v785 = vunpack.c.l.b16 %v146
    %v786 = vunpack.c.h.b16 %v146
    %v787 = vunpack.c.l.b16 %v147
    %v788 = vunpack.c.h.b16 %v147
    %v789 = vunpack.c.l.b16 %v148
    %v790 = vunpack.c.h.b16 %v148
    %v791 = vunpack.c.l.b16 %v149
    %v792 = vunpack.c.h.b16 %v149
    %v793 = vunpack.c.l.b16 %v150
    %v794 = vunpack.c.h.b16 %v150
    %v795 = vunpack.c.l.b16 %v151
    %v796 = vunpack.c.h.b16 %v151
    %v797 = vunpack.c.l.b16 %v152
    %v798 = vunpack.c.h.b16 %v152
    %v799 = vunpack.c.l.b16 %v153
    %v800 = vunpack.c.h.b16 %v153
    %v801 = vunpack.c.l.b16 %v154
    %v802 = vunpack.c.h.b16 %v154
    %v803 = vunpack.c.l.b16 %v155
    %v804 = vunpack.c.h.b16 %v155
    %v805 = vunpack.c.l.b16 %v156
    %v806 = vunpack.c.h.b16 %v156
    %v807 = vunpack.c.l.b16 %v157
    %v808 = vunpack.c.h.b16 %v157
    %v809 = vunpack.c.l.b16 %v158
    %v810 = vunpack.c.h.b16 %v158
    %v811 = vunpack.c.l.b16 %v159
    %v812 = vunpack.c.h.b16 %v159
    %v813 = vunpack.c.l.b16 %v160
    %v814 = vunpack.c.h.b16 %v160
    %v815 = vunpack.c.l.b16 %v161
    %v816 = vunpack.c.h.b16 %v161
    %v817 = vunpack.c.l.b16 %v162
    %v818 = vunpack.c.h.b16 %v162
    %v819 = vunpack.c.l.b16 %v163
    %v820 = vunpack.c.h.b16 %v163
    %v821 = vunpack.c.l.b16 %v164
    %v822 = vunpack.c.h.b16 %v164
    %v823 = vunpack.c.l.b16 %v165
    %v824 = vunpack.c.h.b16 %v165
    %v825 = vunpack.c.l.b16 %v166
    %v826 = vunpack.c.h.b16 %v166
    %v827 = vunpack.c.l.b16 %v167
    %v828 = vunpack.c.h.b16 %v167
    %v829 = vunpack.c.l.b16 %v168
    %v830 = vunpack.c.h.b16 %v168
    %v831 = vunpack.c.l.b16 %v169
    %v832 = vunpack.c.h.b16 %v169
    %v833 = vunpack.c.l.b16 %v170
    %v834 = vunpack.c.h.b16 %v170
    %v835 = vunpack.c.l.b16 %v171
    %v836 = vunpack.c.h.b16 %v171
    %v837 = vunpack.c.l.b16 %v172
    %v838 = vunpack.c.h.b16 %v172
    %v839 = vunpack.c.l.b16 %v173
    %v840 = vunpack.c.h.b16 %v173
    %v841 = vunpack.c.l.b16 %v174
    %v842 = vunpack.c.h.b16 %v174
    %v843 = vunpack.c.l.b16 %v175
    %v844 = vunpack.c.h.b16 %v175
    %v845 = vunpack.c.l.b16 %v176
    %v846 = vunpack.c.h.b16 %v176
    %v847 = vunpack.c.l.b16 %v177
    %v848 = vunpack.c.h.b16 %v177
    %v849 = vunpack.c.l.b16 %v178
    %v850 = vunpack.c.h.b16 %v178
    %v851 = vunpack.c.l.b16 %v179
    %v852 = vunpack.c.h.b16 %v179
    %v853 = vunpack.c.l.b16 %v180
    %v854 = vunpack.c.h.b16 %v180
    %v855 = vunpack.c.l.b16 %v181
    %v856 = vunpack.c.h.b16 %v181
    %v857 = vunpack.c.l.b16 %v182
    %v858 = vunpack.c.h.b16 %v182
    %v859 = vunpack.c.l.b16 %v183
    %v860 = vunpack.c.h.b16 %v183
    %v861 = vunpack.c.l.b16 %v184
    %v862 = vunpack.c.h.b16 %v184
    %v863 = vunpack.c.l.b16 %v185
    %v864 = vunpack.c.h.b16 %v185
    %v865 = vunpack.c.l.b16 %v186
    %v866 = vunpack.c.h.b16 %v186
    %v867 = vunpack.c.l.b16 %v187
    %v868 = vunpack.c.h.b16 %v187
    %v869 = vunpack.c.l.b16 %v188
    %v870 = vunpack.c.h.b16 %v188
    %v871 = vunpack.c.l.b16 %v189
    %v872 = vunpack.c.h.b16 %v189
    %v873 = vunpack.c.l.b16 %v190
    %v874 = vunpack.c.h.b16 %v190
    %v875 = vunpack.c.l.b16 %v191
    %v876 = vunpack.c.h.b16 %v191
    %v877 = vunpack.c.l.b16 %v192
    %v878 = vunpack.c.h.b16 %v192
    %v879 = vunpack.c.l.b16 %v193
    %v880 = vunpack.c.h.b16 %v193
    %v881 = vunpack.c.l.b16 %v194
    %v882 = vunpack.c.h.b16 %v194
    %v883 = vunpack.c.l.b16 %v195
    %v884 = vunpack.c.h.b16 %v195
    %v885 = vunpack.c.l.b16 %v196
    %v886 = vunpack.c.h.b16 %v196
    %v887 = vunpack.c.l.b16 %v197
    %v888 = vunpack.c.h.b16 %v197
    %v889 = vunpack.c.l.b16 %v198
    %v890 = vunpack.c.h.b16 %v198
    %v891 = vunpack.c.l.b16 %v199
    %v892 = vunpack.c.h.b16 %v199
    %v893 = vunpack.c.l.b16 %v200
    %v894 = vunpack.c.h.b16 %v200
    %v895 = vunpack.c.l.b16 %v201
    %v896 = vunpack.c.h.b16 %v201
    %v897 = vunpack.c.l.b16 %v202
    %v898 = vunpack.c.h.b16 %v202
    %v899 = vunpack.c.l.b16 %v203
    %v900 = vunpack.c.h.b16 %v203
    %v901 = vunpack.c.l.b16 %v204
    %v902 = vunpack.c.h.b16 %v204
    %v903 = vunpack.c.l.b16 %v205
    %v904 = vunpack.c.h.b16 %v205
    %v905 = vunpack.c.l.b16 %v206
    %v906 = vunpack.c.h.b16 %v206
    %v907 = vunpack.c.l.b16 %v207
    %v908 = vunpack.c.h.b16 %v207
    %v909 = vunpack.c.l.b16 %v208
    %v910 = vunpack.c.h.b16 %v208
    %v911 = vunpack.c.l.b16 %v209
    %v912 = vunpack.c.h.b16 %v209
    %v913 = vunpack.c.l.b16 %v210
    %v914 = vunpack.c.h.b16 %v210
    %v915 = vunpack.c.l.b16 %v211
    %v916 = vunpack.c.h.b16 %v211
    %v917 = vunpack.c.l.b16 %v212
    %v918 = vunpack.c.h.b16 %v212
    %v919 = vunpack.c.l.b16 %v213
    %v920 = vunpack.c.h.b16 %v213
    %v921 = vunpack.c.l.b16 %v214
    %v922 = vunpack.c.h.b16 %v214
    %v923 = vunpack.c.l.b16 %v215
    %v924 = vunpack.c.h.b16 %v215
    %v925 = vunpack.c.l.b16 %v216
    %v926 = vunpack.c.h.b16 %v216
    %v927 = vunpack.c.l.b16 %v217
    %v928 = vunpack.c.h.b16 %v217
    %v929 = vunpack.c.l.b16 %v218
    %v930 = vunpack.c.h.b16 %v218
    %v931 = vunpack.c.l.b16 %v219
    %v932 = vunpack.c.h.b16 %v219
    %v933 = vunpack.c.l.b16 %v220
    %v934 = vunpack.c.h.b16 %v220
    %v935 = vunpack.c.l.b16 %v221
    %v936 = vunpack.c.h.b16 %v221
    %v937 = vunpack.c.l.b16 %v222
    %v938 = vunpack.c.h.b16 %v222
    %v939 = vunpack.c.l.b16 %v223
    %v940 = vunpack.c.h.b16 %v223
    %v941 = vunpack.c.l.b16 %v224
    %v942 = vunpack.c.h.b16 %v224
    %v943 = vunpack.c.l.b16 %v225
    %v944 = vunpack.c.h.b16 %v225
    %v945 = vunpack.c.l.b16 %v226
    %v946 = vunpack.c.h.b16 %v226
    %v947 = vunpack.c.l.b16 %v227
    %v948 = vunpack.c.h.b16 %v227
    %v949 = vunpack.c.l.b16 %v228
    %v950 = vunpack.c.h.b16 %v228
    %v951 = vunpack.c.l.b16 %v229
    %v952 = vunpack.c.h.b16 %v229
    %v953 = vunpack.c.l.b16 %v230
    %v954 = vunpack.c.h.b16 %v230
    %v955 = vunpack.c.l.b16 %v231
    %v956 = vunpack.c.h.b16 %v231
    %v957 = vunpack.c.l.b16 %v232
    %v958 = vunpack.c.h.b16 %v232
    %v959 = vunpack.c.l.b16 %v233
    %v960 = vunpack.c.h.b16 %v233
    %v961 = vunpack.c.l.b16 %v234
    %v962 = vunpack.c.h.b16 %v234
    %v963 = vunpack.c.l.b16 %v235
    %v964 = vunpack.c.h.b16 %v235
    %v965 = vunpack.c.l.b16 %v236
    %v966 = vunpack.c.h.b16 %v236
    %v967 = vunpack.c.l.b16 %v237
    %v968 = vunpack.c.h.b16 %v237
    %v969 = vunpack.c.l.b16 %v238
    %v970 = vunpack.c.h.b16 %v238
    %v971 = vunpack.c.l.b16 %v239
    %v972 = vunpack.c.h.b16 %v239
    %v973 = vunpack.c.l.b16 %v240
    %v974 = vunpack.c.h.b16 %v240
    %v975 = vunpack.c.l.b16 %v241
    %v976 = vunpack.c.h.b16 %v241
    %v977 = vunpack.c.l.b16 %v242
    %v978 = vunpack.c.h.b16 %v242
    %v979 = vunpack.c.l.b16 %v243
    %v980 = vunpack.c.h.b16 %v243
    %v981 = vunpack.c.l.b16 %v244
    %v982 = vunpack.c.h.b16 %v244
    %v983 = vunpack.c.l.b16 %v245
    %v984 = vunpack.c.h.b16 %v245
    %v985 = vunpack.c.l.b16 %v246
    %v986 = vunpack.c.h.b16 %v246
    %v987 = vunpack.c.l.b16 %v247
    %v988 = vunpack.c.h.b16 %v247
    %v989 = vunpack.c.l.b16 %v248
    %v990 = vunpack.c.h.b16 %v248
    %v991 = vunpack.c.l.b16 %v249
    %v992 = vunpack.c.h.b16 %v249
    %v993 = vunpack.c.l.b16 %v250
    %v994 = vunpack.c.h.b16 %v250
    %v995 = vunpack.c.l.b16 %v251
    %v996 = vunpack.c.h.b16 %v251
    %v997 = vunpack.c.l.b16 %v252
    %v998 = vunpack.c.h.b16 %v252
    %v999 = vunpack.c.l.b16 %v253
    %v1000 = vunpack.c.h.b16 %v253
    %v1001 = vunpack.c.l.b16 %v254
    %v1002 = vunpack.c.h.b16 %v254
    %v1003 = vunpack.c.l.b16 %v255
    %v1004 = vunpack.c.h.b16 %v255
    %v1005 = vunpack.c.l.b16 %v256
    %v1006 = vunpack.c.h.b16 %v256
    %v1007 = vunpack.c.l.b16 %v257
    %v1008 = vunpack.c.h.b16 %v257
    %v1009 = vunpack.c.l.b16 %v258
    %v1010 = vunpack.c.h.b16 %v258
    %v1011 = vunpack.c.l.b16 %v259
    %v1012 = vunpack.c.h.b16 %v259
    %v1013 = vunpack.c.l.b16 %v260
    %v1014 = vunpack.c.h.b16 %v260
    %v1015 = vunpack.c.l.b16 %v261
    %v1016 = vunpack.c.h.b16 %v261
    %v1017 = vunpack.c.l.b16 %v262
    %v1018 = vunpack.c.h.b16 %v262
    %v1019 = vunpack.c.l.b16 %v263
    %v1020 = vunpack.c.h.b16 %v263
    %v1021 = vunpack.c.l.b16 %v264
    %v1022 = vunpack.c.h.b16 %v264
    %v1023 = vunpack.c.l.b16 %v265
    %v1024 = vunpack.c.h.b16 %v265
    %v1025 = vunpack.c.l.b16 %v266
    %v1026 = vunpack.c.h.b16 %v266
    %v1027 = vunpack.c.l.b16 %v267
    %v1028 = vunpack.c.h.b16 %v267
    %v1029 = vunpack.c.l.b16 %v268
    %v1030 = vunpack.c.h.b16 %v268
    %v1031 = vunpack.c.l.b16 %v269
    %v1032 = vunpack.c.h.b16 %v269
    %v1033 = vunpack.c.l.b16 %v270
    %v1034 = vunpack.c.h.b16 %v270
    %v1035 = vunpack.c.l.b16 %v271
    %v1036 = vunpack.c.h.b16 %v271
    %v1037 = vunpack.c.l.b16 %v272
    %v1038 = vunpack.c.h.b16 %v272
    %v1039 = vunpack.c.l.b16 %v273
    %v1040 = vunpack.c.h.b16 %v273
    %v1041 = vunpack.c.l.b16 %v274
    %v1042 = vunpack.c.h.b16 %v274
    %v1043 = vunpack.c.l.b16 %v275
    %v1044 = vunpack.c.h.b16 %v275
    %v1045 = vunpack.c.l.b16 %v276
    %v1046 = vunpack.c.h.b16 %v276
    %v1047 = vunpack.c.l.b16 %v277
    %v1048 = vunpack.c.h.b16 %v277
    %v1049 = vunpack.c.l.b16 %v278
    %v1050 = vunpack.c.h.b16 %v278
    %v1051 = vunpack.c.l.b16 %v279
    %v1052 = vunpack.c.h.b16 %v279
    %v1053 = vunpack.c.l.b16 %v280
    %v1054 = vunpack.c.h.b16 %v280
    %v1055 = vunpack.c.l.b16 %v281
    %v1056 = vunpack.c.h.b16 %v281
    %v1057 = vunpack.c.l.b16 %v282
    %v1058 = vunpack.c.h.b16 %v282
    %v1059 = vunpack.c.l.b16 %v283
    %v1060 = vunpack.c.h.b16 %v283
    %v1061 = vunpack.c.l.b16 %v284
    %v1062 = vunpack.c.h.b16 %v284
    %v1063 = vunpack.c.l.b16 %v285
    %v1064 = vunpack.c.h.b16 %v285
    %v1065 = vunpack.c.l.b16 %v286
    %v1066 = vunpack.c.h.b16 %v286
    %v1067 = vunpack.c.l.b16 %v287
    %v1068 = vunpack.c.h.b16 %v287
    %v1069 = vunpack.c.l.b16 %v288
    %v1070 = vunpack.c.h.b16 %v288
    %v1071 = vunpack.c.l.b16 %v289
    %v1072 = vunpack.c.h.b16 %v289
    %v1073 = vunpack.c.l.b16 %v290
    %v1074 = vunpack.c.h.b16 %v290
    %v1075 = vunpack.c.l.b16 %v291
    %v1076 = vunpack.c.h.b16 %v291
    %v1077 = vunpack.c.l.b16 %v292
    %v1078 = vunpack.c.h.b16 %v292
    %v1079 = vunpack.c.l.b16 %v293
    %v1080 = vunpack.c.h.b16 %v293
    %v1081 = vunpack.c.l.b16 %v294
    %v1082 = vunpack.c.h.b16 %v294
    %v1083 = vunpack.c.l.b16 %v295
    %v1084 = vunpack.c.h.b16 %v295
    %v1085 = vunpack.c.l.b16 %v296
    %v1086 = vunpack.c.h.b16 %v296
    %v1087 = vunpack.c.l.b16 %v297
    %v1088 = vunpack.c.h.b16 %v297
    %v1089 = vunpack.c.l.b16 %v298
    %v1090 = vunpack.c.h.b16 %v298
    %v1091 = vunpack.c.l.b16 %v299
    %v1092 = vunpack.c.h.b16 %v299
    %v1093 = vunpack.c.l.b16 %v300
    %v1094 = vunpack.c.h.b16 %v300
    %v1095 = vunpack.c.l.b16 %v301
    %v1096 = vunpack.c.h.b16 %v301
    %v1097 = vunpack.c.l.b16 %v302
    %v1098 = vunpack.c.h.b16 %v302
    %v1099 = vunpack.c.l.b16 %v303
    %v1100 = vunpack.c.h.b16 %v303
    %v1101 = vunpack.c.l.b16 %v304
    %v1102 = vunpack.c.h.b16 %v304
    %v1103 = vunpack.c.l.b16 %v305
    %v1104 = vunpack.c.h.b16 %v305
    %v1105 = vunpack.c.l.b16 %v306
    %v1106 = vunpack.c.h.b16 %v306
    %v1107 = vunpack.c.l.b16 %v307
    %v1108 = vunpack.c.h.b16 %v307
    %v1109 = vunpack.c.l.b16 %v308
    %v1110 = vunpack.c.h.b16 %v308
    %v1111 = vunpack.c.l.b16 %v309
    %v1112 = vunpack.c.h.b16 %v309
    %v1113 = vunpack.c.l.b16 %v310
    %v1114 = vunpack.c.h.b16 %v310
    %v1115 = vunpack.c.l.b16 %v311
    %v1116 = vunpack.c.h.b16 %v311
    %v1117 = vunpack.c.l.b16 %v312
    %v1118 = vunpack.c.h.b16 %v312
    %v1119 = vunpack.c.l.b16 %v313
    %v1120 = vunpack.c.h.b16 %v313
    %v1121 = vunpack.c.l.b16 %v314
    %v1122 = vunpack.c.h.b16 %v314
    %v1123 = vunpack.c.l.b16 %v315
    %v1124 = vunpack.c.h.b16 %v315
    %v1125 = vunpack.c.l.b16 %v316
    %v1126 = vunpack.c.h.b16 %v316
    %v1127 = vunpack.c.l.b16 %v317
    %v1128 = vunpack.c.h.b16 %v317
    %v1129 = vunpack.c.l.b16 %v318
    %v1130 = vunpack.c.h.b16 %v318
    %v1131 = vunpack.c.l.b16 %v319
    %v1132 = vunpack.c.h.b16 %v319
    %v1133 = vunpack.c.l.b16 %v320
    %v1134 = vunpack.c.h.b16 %v320
    %v1135 = vunpack.c.l.b16 %v321
    %v1136 = vunpack.c.h.b16 %v321
    %v1137 = vunpack.c.l.b16 %v322
    %v1138 = vunpack.c.h.b16 %v322
    %v1139 = vunpack.c.l.b16 %v323
    %v1140 = vunpack.c.h.b16 %v323
    %v1141 = vunpack.c.l.b16 %v324
    %v1142 = vunpack.c.h.b16 %v324
    %v1143 = vunpack.c.l.b16 %v325
    %v1144 = vunpack.c.h.b16 %v325
    %v1145 = vunpack.c.l.b16 %v326
    %v1146 = vunpack.c.h.b16 %v326
    %v1147 = vunpack.c.l.b16 %v327
    %v1148 = vunpack.c.h.b16 %v327
    %v1149 = vunpack.c.l.b16 %v328
    %v1150 = vunpack.c.h.b16 %v328
    %v1151 = vunpack.c.l.b16 %v329
    %v1152 = vunpack.c.h.b16 %v329
    %v1153 = vunpack.c.l.b16 %v330
    %v1154 = vunpack.c.h.b16 %v330
    %v1155 = vunpack.c.l.b16 %v331
    %v1156 = vunpack.c.h.b16 %v331
    %v1157 = vunpack.c.l.b16 %v332
    %v1158 = vunpack.c.h.b16 %v332
    %v1159 = vunpack.c.l.b16 %v333
    %v1160 = vunpack.c.h.b16 %v333
    %v1161 = vunpack.c.l.b16 %v334
    %v1162 = vunpack.c.h.b16 %v334
    %v1163 = vunpack.c.l.b16 %v335
    %v1164 = vunpack.c.h.b16 %v335
    %v1165 = vunpack.c.l.b16 %v336
    %v1166 = vunpack.c.h.b16 %v336
    %v1167 = vunpack.c.l.b16 %v337
    %v1168 = vunpack.c.h.b16 %v337
    %v1169 = vunpack.c.l.b16 %v338
    %v1170 = vunpack.c.h.b16 %v338
    %v1171 = vunpack.c.l.b16 %v339
    %v1172 = vunpack.c.h.b16 %v339
    %v1173 = vunpack.c.l.b16 %v340
    %v1174 = vunpack.c.h.b16 %v340
    %v1175 = vunpack.c.l.b16 %v341
    %v1176 = vunpack.c.h.b16 %v341
    %v1177 = vunpack.c.l.b16 %v342
    %v1178 = vunpack.c.h.b16 %v342
    %v1179 = vunpack.c.l.b16 %v343
    %v1180 = vunpack.c.h.b16 %v343
    %v1181 = vunpack.c.l.b16 %v344
    %v1182 = vunpack.c.h.b16 %v344
    %v1183 = vunpack.c.l.b16 %v345
    %v1184 = vunpack.c.h.b16 %v345
    %v1185 = vunpack.c.l.b16 %v346
    %v1186 = vunpack.c.h.b16 %v346
    %v1187 = vunpack.c.l.b16 %v347
    %v1188 = vunpack.c.h.b16 %v347
    %v1189 = vunpack.c.l.b16 %v348
    %v1190 = vunpack.c.h.b16 %v348
    %v1191 = vunpack.c.l.b16 %v349
    %v1192 = vunpack.c.h.b16 %v349
    %v1193 = vunpack.c.l.b16 %v350
    %v1194 = vunpack.c.h.b16 %v350
    %v1195 = vunpack.c.l.b16 %v351
    %v1196 = vunpack.c.h.b16 %v351
    %v1197 = vunpack.c.l.b16 %v352
    %v1198 = vunpack.c.h.b16 %v352
    %v1199 = vunpack.c.l.b16 %v353
    %v1200 = vunpack.c.h.b16 %v353
    %v1201 = vunpack.c.l.b16 %v354
    %v1202 = vunpack.c.h.b16 %v354
    %v1203 = vunpack.c.l.b16 %v355
    %v1204 = vunpack.c.h.b16 %v355
    %v1205 = vunpack.c.l.b16 %v356
    %v1206 = vunpack.c.h.b16 %v356
    %v1207 = vunpack.c.l.b16 %v357
    %v1208 = vunpack.c.h.b16 %v357
    %v1209 = vunpack.c.l.b16 %v358
    %v1210 = vunpack.c.h.b16 %v358
    %v1211 = vunpack.c.l.b16 %v359
    %v1212 = vunpack.c.h.b16 %v359
    %v1213 = vunpack.c.l.b16 %v360
    %v1214 = vunpack.c.h.b16 %v360
    %v1215 = vunpack.c.l.b16 %v361
    %v1216 = vunpack.c.h.b16 %v361
    %v1217 = vunpack.c.l.b16 %v362
    %v1218 = vunpack.c.h.b16 %v362
    %v1219 = vunpack.c.l.b16 %v363
    %v1220 = vunpack.c.h.b16 %v363
    %v1221 = vunpack.c.l.b16 %v364
    %v1222 = vunpack.c.h.b16 %v364
    %v1223 = vunpack.c.l.b16 %v365
    %v1224 = vunpack.c.h.b16 %v365
    %v1225 = vunpack.c.l.b16 %v366
    %v1226 = vunpack.c.h.b16 %v366
    %v1227 = vunpack.c.l.b16 %v367
    %v1228 = vunpack.c.h.b16 %v367
    %v1229 = vunpack.c.l.b16 %v368
    %v1230 = vunpack.c.h.b16 %v368
    %v1231 = vunpack.c.l.b16 %v369
    %v1232 = vunpack.c.h.b16 %v369
    %v1233 = vunpack.c.l.b16 %v370
    %v1234 = vunpack.c.h.b16 %v370
    %v1235 = vunpack.c.l.b16 %v371
    %v1236 = vunpack.c.h.b16 %v371
    %v1237 = vunpack.c.l.b16 %v372
    %v1238 = vunpack.c.h.b16 %v372
    %v1239 = vunpack.c.l.b16 %v373
    %v1240 = vunpack.c.h.b16 %v373
    %v1241 = vunpack.c.l.b16 %v374
    %v1242 = vunpack.c.h.b16 %v374
    %v1243 = vunpack.c.l.b16 %v375
    %v1244 = vunpack.c.h.b16 %v375
    %v1245 = vunpack.c.l.b16 %v376
    %v1246 = vunpack.c.h.b16 %v376
    %v1247 = vunpack.c.l.b16 %v377
    %v1248 = vunpack.c.h.b16 %v377
    %v1249 = vunpack.c.l.b16 %v378
    %v1250 = vunpack.c.h.b16 %v378
    %v1251 = vunpack.c.l.b16 %v379
    %v1252 = vunpack.c.h.b16 %v379
    %v1253 = vunpack.c.l.b16 %v380
    %v1254 = vunpack.c.h.b16 %v380
    %v1255 = vunpack.c.l.b16 %v381
    %v1256 = vunpack.c.h.b16 %v381
    %v1257 = vunpack.c.l.b16 %v382
    %v1258 = vunpack.c.h.b16 %v382
    %v1259 = vunpack.c.l.b16 %v383
    %v1260 = vunpack.c.h.b16 %v383
    %v1261 = vunpack.c.l.b16 %v384
    %v1262 = vunpack.c.h.b16 %v384
    %v1263 = vunpack.c.l.b16 %v385
    %v1264 = vunpack.c.h.b16 %v385
    %v1265 = vunpack.c.l.b16 %v386
    %v1266 = vunpack.c.h.b16 %v386
    %v1267 = vunpack.c.l.b16 %v387
    %v1268 = vunpack.c.h.b16 %v387
    %v1269 = vunpack.c.l.b16 %v388
    %v1270 = vunpack.c.h.b16 %v388
    %v1271 = vunpack.c.l.b16 %v389
    %v1272 = vunpack.c.h.b16 %v389
    %v1273 = vunpack.c.l.b16 %v390
    %v1274 = vunpack.c.h.b16 %v390
    %v1275 = vunpack.c.l.b16 %v391
    %v1276 = vunpack.c.h.b16 %v391
    %v1277 = vunpack.c.l.b16 %v392
    %v1278 = vunpack.c.h.b16 %v392
    %v1279 = vunpack.c.l.b16 %v393
    %v1280 = vunpack.c.h.b16 %v393
    %v1281 = vunpack.c.l.b16 %v394
    %v1282 = vunpack.c.h.b16 %v394
    %v1283 = vunpack.c.l.b16 %v395
    %v1284 = vunpack.c.h.b16 %v395
    %v1285 = vunpack.c.l.b16 %v396
    %v1286 = vunpack.c.h.b16 %v396
    %v1287 = vunpack.c.l.b16 %v397
    %v1288 = vunpack.c.h.b16 %v397
    %v1289 = vunpack.c.l.b16 %v398
    %v1290 = vunpack.c.h.b16 %v398
    %v1291 = vunpack.c.l.b16 %v399
    %v1292 = vunpack.c.h.b16 %v399
    %v1293 = vunpack.c.l.b16 %v400
    %v1294 = vunpack.c.h.b16 %v400
    %v1295 = vunpack.c.l.b16 %v401
    %v1296 = vunpack.c.h.b16 %v401
    %v1297 = vunpack.c.l.b16 %v402
    %v1298 = vunpack.c.h.b16 %v402
    %v1299 = vunpack.c.l.b16 %v403
    %v1300 = vunpack.c.h.b16 %v403
    %v1301 = vunpack.c.l.b16 %v404
    %v1302 = vunpack.c.h.b16 %v404
    %v1303 = vunpack.c.l.b16 %v405
    %v1304 = vunpack.c.h.b16 %v405
    %v1305 = vunpack.c.l.b16 %v406
    %v1306 = vunpack.c.h.b16 %v406
    %v1307 = vunpack.c.l.b16 %v407
    %v1308 = vunpack.c.h.b16 %v407
    %v1309 = vunpack.c.l.b16 %v408
    %v1310 = vunpack.c.h.b16 %v408
    %v1311 = vunpack.c.l.b16 %v409
    %v1312 = vunpack.c.h.b16 %v409
    %v1313 = vunpack.c.l.b16 %v410
    %v1314 = vunpack.c.h.b16 %v410
    %v1315 = vunpack.c.l.b16 %v411
    %v1316 = vunpack.c.h.b16 %v411
    %v1317 = vunpack.c.l.b16 %v412
    %v1318 = vunpack.c.h.b16 %v412
    %v1319 = vunpack.c.l.b16 %v413
    %v1320 = vunpack.c.h.b16 %v413
    %v1321 = vunpack.c.l.b16 %v414
    %v1322 = vunpack.c.h.b16 %v414
    %v1323 = vunpack.c.l.b16 %v415
    %v1324 = vunpack.c.h.b16 %v415
    %v1325 = vunpack.c.l.b16 %v416
    %v1326 = vunpack.c.h.b16 %v416
    %v1327 = vunpack.c.l.b16 %v417
    %v1328 = vunpack.c.h.b16 %v417
    %v1329 = vunpack.c.l.b16 %v418
    %v1330 = vunpack.c.h.b16 %v418
    %v1331 = vunpack.c.l.b16 %v419
    %v1332 = vunpack.c.h.b16 %v419
    %v1333 = vunpack.c.l.b16 %v420
    %v1334 = vunpack.c.h.b16 %v420
    %v1335 = vunpack.c.l.b16 %v421
    %v1336 = vunpack.c.h.b16 %v421
    %v1337 = vunpack.c.l.b16 %v422
    %v1338 = vunpack.c.h.b16 %v422
    %v1339 = vunpack.c.l.b16 %v423
    %v1340 = vunpack.c.h.b16 %v423
    %v1341 = vunpack.c.l.b16 %v424
    %v1342 = vunpack.c.h.b16 %v424
    %v1343 = vunpack.c.l.b16 %v425
    %v1344 = vunpack.c.h.b16 %v425
    %v1345 = vunpack.c.l.b16 %v426
    %v1346 = vunpack.c.h.b16 %v426
    %v1347 = vunpack.c.l.b16 %v427
    %v1348 = vunpack.c.h.b16 %v427
    %v1349 = vunpack.c.l.b16 %v428
    %v1350 = vunpack.c.h.b16 %v428
    %v1351 = vunpack.c.l.b16 %v429
    %v1352 = vunpack.c.h.b16 %v429
    %v1353 = vunpack.c.l.b16 %v430
    %v1354 = vunpack.c.h.b16 %v430
    %v1355 = vunpack.c.l.b16 %v431
    %v1356 = vunpack.c.h.b16 %v431
    %v1357 = vunpack.c.l.b16 %v432
    %v1358 = vunpack.c.h.b16 %v432
    %v1359 = vpack.c.b16 %v789, %v783
    %v1360 = vpack.c.b16 %v790, %v784
    %v1361 = vpack.c.b16 %v791, %v785
    %v1362 = vpack.c.b16 %v792, %v786
    %v1363 = vpack.c.b16 %v793, %v787
    %v1364 = vpack.c.b16 %v794, %v788
    %v1365 = vpack.c.b16 %v801, %v795
    %v1366 = vpack.c.b16 %v802, %v796
    %v1367 = vpack.c.b16 %v803, %v797
    %v1368 = vpack.c.b16 %v804, %v798
    %v1369 = vpack.c.b16 %v805, %v799
    %v1370 = vpack.c.b16 %v806, %v800
    %v1371 = vpack.c.b16 %v813, %v807
    %v1372 = vpack.c.b16 %v814, %v808
    %v1373 = vpack.c.b16 %v815, %v809
    %v1374 = vpack.c.b16 %v816, %v810
    %v1375 = vpack.c.b16 %v817, %v811
    %v1376 = vpack.c.b16 %v818, %v812
    %v1377 = vpack.c.b16 %v825, %v819
    %v1378 = vpack.c.b16 %v826, %v820
    %v1379 = vpack.c.b16 %v827, %v821
    %v1380 = vpack.c.b16 %v828, %v822
    %v1381 = vpack.c.b16 %v829, %v823
    %v1382 = vpack.c.b16 %v830, %v824
    %v1383 = vpack.c.b16 %v837, %v831
    %v1384 = vpack.c.b16 %v838, %v832
    %v1385 = vpack.c.b16 %v839, %v833
    %v1386 = vpack.c.b16 %v840, %v834
    %v1387 = vpack.c.b16 %v841, %v835
    %v1388 = vpack.c.b16 %v842, %v836
    %v1389 = vpack.c.b16 %v849, %v843
    %v1390 = vpack.c.b16 %v850, %v844
    %v1391 = vpack.c.b16 %v851, %v845
    %v1392 = vpack.c.b16 %v852, %v846
    %v1393 = vpack.c.b16 %v853, %v847
    %v1394 = vpack.c.b16 %v854, %v848
    %v1395 = vpack.c.b16 %v861, %v855
    %v1396 = vpack.c.b16 %v862, %v856
    %v1397 = vpack.c.b16 %v863, %v857
    %v1398 = vpack.c.b16 %v864, %v858
    %v1399 = vpack.c.b16 %v865, %v859
    %v1400 = vpack.c.b16 %v866, %v860
    %v1401 = vpack.c.b16 %v873, %v867
    %v1402 = vpack.c.b16 %v874, %v868
    %v1403 = vpack.c.b16 %v875, %v869
    %v1404 = vpack.c.b16 %v876, %v870
    %v1405 = vpack.c.b16 %v877, %v871
    %v1406 = vpack.c.b16 %v878, %v872
    %v1407 = vpack.c.b16 %v885, %v879
    %v1408 = vpack.c.b16 %v886, %v880
    %v1409 = vpack.c.b16 %v887, %v881
    %v1410 = vpack.c.b16 %v888, %v882
    %v1411 = vpack.c.b16 %v889, %v883
    %v1412 = vpack.c.b16 %v890, %v884
    %v1413 = vpack.c.b16 %v897, %v891
    %v1414 = vpack.c.b16 %v898, %v892
    %v1415 = vpack.c.b16 %v899, %v893
    %v1416 = vpack.c.b16 %v900, %v894
    %v1417 = vpack.c.b16 %v901, %v895
    %v1418 = vpack.c.b16 %v902, %v896
    %v1419 = vpack.c.b16 %v909, %v903
    %v1420 = vpack.c.b16 %v910, %v904
    %v1421 = vpack.c.b16 %v911, %v905
    %v1422 = vpack.c.b16 %v912, %v906
    %v1423 = vpack.c.b16 %v913, %v907
    %v1424 = vpack.c.b16 %v914, %v908
    %v1425 = vpack.c.b16 %v921, %v915
    %v1426 = vpack.c.b16 %v922, %v916
    %v1427 = vpack.c.b16 %v923, %v917
    %v1428 = vpack.c.b16 %v924, %v918
    %v1429 = vpack.c.b16 %v925, %v919
    %v1430 = vpack.c.b16 %v926, %v920
    %v1431 = vpack.c.b16 %v933, %v927
    %v1432 = vpack.c.b16 %v934, %v928
    %v1433 = vpack.c.b16 %v935, %v929
    %v1434 = vpack.c.b16 %v936, %v930
    %v1435 = vpack.c.b16 %v937, %v931
    %v1436 = vpack.c.b16 %v938, %v932
    %v1437 = vpack.c.b16 %v945, %v939
    %v1438 = vpack.c.b16 %v946, %v940
    %v1439 = vpack.c.b16 %v947, %v941
    %v1440 = vpack.c.b16 %v948, %v942
    %v1441 = vpack.c.b16 %v949, %v943
    %v1442 = vpack.c.b16 %v950, %v944
    %v1443 = vpack.c.b16 %v957, %v951
    %v1444 = vpack.c.b16 %v958, %v952
    %v1445 = vpack.c.b16 %v959, %v953
    %v1446 = vpack.c.b16 %v960, %v954
    %v1447 = vpack.c.b16 %v961, %v955
    %v1448 = vpack.c.b16 %v962, %v956
    %v1449 = vpack.c.b16 %v969, %v963
    %v1450 = vpack.c.b16 %v970, %v964
    %v1451 = vpack.c.b16 %v971, %v965
    %v1452 = vpack.c.b16 %v972, %v966
    %v1453 = vpack.c.b16 %v973, %v967
    %v1454 = vpack.c.b16 %v974, %v968
    %v1455 = vpack.c.b16 %v981, %v975
    %v1456 = vpack.c.b16 %v982, %v976
    %v1457 = vpack.c.b16 %v983, %v977
    %v1458 = vpack.c.b16 %v984, %v978
    %v1459 = vpack.c.b16 %v985, %v979
    %v1460 = vpack.c.b16 %v986, %v980
    %v1461 = vpack.c.b16 %v993, %v987
    %v1462 = vpack.c.b16 %v994, %v988
    %v1463 = vpack.c.b16 %v995, %v989
    %v1464 = vpack.c.b16 %v996, %v990
    %v1465 = vpack.c.b16 %v997, %v991
    %v1466 = vpack.c.b16 %v998, %v992
    %v1467 = vpack.c.b16 %v1005, %v999
    %v1468 = vpack.c.b16 %v1006, %v1000
    %v1469 = vpack.c.b16 %v1007, %v1001
    %v1470 = vpack.c.b16 %v1008, %v1002
    %v1471 = vpack.c.b16 %v1009, %v1003
    %v1472 = vpack.c.b16 %v1010, %v1004
    %v1473 = vpack.c.b16 %v1017, %v1011
    %v1474 = vpack.c.b16 %v1018, %v1012
    %v1475 = vpack.c.b16 %v1019, %v1013
    %v1476 = vpack.c.b16 %v1020, %v1014
    %v1477 = vpack.c.b16 %v1021, %v1015
    %v1478 = vpack.c.b16 %v1022, %v1016
    %v1479 = vpack.c.b16 %v1029, %v1023
    %v1480 = vpack.c.b16 %v1030, %v1024
    %v1481 = vpack.c.b16 %v1031, %v1025
    %v1482 = vpack.c.b16 %v1032, %v1026
    %v1483 = vpack.c.b16 %v1033, %v1027
    %v1484 = vpack.c.b16 %v1034, %v1028
    %v1485 = vpack.c.b16 %v1041, %v1035
    %v1486 = vpack.c.b16 %v1042, %v1036
    %v1487 = vpack.c.b16 %v1043, %v1037
    %v1488 = vpack.c.b16 %v1044, %v1038
    %v1489 = vpack.c.b16 %v1045, %v1039
    %v1490 = vpack.c.b16 %v1046, %v1040
    %v1491 = vpack.c.b16 %v1053, %v1047
    %v1492 = vpack.c.b16 %v1054, %v1048
    %v1493 = vpack.c.b16 %v1055, %v1049
    %v1494 = vpack.c.b16 %v1056, %v1050
    %v1495 = vpack.c.b16 %v1057, %v1051
    %v1496 = vpack.c.b16 %v1058, %v1052
    %v1497 = vpack.c.b16 %v1065, %v1059
    %v1498 = vpack.c.b16 %v1066, %v1060
    %v1499 = vpack.c.b16 %v1067, %v1061
    %v1500 = vpack.c.b16 %v1068, %v1062
    %v1501 = vpack.c.b16 %v1069, %v1063
    %v1502 = vpack.c.b16 %v1070, %v1064
    %v1503 = vpack.c.b16 %v1077, %v1071
    %v1504 = vpack.c.b16 %v1078, %v1072
    %v1505 = vpack.c.b16 %v1079, %v1073
    %v1506 = vpack.c.b16 %v1080, %v1074
    %v1507 = vpack.c.b16 %v1081, %v1075
    %v1508 = vpack.c.b16 %v1082, %v1076
    %v1509 = vpack.c.b16 %v1089, %v1083
    %v1510 = vpack.c.b16 %v1090, %v1084
    %v1511 = vpack.c.b16 %v1091, %v1085
    %v1512 = vpack.c.b16 %v1092, %v1086
    %v1513 = vpack.c.b16 %v1093, %v1087
    %v1514 = vpack.c.b16 %v1094, %v1088
    %v1515 = vpack.c.b16 %v1101, %v1095
    %v1516 = vpack.c.b16 %v1102, %v1096
    %v1517 = vpack.c.b16 %v1103, %v1097
    %v1518 = vpack.c.b16 %v1104, %v1098
    %v1519 = vpack.c.b16 %v1105, %v1099
    %v1520 = vpack.c.b16 %v1106, %v1100
    %v1521 = vpack.c.b16 %v1113, %v1107
    %v1522 = vpack.c.b16 %v1114, %v1108
    %v1523 = vpack.c.b16 %v1115, %v1109
    %v1524 = vpack.c.b16 %v1116, %v1110
    %v1525 = vpack.c.b16 %v1117, %v1111
    %v1526 = vpack.c.b16 %v1118, %v1112
    %v1527 = vpack.c.b16 %v1125, %v1119
    %v1528 = vpack.c.b16 %v1126, %v1120
    %v1529 = vpack.c.b16 %v1127, %v1121
    %v1530 = vpack.c.b16 %v1128, %v1122
    %v1531 = vpack.c.b16 %v1129, %v1123
    %v1532 = vpack.c.b16 %v1130, %v1124
    %v1533 = vpack.c.b16 %v1137, %v1131
    %v1534 = vpack.c.b16 %v1138, %v1132
    %v1535 = vpack.c.b16 %v1139, %v1133
    %v1536 = vpack.c.b16 %v1140, %v1134
    %v1537 = vpack.c.b16 %v1141, %v1135
    %v1538 = vpack.c.b16 %v1142, %v1136
    %v1539 = vpack.c.b16 %v1149, %v1143
    %v1540 = vpack.c.b16 %v1150, %v1144
    %v1541 = vpack.c.b16 %v1151, %v1145
    %v1542 = vpack.c.b16 %v1152, %v1146
    %v1543 = vpack.c.b16 %v1153, %v1147
    %v1544 = vpack.c.b16 %v1154, %v1148
    %v1545 = vpack.c.b16 %v1161, %v1155
    %v1546 = vpack.c.b16 %v1162, %v1156
    %v1547 = vpack.c.b16 %v1163, %v1157
    %v1548 = vpack.c.b16 %v1164, %v1158
    %v1549 = vpack.c.b16 %v1165, %v1159
    %v1550 = vpack.c.b16 %v1166, %v1160
    %v1551 = vpack.c.b16 %v1173, %v1167
    %v1552 = vpack.c.b16 %v1174, %v1168
    %v1553 = vpack.c.b16 %v1175, %v1169
    %v1554 = vpack.c.b16 %v1176, %v1170
    %v1555 = vpack.c.b16 %v1177, %v1171
    %v1556 = vpack.c.b16 %v1178, %v1172
    %v1557 = vpack.c.b16 %v1185, %v1179
    %v1558 = vpack.c.b16 %v1186, %v1180
    %v1559 = vpack.c.b16 %v1187, %v1181
    %v1560 = vpack.c.b16 %v1188, %v1182
    %v1561 = vpack.c.b16 %v1189, %v1183
    %v1562 = vpack.c.b16 %v1190, %v1184
    %v1563 = vpack.c.b16 %v1197, %v1191
    %v1564 = vpack.c.b16 %v1198, %v1192
    %v1565 = vpack.c.b16 %v1199, %v1193
    %v1566 = vpack.c.b16 %v1200, %v1194
    %v1567 = vpack.c.b16 %v1201, %v1195
    %v1568 = vpack.c.b16 %v1202, %v1196
    %v1569 = vpack.c.b16 %v1209, %v1203
    %v1570 = vpack.c.b16 %v1210, %v1204
    %v1571 = vpack.c.b16 %v1211, %v1205
    %v1572 = vpack.c.b16 %v1212, %v1206
    %v1573 = vpack.c.b16 %v1213, %v1207
    %v1574 = vpack.c.b16 %v1214, %v1208
    %v1575 = vpack.c.b16 %v1221, %v1215
    %v1576 = vpack.c.b16 %v1222, %v1216
    %v1577 = vpack.c.b16 %v1223, %v1217
    %v1578 = vpack.c.b16 %v1224, %v1218
    %v1579 = vpack.c.b16 %v1225, %v1219
    %v1580 = vpack.c.b16 %v1226, %v1220
    %v1581 = vpack.c.b16 %v1233, %v1227
    %v1582 = vpack.c.b16 %v1234, %v1228
    %v1583 = vpack.c.b16 %v1235, %v1229
    %v1584 = vpack.c.b16 %v1236, %v1230
    %v1585 = vpack.c.b16 %v1237, %v1231
    %v1586 = vpack.c.b16 %v1238, %v1232
    %v1587 = vpack.c.b16 %v1245, %v1239
    %v1588 = vpack.c.b16 %v1246, %v1240
    %v1589 = vpack.c.b16 %v1247, %v1241
    %v1590 = vpack.c.b16 %v1248, %v1242
    %v1591 = vpack.c.b16 %v1249, %v1243
    %v1592 = vpack.c.b16 %v1250, %v1244
    %v1593 = vpack.c.b16 %v1257, %v1251
    %v1594 = vpack.c.b16 %v1258, %v1252
    %v1595 = vpack.c.b16 %v1259, %v1253
    %v1596 = vpack.c.b16 %v1260, %v1254
    %v1597 = vpack.c.b16 %v1261, %v1255
    %v1598 = vpack.c.b16 %v1262, %v1256
    %v1599 = vpack.c.b16 %v1269, %v1263
    %v1600 = vpack.c.b16 %v1270, %v1264
    %v1601 = vpack.c.b16 %v1271, %v1265
    %v1602 = vpack.c.b16 %v1272, %v1266
    %v1603 = vpack.c.b16 %v1273, %v1267
    %v1604 = vpack.c.b16 %v1274, %v1268
    %v1605 = vpack.c.b16 %v1281, %v1275
    %v1606 = vpack.c.b16 %v1282, %v1276
    %v1607 = vpack.c.b16 %v1283, %v1277
    %v1608 = vpack.c.b16 %v1284, %v1278
    %v1609 = vpack.c.b16 %v1285, %v1279
    %v1610 = vpack.c.b16 %v1286, %v1280
    %v1611 = vpack.c.b16 %v1293, %v1287
    %v1612 = vpack.c.b16 %v1294, %v1288
    %v1613 = vpack.c.b16 %v1295, %v1289
    %v1614 = vpack.c.b16 %v1296, %v1290
    %v1615 = vpack.c.b16 %v1297, %v1291
    %v1616 = vpack.c.b16 %v1298, %v1292
    %v1617 = vpack.c.b16 %v1305, %v1299
    %v1618 = vpack.c.b16 %v1306, %v1300
    %v1619 = vpack.c.b16 %v1307, %v1301
    %v1620 = vpack.c.b16 %v1308, %v1302
    %v1621 = vpack.c.b16 %v1309, %v1303
    %v1622 = vpack.c.b16 %v1310, %v1304
    %v1623 = vpack.c.b16 %v1317, %v1311
    %v1624 = vpack.c.b16 %v1318, %v1312
    %v1625 = vpack.c.b16 %v1319, %v1313
    %v1626 = vpack.c.b16 %v1320, %v1314
    %v1627 = vpack.c.b16 %v1321, %v1315
    %v1628 = vpack.c.b16 %v1322, %v1316
    %v1629 = vpack.c.b16 %v1329, %v1323
    %v1630 = vpack.c.b16 %v1330, %v1324
    %v1631 = vpack.c.b16 %v1331, %v1325
    %v1632 = vpack.c.b16 %v1332, %v1326
    %v1633 = vpack.c.b16 %v1333, %v1327
    %v1634 = vpack.c.b16 %v1334, %v1328
    %v1635 = vpack.c.b16 %v1341, %v1335
    %v1636 = vpack.c.b16 %v1342, %v1336
    %v1637 = vpack.c.b16 %v1343, %v1337
    %v1638 = vpack.c.b16 %v1344, %v1338
    %v1639 = vpack.c.b16 %v1345, %v1339
    %v1640 = vpack.c.b16 %v1346, %v1340
    %v1641 = vpack.c.b16 %v1353, %v1347
    %v1642 = vpack.c.b16 %v1354, %v1348
    %v1643 = vpack.c.b16 %v1355, %v1349
    %v1644 = vpack.c.b16 %v1356, %v1350
    %v1645 = vpack.c.b16 %v1357, %v1351
    %v1646 = vpack.c.b16 %v1358, %v1352
    %1935 = vmatprep.subr.bf16.mxu0 %v1360
    %1936 = vmatpush1.bf16.msra.mxu0 %v1359
    %1937 = vmatprep.subr.bf16.mxu0 %v1366
    %1938 = vmatpush1.bf16.msra.mxu0 %v1365
    %1939 = vmatprep.subr.bf16.mxu0 %v1372
    %1940 = vmatpush1.bf16.msra.mxu0 %v1371
    %1941 = vmatprep.subr.bf16.mxu0 %v1378
    %1942 = vmatpush1.bf16.msra.mxu0 %v1377
    %1943 = vmatprep.subr.bf16.mxu0 %v1384
    %1944 = vmatpush1.bf16.msra.mxu0 %v1383
    %1945 = vmatprep.subr.bf16.mxu0 %v1390
    %1946 = vmatpush1.bf16.msra.mxu0 %v1389
    %1947 = vmatprep.subr.bf16.mxu0 %v1396
    %1948 = vmatpush1.bf16.msra.mxu0 %v1395
    %1949 = vmatprep.subr.bf16.mxu0 %v1402
    %1950 = vmatpush1.bf16.msra.mxu0 %v1401
    %1951 = vmatprep.subr.bf16.mxu0 %v1408
    %1952 = vmatpush1.bf16.msra.mxu0 %v1407
    %1953 = vmatprep.subr.bf16.mxu0 %v1414
    %1954 = vmatpush1.bf16.msra.mxu0 %v1413
    %1955 = vmatprep.subr.bf16.mxu0 %v1420
    %1956 = vmatpush1.bf16.msra.mxu0 %v1419
    %1957 = vmatprep.subr.bf16.mxu0 %v1426
    %1958 = vmatpush1.bf16.msra.mxu0 %v1425
    %1959 = vmatprep.subr.bf16.mxu0 %v1432
    %1960 = vmatpush1.bf16.msra.mxu0 %v1431
    %1961 = vmatprep.subr.bf16.mxu0 %v1438
    %1962 = vmatpush1.bf16.msra.mxu0 %v1437
    %1963 = vmatprep.subr.bf16.mxu0 %v1444
    %1964 = vmatpush1.bf16.msra.mxu0 %v1443
    %1965 = vmatprep.subr.bf16.mxu0 %v1450
    %1966 = vmatpush1.bf16.msra.mxu0 %v1449
    %1967 = vmatprep.mubr.bf16.mxu0 %v484
    %1968 = vmatmul.mubr.bf16.gmra.mrb[0].mxu0 %v483
    %v1969 = vpop.f32.mrb[0].mxu0
    %v1970 = vadd.f32 %v438, %v1969
    %v1971 = vpop.f32.mrb[0].mxu0
    %v1972 = vadd.f32 %v442, %v1971
    %v1973 = vpop.f32.mrb[0].mxu0
    %v1974 = vadd.f32 %v438, %v1973
    %v1975 = vpop.f32.mrb[0].mxu0
    %v1976 = vadd.f32 %v442, %v1975
    %1977 = vdwg.mxu0
    %1978 = vmatprep.subr.bf16.mxu0 %v1456
    %1979 = vmatpush1.bf16.msra.mxu0 %v1455
    %1980 = vmatprep.subr.bf16.mxu0 %v1462
    %1981 = vmatpush1.bf16.msra.mxu0 %v1461
    %1982 = vmatprep.subr.bf16.mxu0 %v1468
    %1983 = vmatpush1.bf16.msra.mxu0 %v1467
    %1984 = vmatprep.subr.bf16.mxu0 %v1474
    %1985 = vmatpush1.bf16.msra.mxu0 %v1473
    %1986 = vmatprep.subr.bf16.mxu0 %v1480
    %1987 = vmatpush1.bf16.msra.mxu0 %v1479
    %1988 = vmatprep.subr.bf16.mxu0 %v1486
    %1989 = vmatpush1.bf16.msra.mxu0 %v1485
    %1990 = vmatprep.subr.bf16.mxu0 %v1492
    %1991 = vmatpush1.bf16.msra.mxu0 %v1491
    %1992 = vmatprep.subr.bf16.mxu0 %v1498
    %1993 = vmatpush1.bf16.msra.mxu0 %v1497
    %1994 = vmatprep.subr.bf16.mxu0 %v1504
    %1995 = vmatpush1.bf16.msra.mxu0 %v1503
    %1996 = vmatprep.subr.bf16.mxu0 %v1510
    %1997 = vmatpush1.bf16.msra.mxu0 %v1509
    %1998 = vmatprep.subr.bf16.mxu0 %v1516
    %1999 = vmatpush1.bf16.msra.mxu0 %v1515
    %2000 = vmatprep.subr.bf16.mxu0 %v1522
    %2001 = vmatpush1.bf16.msra.mxu0 %v1521
    %2002 = vmatprep.subr.bf16.mxu0 %v1528
    %2003 = vmatpush1.bf16.msra.mxu0 %v1527
    %2004 = vmatprep.subr.bf16.mxu0 %v1534
    %2005 = vmatpush1.bf16.msra.mxu0 %v1533
    %2006 = vmatprep.subr.bf16.mxu0 %v1540
    %2007 = vmatpush1.bf16.msra.mxu0 %v1539
    %2008 = vmatprep.subr.bf16.mxu0 %v1546
    %2009 = vmatpush1.bf16.msra.mxu0 %v1545
    %2010 = vmatprep.mubr.bf16.mxu0 %v486
    %2011 = vmatmul.mubr.bf16.gmra.mrb[0].mxu0 %v485
    %v2012 = vpop.f32.mrb[0].mxu0
    %v2013 = vadd.f32 %v1970, %v2012
    %v2014 = vpop.f32.mrb[0].mxu0
    %v2015 = vadd.f32 %v1972, %v2014
    %v2016 = vpop.f32.mrb[0].mxu0
    %v2017 = vadd.f32 %v1974, %v2016
    %v2018 = vpop.f32.mrb[0].mxu0
    %v2019 = vadd.f32 %v1976, %v2018
    %2020 = vdwg.mxu0
    %2021 = vmatprep.subr.bf16.mxu0 %v1552
    %2022 = vmatpush1.bf16.msra.mxu0 %v1551
    %2023 = vmatprep.subr.bf16.mxu0 %v1558
    %2024 = vmatpush1.bf16.msra.mxu0 %v1557
    %2025 = vmatprep.subr.bf16.mxu0 %v1564
    %2026 = vmatpush1.bf16.msra.mxu0 %v1563
    %2027 = vmatprep.subr.bf16.mxu0 %v1570
    %2028 = vmatpush1.bf16.msra.mxu0 %v1569
    %2029 = vmatprep.subr.bf16.mxu0 %v1576
    %2030 = vmatpush1.bf16.msra.mxu0 %v1575
    %2031 = vmatprep.subr.bf16.mxu0 %v1582
    %2032 = vmatpush1.bf16.msra.mxu0 %v1581
    %2033 = vmatprep.subr.bf16.mxu0 %v1588
    %2034 = vmatpush1.bf16.msra.mxu0 %v1587
    %2035 = vmatprep.subr.bf16.mxu0 %v1594
    %2036 = vmatpush1.bf16.msra.mxu0 %v1593
    %2037 = vmatprep.subr.bf16.mxu0 %v1600
    %2038 = vmatpush1.bf16.msra.mxu0 %v1599
    %2039 = vmatprep.subr.bf16.mxu0 %v1606
    %2040 = vmatpush1.bf16.msra.mxu0 %v1605
    %2041 = vmatprep.subr.bf16.mxu0 %v1612
    %2042 = vmatpush1.bf16.msra.mxu0 %v1611
    %2043 = vmatprep.subr.bf16.mxu0 %v1618
    %2044 = vmatpush1.bf16.msra.mxu0 %v1617
    %2045 = vmatprep.subr.bf16.mxu0 %v1624
    %2046 = vmatpush1.bf16.msra.mxu0 %v1623
    %2047 = vmatprep.subr.bf16.mxu0 %v1630
    %2048 = vmatpush1.bf16.msra.mxu0 %v1629
    %2049 = vmatprep.subr.bf16.mxu0 %v1636
    %2050 = vmatpush1.bf16.msra.mxu0 %v1635
    %2051 = vmatprep.subr.bf16.mxu0 %v1642
    %2052 = vmatpush1.bf16.msra.mxu0 %v1641
    %2053 = vmatprep.mubr.bf16.mxu0 %v488
    %2054 = vmatmul.mubr.bf16.gmra.mrb[0].mxu0 %v487
    %v2055 = vpop.f32.mrb[0].mxu0
    %v2056 = vadd.f32 %v2013, %v2055
    %v2057 = vpop.f32.mrb[0].mxu0
    %v2058 = vadd.f32 %v2015, %v2057
    %v2059 = vpop.f32.mrb[0].mxu0
    %v2060 = vadd.f32 %v2017, %v2059
    %v2061 = vpop.f32.mrb[0].mxu0
    %v2062 = vadd.f32 %v2019, %v2061
    %2063 = vdwg.mxu0
    %2064 = vmatprep.subr.bf16.mxu0 %v1362
    %2065 = vmatpush1.bf16.msra.mxu0 %v1361
    %2066 = vmatprep.subr.bf16.mxu0 %v1368
    %2067 = vmatpush1.bf16.msra.mxu0 %v1367
    %2068 = vmatprep.subr.bf16.mxu0 %v1374
    %2069 = vmatpush1.bf16.msra.mxu0 %v1373
    %2070 = vmatprep.subr.bf16.mxu0 %v1380
    %2071 = vmatpush1.bf16.msra.mxu0 %v1379
    %2072 = vmatprep.subr.bf16.mxu0 %v1386
    %2073 = vmatpush1.bf16.msra.mxu0 %v1385
    %2074 = vmatprep.subr.bf16.mxu0 %v1392
    %2075 = vmatpush1.bf16.msra.mxu0 %v1391
    %2076 = vmatprep.subr.bf16.mxu0 %v1398
    %2077 = vmatpush1.bf16.msra.mxu0 %v1397
    %2078 = vmatprep.subr.bf16.mxu0 %v1404
    %2079 = vmatpush1.bf16.msra.mxu0 %v1403
    %2080 = vmatprep.subr.bf16.mxu0 %v1410
    %2081 = vmatpush1.bf16.msra.mxu0 %v1409
    %2082 = vmatprep.subr.bf16.mxu0 %v1416
    %2083 = vmatpush1.bf16.msra.mxu0 %v1415
    %2084 = vmatprep.subr.bf16.mxu0 %v1422
    %2085 = vmatpush1.bf16.msra.mxu0 %v1421
    %2086 = vmatprep.subr.bf16.mxu0 %v1428
    %2087 = vmatpush1.bf16.msra.mxu0 %v1427
    %2088 = vmatprep.subr.bf16.mxu0 %v1434
    %2089 = vmatpush1.bf16.msra.mxu0 %v1433
    %2090 = vmatprep.subr.bf16.mxu0 %v1440
    %2091 = vmatpush1.bf16.msra.mxu0 %v1439
    %2092 = vmatprep.subr.bf16.mxu0 %v1446
    %2093 = vmatpush1.bf16.msra.mxu0 %v1445
    %2094 = vmatprep.subr.bf16.mxu0 %v1452
    %2095 = vmatpush1.bf16.msra.mxu0 %v1451
    %2096 = vmatprep.mubr.bf16.mxu0 %v484
    %2097 = vmatmul.mubr.bf16.gmra.mrb[0].mxu0 %v483
    %v2098 = vpop.f32.mrb[0].mxu0
    %v2099 = vadd.f32 %v446, %v2098
    %v2100 = vpop.f32.mrb[0].mxu0
    %v2101 = vadd.f32 %v450, %v2100
    %v2102 = vpop.f32.mrb[0].mxu0
    %v2103 = vadd.f32 %v446, %v2102
    %v2104 = vpop.f32.mrb[0].mxu0
    %v2105 = vadd.f32 %v450, %v2104
    %2106 = vdwg.mxu0
    %2107 = vmatprep.subr.bf16.mxu0 %v1458
    %2108 = vmatpush1.bf16.msra.mxu0 %v1457
    %2109 = vmatprep.subr.bf16.mxu0 %v1464
    %2110 = vmatpush1.bf16.msra.mxu0 %v1463
    %2111 = vmatprep.subr.bf16.mxu0 %v1470
    %2112 = vmatpush1.bf16.msra.mxu0 %v1469
    %2113 = vmatprep.subr.bf16.mxu0 %v1476
    %2114 = vmatpush1.bf16.msra.mxu0 %v1475
    %2115 = vmatprep.subr.bf16.mxu0 %v1482
    %2116 = vmatpush1.bf16.msra.mxu0 %v1481
    %2117 = vmatprep.subr.bf16.mxu0 %v1488
    %2118 = vmatpush1.bf16.msra.mxu0 %v1487
    %2119 = vmatprep.subr.bf16.mxu0 %v1494
    %2120 = vmatpush1.bf16.msra.mxu0 %v1493
    %2121 = vmatprep.subr.bf16.mxu0 %v1500
    %2122 = vmatpush1.bf16.msra.mxu0 %v1499
    %2123 = vmatprep.subr.bf16.mxu0 %v1506
    %2124 = vmatpush1.bf16.msra.mxu0 %v1505
    %2125 = vmatprep.subr.bf16.mxu0 %v1512
    %2126 = vmatpush1.bf16.msra.mxu0 %v1511
    %2127 = vmatprep.subr.bf16.mxu0 %v1518
    %2128 = vmatpush1.bf16.msra.mxu0 %v1517
    %2129 = vmatprep.subr.bf16.mxu0 %v1524
    %2130 = vmatpush1.bf16.msra.mxu0 %v1523
    %2131 = vmatprep.subr.bf16.mxu0 %v1530
    %2132 = vmatpush1.bf16.msra.mxu0 %v1529
    %2133 = vmatprep.subr.bf16.mxu0 %v1536
    %2134 = vmatpush1.bf16.msra.mxu0 %v1535
    %2135 = vmatprep.subr.bf16.mxu0 %v1542
    %2136 = vmatpush1.bf16.msra.mxu0 %v1541
    %2137 = vmatprep.subr.bf16.mxu0 %v1548
    %2138 = vmatpush1.bf16.msra.mxu0 %v1547
    %2139 = vmatprep.mubr.bf16.mxu0 %v486
    %2140 = vmatmul.mubr.bf16.gmra.mrb[0].mxu0 %v485
    %v2141 = vpop.f32.mrb[0].mxu0
    %v2142 = vadd.f32 %v2099, %v2141
    %v2143 = vpop.f32.mrb[0].mxu0
    %v2144 = vadd.f32 %v2101, %v2143
    %v2145 = vpop.f32.mrb[0].mxu0
    %v2146 = vadd.f32 %v2103, %v2145
    %v2147 = vpop.f32.mrb[0].mxu0
    %v2148 = vadd.f32 %v2105, %v2147
    %2149 = vdwg.mxu0
    %2150 = vmatprep.subr.bf16.mxu0 %v1554
    %2151 = vmatpush1.bf16.msra.mxu0 %v1553
    %2152 = vmatprep.subr.bf16.mxu0 %v1560
    %2153 = vmatpush1.bf16.msra.mxu0 %v1559
    %2154 = vmatprep.subr.bf16.mxu0 %v1566
    %2155 = vmatpush1.bf16.msra.mxu0 %v1565
    %2156 = vmatprep.subr.bf16.mxu0 %v1572
    %2157 = vmatpush1.bf16.msra.mxu0 %v1571
    %2158 = vmatprep.subr.bf16.mxu0 %v1578
    %2159 = vmatpush1.bf16.msra.mxu0 %v1577
    %2160 = vmatprep.subr.bf16.mxu0 %v1584
    %2161 = vmatpush1.bf16.msra.mxu0 %v1583
    %2162 = vmatprep.subr.bf16.mxu0 %v1590
    %2163 = vmatpush1.bf16.msra.mxu0 %v1589
    %2164 = vmatprep.subr.bf16.mxu0 %v1596
    %2165 = vmatpush1.bf16.msra.mxu0 %v1595
    %2166 = vmatprep.subr.bf16.mxu0 %v1602
    %2167 = vmatpush1.bf16.msra.mxu0 %v1601
    %2168 = vmatprep.subr.bf16.mxu0 %v1608
    %2169 = vmatpush1.bf16.msra.mxu0 %v1607
    %2170 = vmatprep.subr.bf16.mxu0 %v1614
    %2171 = vmatpush1.bf16.msra.mxu0 %v1613
    %2172 = vmatprep.subr.bf16.mxu0 %v1620
    %2173 = vmatpush1.bf16.msra.mxu0 %v1619
    %2174 = vmatprep.subr.bf16.mxu0 %v1626
    %2175 = vmatpush1.bf16.msra.mxu0 %v1625
    %2176 = vmatprep.subr.bf16.mxu0 %v1632
    %2177 = vmatpush1.bf16.msra.mxu0 %v1631
    %2178 = vmatprep.subr.bf16.mxu0 %v1638
    %2179 = vmatpush1.bf16.msra.mxu0 %v1637
    %2180 = vmatprep.subr.bf16.mxu0 %v1644
    %2181 = vmatpush1.bf16.msra.mxu0 %v1643
    %2182 = vmatprep.mubr.bf16.mxu0 %v488
    %2183 = vmatmul.mubr.bf16.gmra.mrb[0].mxu0 %v487
    %v2184 = vpop.f32.mrb[0].mxu0
    %v2185 = vadd.f32 %v2142, %v2184
    %v2186 = vpop.f32.mrb[0].mxu0
    %v2187 = vadd.f32 %v2144, %v2186
    %v2188 = vpop.f32.mrb[0].mxu0
    %v2189 = vadd.f32 %v2146, %v2188
    %v2190 = vpop.f32.mrb[0].mxu0
    %v2191 = vadd.f32 %v2148, %v2190
    %2192 = vdwg.mxu0
    %2193 = vmatprep.subr.bf16.mxu0 %v1364
    %2194 = vmatpush1.bf16.msra.mxu0 %v1363
    %2195 = vmatprep.subr.bf16.mxu0 %v1370
    %2196 = vmatpush1.bf16.msra.mxu0 %v1369
    %2197 = vmatprep.subr.bf16.mxu0 %v1376
    %2198 = vmatpush1.bf16.msra.mxu0 %v1375
    %2199 = vmatprep.subr.bf16.mxu0 %v1382
    %2200 = vmatpush1.bf16.msra.mxu0 %v1381
    %2201 = vmatprep.subr.bf16.mxu0 %v1388
    %2202 = vmatpush1.bf16.msra.mxu0 %v1387
    %2203 = vmatprep.subr.bf16.mxu0 %v1394
    %2204 = vmatpush1.bf16.msra.mxu0 %v1393
    %2205 = vmatprep.subr.bf16.mxu0 %v1400
    %2206 = vmatpush1.bf16.msra.mxu0 %v1399
    %2207 = vmatprep.subr.bf16.mxu0 %v1406
    %2208 = vmatpush1.bf16.msra.mxu0 %v1405
    %2209 = vmatprep.subr.bf16.mxu0 %v1412
    %2210 = vmatpush1.bf16.msra.mxu0 %v1411
    %2211 = vmatprep.subr.bf16.mxu0 %v1418
    %2212 = vmatpush1.bf16.msra.mxu0 %v1417
    %2213 = vmatprep.subr.bf16.mxu0 %v1424
    %2214 = vmatpush1.bf16.msra.mxu0 %v1423
    %2215 = vmatprep.subr.bf16.mxu0 %v1430
    %2216 = vmatpush1.bf16.msra.mxu0 %v1429
    %2217 = vmatprep.subr.bf16.mxu0 %v1436
    %2218 = vmatpush1.bf16.msra.mxu0 %v1435
    %2219 = vmatprep.subr.bf16.mxu0 %v1442
    %2220 = vmatpush1.bf16.msra.mxu0 %v1441
    %2221 = vmatprep.subr.bf16.mxu0 %v1448
    %2222 = vmatpush1.bf16.msra.mxu0 %v1447
    %2223 = vmatprep.subr.bf16.mxu0 %v1454
    %2224 = vmatpush1.bf16.msra.mxu0 %v1453
    %2225 = vmatprep.mubr.bf16.mxu0 %v484
    %2226 = vmatmul.mubr.bf16.gmra.mrb[0].mxu0 %v483
    %v2227 = vpop.f32.mrb[0].mxu0
    %v2228 = vadd.f32 %v454, %v2227
    %v2229 = vpop.f32.mrb[0].mxu0
    %v2230 = vadd.f32 %v458, %v2229
    %v2231 = vpop.f32.mrb[0].mxu0
    %v2232 = vadd.f32 %v454, %v2231
    %v2233 = vpop.f32.mrb[0].mxu0
    %v2234 = vadd.f32 %v458, %v2233
    %2235 = vdwg.mxu0
    %2236 = vmatprep.subr.bf16.mxu0 %v1460
    %2237 = vmatpush1.bf16.msra.mxu0 %v1459
    %2238 = vmatprep.subr.bf16.mxu0 %v1466
    %2239 = vmatpush1.bf16.msra.mxu0 %v1465
    %2240 = vmatprep.subr.bf16.mxu0 %v1472
    %2241 = vmatpush1.bf16.msra.mxu0 %v1471
    %2242 = vmatprep.subr.bf16.mxu0 %v1478
    %2243 = vmatpush1.bf16.msra.mxu0 %v1477
    %2244 = vmatprep.subr.bf16.mxu0 %v1484
    %2245 = vmatpush1.bf16.msra.mxu0 %v1483
    %2246 = vmatprep.subr.bf16.mxu0 %v1490
    %2247 = vmatpush1.bf16.msra.mxu0 %v1489
    %2248 = vmatprep.subr.bf16.mxu0 %v1496
    %2249 = vmatpush1.bf16.msra.mxu0 %v1495
    %2250 = vmatprep.subr.bf16.mxu0 %v1502
    %2251 = vmatpush1.bf16.msra.mxu0 %v1501
    %2252 = vmatprep.subr.bf16.mxu0 %v1508
    %2253 = vmatpush1.bf16.msra.mxu0 %v1507
    %2254 = vmatprep.subr.bf16.mxu0 %v1514
    %2255 = vmatpush1.bf16.msra.mxu0 %v1513
    %2256 = vmatprep.subr.bf16.mxu0 %v1520
    %2257 = vmatpush1.bf16.msra.mxu0 %v1519
    %2258 = vmatprep.subr.bf16.mxu0 %v1526
    %2259 = vmatpush1.bf16.msra.mxu0 %v1525
    %2260 = vmatprep.subr.bf16.mxu0 %v1532
    %2261 = vmatpush1.bf16.msra.mxu0 %v1531
    %2262 = vmatprep.subr.bf16.mxu0 %v1538
    %2263 = vmatpush1.bf16.msra.mxu0 %v1537
    %2264 = vmatprep.subr.bf16.mxu0 %v1544
    %2265 = vmatpush1.bf16.msra.mxu0 %v1543
    %2266 = vmatprep.subr.bf16.mxu0 %v1550
    %2267 = vmatpush1.bf16.msra.mxu0 %v1549
    %2268 = vmatprep.mubr.bf16.mxu0 %v486
    %2269 = vmatmul.mubr.bf16.gmra.mrb[0].mxu0 %v485
    %v2270 = vpop.f32.mrb[0].mxu0
    %v2271 = vadd.f32 %v2228, %v2270
    %v2272 = vpop.f32.mrb[0].mxu0
    %v2273 = vadd.f32 %v2230, %v2272
    %v2274 = vpop.f32.mrb[0].mxu0
    %v2275 = vadd.f32 %v2232, %v2274
    %v2276 = vpop.f32.mrb[0].mxu0
    %v2277 = vadd.f32 %v2234, %v2276
    %2278 = vdwg.mxu0
    %2279 = vmatprep.subr.bf16.mxu0 %v1556
    %2280 = vmatpush1.bf16.msra.mxu0 %v1555
    %2281 = vmatprep.subr.bf16.mxu0 %v1562
    %2282 = vmatpush1.bf16.msra.mxu0 %v1561
    %2283 = vmatprep.subr.bf16.mxu0 %v1568
    %2284 = vmatpush1.bf16.msra.mxu0 %v1567
    %2285 = vmatprep.subr.bf16.mxu0 %v1574
    %2286 = vmatpush1.bf16.msra.mxu0 %v1573
    %2287 = vmatprep.subr.bf16.mxu0 %v1580
    %2288 = vmatpush1.bf16.msra.mxu0 %v1579
    %2289 = vmatprep.subr.bf16.mxu0 %v1586
    %2290 = vmatpush1.bf16.msra.mxu0 %v1585
    %2291 = vmatprep.subr.bf16.mxu0 %v1592
    %2292 = vmatpush1.bf16.msra.mxu0 %v1591
    %2293 = vmatprep.subr.bf16.mxu0 %v1598
    %2294 = vmatpush1.bf16.msra.mxu0 %v1597
    %2295 = vmatprep.subr.bf16.mxu0 %v1604
    %2296 = vmatpush1.bf16.msra.mxu0 %v1603
    %2297 = vmatprep.subr.bf16.mxu0 %v1610
    %2298 = vmatpush1.bf16.msra.mxu0 %v1609
    %2299 = vmatprep.subr.bf16.mxu0 %v1616
    %2300 = vmatpush1.bf16.msra.mxu0 %v1615
    %2301 = vmatprep.subr.bf16.mxu0 %v1622
    %2302 = vmatpush1.bf16.msra.mxu0 %v1621
    %2303 = vmatprep.subr.bf16.mxu0 %v1628
    %2304 = vmatpush1.bf16.msra.mxu0 %v1627
    %2305 = vmatprep.subr.bf16.mxu0 %v1634
    %2306 = vmatpush1.bf16.msra.mxu0 %v1633
    %2307 = vmatprep.subr.bf16.mxu0 %v1640
    %2308 = vmatpush1.bf16.msra.mxu0 %v1639
    %2309 = vmatprep.subr.bf16.mxu0 %v1646
    %2310 = vmatpush1.bf16.msra.mxu0 %v1645
    %2311 = vmatprep.mubr.bf16.mxu0 %v488
    %2312 = vmatmul.mubr.bf16.gmra.mrb[0].mxu0 %v487
    %v2313 = vpop.f32.mrb[0].mxu0
    %v2314 = vadd.f32 %v2271, %v2313
    %v2315 = vpop.f32.mrb[0].mxu0
    %v2316 = vadd.f32 %v2273, %v2315
    %v2317 = vpop.f32.mrb[0].mxu0
    %v2318 = vadd.f32 %v2275, %v2317
    %v2319 = vpop.f32.mrb[0].mxu0
    %v2320 = vadd.f32 %v2277, %v2319
    %2321 = vdwg.mxu0
    %v2322 = vtanh.pop %v2056
    %v2323 = vtanh.pop %v2058
    %v2324 = vtanh.pop %v2185
    %v2325 = vtanh.pop %v2187
    %v2326 = vtanh.pop %v2314
    %v2327 = vtanh.pop %v2316
    %v2328 = vtanh.pop %v2060
    %v2329 = vtanh.pop %v2062
    %v2330 = vtanh.pop %v2189
    %v2331 = vtanh.pop %v2191
    %v2332 = vtanh.pop %v2318
    %v2333 = vtanh.pop %v2320
    %v2334 = vpack.c.bf16 %v2328, %v2322
    %v2335 = vpack.c.bf16 %v2329, %v2323
    %v2336 = vpack.c.bf16 %v2330, %v2324
    %v2337 = vpack.c.bf16 %v2331, %v2325
    %v2338 = vpack.c.bf16 %v2332, %v2326
    %v2339 = vpack.c.bf16 %v2333, %v2327
    %v2340 = vld [vmem:[#allocation11] sm:$0xff]
    %v2341 = vld [vmem:[#allocation11 + $0x8] sm:$0xff]
    %v2342 = vld [vmem:[#allocation11 + $0x10] sm:$0xff]
    %v2343 = vld [vmem:[#allocation11 + $0x18] sm:$0xf]
    %v2344 = vld [vmem:[#allocation11 + $0x1c] sm:$0xff]
    %v2345 = vld [vmem:[#allocation11 + $0x24] sm:$0xff]
    %v2346 = vld [vmem:[#allocation11 + $0x2c] sm:$0xff]
    %v2347 = vld [vmem:[#allocation11 + $0x34] sm:$0xf]
    %v2348 = vld [vmem:[#allocation11 + $0x38] sm:$0xff]
    %v2349 = vld [vmem:[#allocation11 + $0x40] sm:$0xff]
    %v2350 = vld [vmem:[#allocation11 + $0x48] sm:$0xff]
    %v2351 = vld [vmem:[#allocation11 + $0x50] sm:$0xf]
    %v2352 = vld [vmem:[#allocation11 + $0x54] sm:$0xff]
    %v2353 = vld [vmem:[#allocation11 + $0x5c] sm:$0xff]
    %v2354 = vld [vmem:[#allocation11 + $0x64] sm:$0xff]
    %v2355 = vld [vmem:[#allocation11 + $0x6c] sm:$0xf]
    %v2356 = vld [vmem:[#allocation11 + $0x70] sm:$0xff]
    %v2357 = vld [vmem:[#allocation11 + $0x78] sm:$0xff]
    %v2358 = vld [vmem:[#allocation11 + $0x80] sm:$0xff]
    %v2359 = vld [vmem:[#allocation11 + $0x88] sm:$0xf]
    %v2360 = vld [vmem:[#allocation11 + $0x8c] sm:$0xff]
    %v2361 = vld [vmem:[#allocation11 + $0x94] sm:$0xff]
    %v2362 = vld [vmem:[#allocation11 + $0x9c] sm:$0xff]
    %v2363 = vld [vmem:[#allocation11 + $0xa4] sm:$0xf]
    %v2364 = vld [vmem:[#allocation11 + $0xa8] sm:$0xff]
    %v2365 = vld [vmem:[#allocation11 + $0xb0] sm:$0xff]
    %v2366 = vld [vmem:[#allocation11 + $0xb8] sm:$0xff]
    %v2367 = vld [vmem:[#allocation11 + $0xc0] sm:$0xf]
    %v2368 = vld [vmem:[#allocation11 + $0xc4] sm:$0xff]
    %v2369 = vld [vmem:[#allocation11 + $0xcc] sm:$0xff]
    %v2370 = vld [vmem:[#allocation11 + $0xd4] sm:$0xff]
    %v2371 = vld [vmem:[#allocation11 + $0xdc] sm:$0xf]
    %v2372 = vld [vmem:[#allocation11 + $0xe0] sm:$0xff]
    %v2373 = vld [vmem:[#allocation11 + $0xe8] sm:$0xff]
    %v2374 = vld [vmem:[#allocation11 + $0xf0] sm:$0xff]
    %v2375 = vld [vmem:[#allocation11 + $0xf8] sm:$0xf]
    %v2376 = vld [vmem:[#allocation11 + $0xfc] sm:$0xff]
    %v2377 = vld [vmem:[#allocation11 + $0x104] sm:$0xff]
    %v2378 = vld [vmem:[#allocation11 + $0x10c] sm:$0xff]
    %v2379 = vld [vmem:[#allocation11 + $0x114] sm:$0xf]
    %v2380 = vld [vmem:[#allocation11 + $0x118] sm:$0xff]
    %v2381 = vld [vmem:[#allocation11 + $0x120] sm:$0xff]
    %v2382 = vld [vmem:[#allocation11 + $0x128] sm:$0xff]
    %v2383 = vld [vmem:[#allocation11 + $0x130] sm:$0xf]
    %v2384 = vld [vmem:[#allocation11 + $0x134] sm:$0xff]
    %v2385 = vld [vmem:[#allocation11 + $0x13c] sm:$0xff]
    %v2386 = vld [vmem:[#allocation11 + $0x144] sm:$0xff]
    %v2387 = vld [vmem:[#allocation11 + $0x14c] sm:$0xf]
    %v2388 = vld [vmem:[#allocation11 + $0x150] sm:$0xff]
    %v2389 = vld [vmem:[#allocation11 + $0x158] sm:$0xff]
    %v2390 = vld [vmem:[#allocation11 + $0x160] sm:$0xff]
    %v2391 = vld [vmem:[#allocation11 + $0x168] sm:$0xf]
    %v2392 = vld [vmem:[#allocation11 + $0x16c] sm:$0xff]
    %v2393 = vld [vmem:[#allocation11 + $0x174] sm:$0xff]
    %v2394 = vld [vmem:[#allocation11 + $0x17c] sm:$0xff]
    %v2395 = vld [vmem:[#allocation11 + $0x184] sm:$0xf]
    %v2396 = vld [vmem:[#allocation11 + $0x188] sm:$0xff]
    %v2397 = vld [vmem:[#allocation11 + $0x190] sm:$0xff]
    %v2398 = vld [vmem:[#allocation11 + $0x198] sm:$0xff]
    %v2399 = vld [vmem:[#allocation11 + $0x1a0] sm:$0xf]
    %v2400 = vld [vmem:[#allocation11 + $0x1a4] sm:$0xff]
    %v2401 = vld [vmem:[#allocation11 + $0x1ac] sm:$0xff]
    %v2402 = vld [vmem:[#allocation11 + $0x1b4] sm:$0xff]
    %v2403 = vld [vmem:[#allocation11 + $0x1bc] sm:$0xf]
    %v2404 = vld [vmem:[#allocation11 + $0x1c0] sm:$0xff]
    %v2405 = vld [vmem:[#allocation11 + $0x1c8] sm:$0xff]
    %v2406 = vld [vmem:[#allocation11 + $0x1d0] sm:$0xff]
    %v2407 = vld [vmem:[#allocation11 + $0x1d8] sm:$0xf]
    %v2408 = vld [vmem:[#allocation11 + $0x1dc] sm:$0xff]
    %v2409 = vld [vmem:[#allocation11 + $0x1e4] sm:$0xff]
    %v2410 = vld [vmem:[#allocation11 + $0x1ec] sm:$0xff]
    %v2411 = vld [vmem:[#allocation11 + $0x1f4] sm:$0xf]
    %v2412 = vld [vmem:[#allocation11 + $0x1f8] sm:$0xff]
    %v2413 = vld [vmem:[#allocation11 + $0x200] sm:$0xff]
    %v2414 = vld [vmem:[#allocation11 + $0x208] sm:$0xff]
    %v2415 = vld [vmem:[#allocation11 + $0x210] sm:$0xf]
    %v2416 = vld [vmem:[#allocation11 + $0x214] sm:$0xff]
    %v2417 = vld [vmem:[#allocation11 + $0x21c] sm:$0xff]
    %v2418 = vld [vmem:[#allocation11 + $0x224] sm:$0xff]
    %v2419 = vld [vmem:[#allocation11 + $0x22c] sm:$0xf]
    %v2420 = vld [vmem:[#allocation11 + $0x230] sm:$0xff]
    %v2421 = vld [vmem:[#allocation11 + $0x238] sm:$0xff]
    %v2422 = vld [vmem:[#allocation11 + $0x240] sm:$0xff]
    %v2423 = vld [vmem:[#allocation11 + $0x248] sm:$0xf]
    %v2424 = vld [vmem:[#allocation11 + $0x24c] sm:$0xff]
    %v2425 = vld [vmem:[#allocation11 + $0x254] sm:$0xff]
    %v2426 = vld [vmem:[#allocation11 + $0x25c] sm:$0xff]
    %v2427 = vld [vmem:[#allocation11 + $0x264] sm:$0xf]
    %v2428 = vld [vmem:[#allocation11 + $0x268] sm:$0xff]
    %v2429 = vld [vmem:[#allocation11 + $0x270] sm:$0xff]
    %v2430 = vld [vmem:[#allocation11 + $0x278] sm:$0xff]
    %v2431 = vld [vmem:[#allocation11 + $0x280] sm:$0xf]
    %v2432 = vld [vmem:[#allocation11 + $0x284] sm:$0xff]
    %v2433 = vld [vmem:[#allocation11 + $0x28c] sm:$0xff]
    %v2434 = vld [vmem:[#allocation11 + $0x294] sm:$0xff]
    %v2435 = vld [vmem:[#allocation11 + $0x29c] sm:$0xf]
    %v2436 = vld [vmem:[#allocation11 + $0x2a0] sm:$0xff]
    %v2437 = vld [vmem:[#allocation11 + $0x2a8] sm:$0xff]
    %v2438 = vld [vmem:[#allocation11 + $0x2b0] sm:$0xff]
    %v2439 = vld [vmem:[#allocation11 + $0x2b8] sm:$0xf]
    %v2440 = vld [vmem:[#allocation11 + $0x2bc] sm:$0xff]
    %v2441 = vld [vmem:[#allocation11 + $0x2c4] sm:$0xff]
    %v2442 = vld [vmem:[#allocation11 + $0x2cc] sm:$0xff]
    %v2443 = vld [vmem:[#allocation11 + $0x2d4] sm:$0xf]
    %v2444 = vld [vmem:[#allocation11 + $0x2d8] sm:$0xff]
    %v2445 = vld [vmem:[#allocation11 + $0x2e0] sm:$0xff]
    %v2446 = vld [vmem:[#allocation11 + $0x2e8] sm:$0xff]
    %v2447 = vld [vmem:[#allocation11 + $0x2f0] sm:$0xf]
    %v2448 = vld [vmem:[#allocation11 + $0x2f4] sm:$0xff]
    %v2449 = vld [vmem:[#allocation11 + $0x2fc] sm:$0xff]
    %v2450 = vld [vmem:[#allocation11 + $0x304] sm:$0xff]
    %v2451 = vld [vmem:[#allocation11 + $0x30c] sm:$0xf]
    %v2452 = vld [vmem:[#allocation11 + $0x310] sm:$0xff]
    %v2453 = vld [vmem:[#allocation11 + $0x318] sm:$0xff]
    %v2454 = vld [vmem:[#allocation11 + $0x320] sm:$0xff]
    %v2455 = vld [vmem:[#allocation11 + $0x328] sm:$0xf]
    %v2456 = vld [vmem:[#allocation11 + $0x32c] sm:$0xff]
    %v2457 = vld [vmem:[#allocation11 + $0x334] sm:$0xff]
    %v2458 = vld [vmem:[#allocation11 + $0x33c] sm:$0xff]
    %v2459 = vld [vmem:[#allocation11 + $0x344] sm:$0xf]
    %v2460 = vld [vmem:[#allocation11 + $0x348] sm:$0xff]
    %v2461 = vld [vmem:[#allocation11 + $0x350] sm:$0xff]
    %v2462 = vld [vmem:[#allocation11 + $0x358] sm:$0xff]
    %v2463 = vld [vmem:[#allocation11 + $0x360] sm:$0xf]
    %v2464 = vld [vmem:[#allocation11 + $0x364] sm:$0xff]
    %v2465 = vld [vmem:[#allocation11 + $0x36c] sm:$0xff]
    %v2466 = vld [vmem:[#allocation11 + $0x374] sm:$0xff]
    %v2467 = vld [vmem:[#allocation11 + $0x37c] sm:$0xf]
    %v2468 = vld [vmem:[#allocation11 + $0x380] sm:$0xff]
    %v2469 = vld [vmem:[#allocation11 + $0x388] sm:$0xff]
    %v2470 = vld [vmem:[#allocation11 + $0x390] sm:$0xff]
    %v2471 = vld [vmem:[#allocation11 + $0x398] sm:$0xf]
    %v2472 = vld [vmem:[#allocation11 + $0x39c] sm:$0xff]
    %v2473 = vld [vmem:[#allocation11 + $0x3a4] sm:$0xff]
    %v2474 = vld [vmem:[#allocation11 + $0x3ac] sm:$0xff]
    %v2475 = vld [vmem:[#allocation11 + $0x3b4] sm:$0xf]
    %v2476 = vld [vmem:[#allocation11 + $0x3b8] sm:$0xff]
    %v2477 = vld [vmem:[#allocation11 + $0x3c0] sm:$0xff]
    %v2478 = vld [vmem:[#allocation11 + $0x3c8] sm:$0xff]
    %v2479 = vld [vmem:[#allocation11 + $0x3d0] sm:$0xf]
    %v2480 = vld [vmem:[#allocation11 + $0x3d4] sm:$0xff]
    %v2481 = vld [vmem:[#allocation11 + $0x3dc] sm:$0xff]
    %v2482 = vld [vmem:[#allocation11 + $0x3e4] sm:$0xff]
    %v2483 = vld [vmem:[#allocation11 + $0x3ec] sm:$0xf]
    %v2484 = vld [vmem:[#allocation11 + $0x3f0] sm:$0xff]
    %v2485 = vld [vmem:[#allocation11 + $0x3f8] sm:$0xff]
    %v2486 = vld [vmem:[#allocation11 + $0x400] sm:$0xff]
    %v2487 = vld [vmem:[#allocation11 + $0x408] sm:$0xf]
    %v2488 = vld [vmem:[#allocation11 + $0x40c] sm:$0xff]
    %v2489 = vld [vmem:[#allocation11 + $0x414] sm:$0xff]
    %v2490 = vld [vmem:[#allocation11 + $0x41c] sm:$0xff]
    %v2491 = vld [vmem:[#allocation11 + $0x424] sm:$0xf]
    %v2492 = vld [vmem:[#allocation11 + $0x428] sm:$0xff]
    %v2493 = vld [vmem:[#allocation11 + $0x430] sm:$0xff]
    %v2494 = vld [vmem:[#allocation11 + $0x438] sm:$0xff]
    %v2495 = vld [vmem:[#allocation11 + $0x440] sm:$0xf]
    %v2496 = vld [vmem:[#allocation11 + $0x444] sm:$0xff]
    %v2497 = vld [vmem:[#allocation11 + $0x44c] sm:$0xff]
    %v2498 = vld [vmem:[#allocation11 + $0x454] sm:$0xff]
    %v2499 = vld [vmem:[#allocation11 + $0x45c] sm:$0xf]
    %v2500 = vld [vmem:[#allocation11 + $0x460] sm:$0xff]
    %v2501 = vld [vmem:[#allocation11 + $0x468] sm:$0xff]
    %v2502 = vld [vmem:[#allocation11 + $0x470] sm:$0xff]
    %v2503 = vld [vmem:[#allocation11 + $0x478] sm:$0xf]
    %v2504 = vld [vmem:[#allocation11 + $0x47c] sm:$0xff]
    %v2505 = vld [vmem:[#allocation11 + $0x484] sm:$0xff]
    %v2506 = vld [vmem:[#allocation11 + $0x48c] sm:$0xff]
    %v2507 = vld [vmem:[#allocation11 + $0x494] sm:$0xf]
    %v2508 = vld [vmem:[#allocation11 + $0x498] sm:$0xff]
    %v2509 = vld [vmem:[#allocation11 + $0x4a0] sm:$0xff]
    %v2510 = vld [vmem:[#allocation11 + $0x4a8] sm:$0xff]
    %v2511 = vld [vmem:[#allocation11 + $0x4b0] sm:$0xf]
    %v2512 = vld [vmem:[#allocation11 + $0x4b4] sm:$0xff]
    %v2513 = vld [vmem:[#allocation11 + $0x4bc] sm:$0xff]
    %v2514 = vld [vmem:[#allocation11 + $0x4c4] sm:$0xff]
    %v2515 = vld [vmem:[#allocation11 + $0x4cc] sm:$0xf]
    %v2516 = vld [vmem:[#allocation11 + $0x4d0] sm:$0xff]
    %v2517 = vld [vmem:[#allocation11 + $0x4d8] sm:$0xff]
    %v2518 = vld [vmem:[#allocation11 + $0x4e0] sm:$0xff]
    %v2519 = vld [vmem:[#allocation11 + $0x4e8] sm:$0xf]
    %v2520 = vld [vmem:[#allocation11 + $0x4ec] sm:$0xff]
    %v2521 = vld [vmem:[#allocation11 + $0x4f4] sm:$0xff]
    %v2522 = vld [vmem:[#allocation11 + $0x4fc] sm:$0xff]
    %v2523 = vld [vmem:[#allocation11 + $0x504] sm:$0xf]
    %v2524 = vld [vmem:[#allocation11 + $0x508] sm:$0xff]
    %v2525 = vld [vmem:[#allocation11 + $0x510] sm:$0xff]
    %v2526 = vld [vmem:[#allocation11 + $0x518] sm:$0xff]
    %v2527 = vld [vmem:[#allocation11 + $0x520] sm:$0xf]
    %v2528 = vld [vmem:[#allocation11 + $0x524] sm:$0xff]
    %v2529 = vld [vmem:[#allocation11 + $0x52c] sm:$0xff]
    %v2530 = vld [vmem:[#allocation11 + $0x534] sm:$0xff]
    %v2531 = vld [vmem:[#allocation11 + $0x53c] sm:$0xf]
    %v2532 = vld [vmem:[#allocation11 + $0x540] sm:$0xff]
    %v2533 = vld [vmem:[#allocation11 + $0x548] sm:$0xff]
    %v2534 = vld [vmem:[#allocation11 + $0x550] sm:$0xff]
    %v2535 = vld [vmem:[#allocation11 + $0x558] sm:$0xf]
    %v2536 = vld [vmem:[#allocation11 + $0x55c] sm:$0xff]
    %v2537 = vld [vmem:[#allocation11 + $0x564] sm:$0xff]
    %v2538 = vld [vmem:[#allocation11 + $0x56c] sm:$0xff]
    %v2539 = vld [vmem:[#allocation11 + $0x574] sm:$0xf]
    %v2540 = vld [vmem:[#allocation11 + $0x578] sm:$0xff]
    %v2541 = vld [vmem:[#allocation11 + $0x580] sm:$0xff]
    %v2542 = vld [vmem:[#allocation11 + $0x588] sm:$0xff]
    %v2543 = vld [vmem:[#allocation11 + $0x590] sm:$0xf]
    %v2544 = vld [vmem:[#allocation11 + $0x594] sm:$0xff]
    %v2545 = vld [vmem:[#allocation11 + $0x59c] sm:$0xff]
    %v2546 = vld [vmem:[#allocation11 + $0x5a4] sm:$0xff]
    %v2547 = vld [vmem:[#allocation11 + $0x5ac] sm:$0xf]
    %v2548 = vld [vmem:[#allocation11 + $0x5b0] sm:$0xff]
    %v2549 = vld [vmem:[#allocation11 + $0x5b8] sm:$0xff]
    %v2550 = vld [vmem:[#allocation11 + $0x5c0] sm:$0xff]
    %v2551 = vld [vmem:[#allocation11 + $0x5c8] sm:$0xf]
    %v2552 = vld [vmem:[#allocation11 + $0x5cc] sm:$0xff]
    %v2553 = vld [vmem:[#allocation11 + $0x5d4] sm:$0xff]
    %v2554 = vld [vmem:[#allocation11 + $0x5dc] sm:$0xff]
    %v2555 = vld [vmem:[#allocation11 + $0x5e4] sm:$0xf]
    %v2556 = vld [vmem:[#allocation11 + $0x5e8] sm:$0xff]
    %v2557 = vld [vmem:[#allocation11 + $0x5f0] sm:$0xff]
    %v2558 = vld [vmem:[#allocation11 + $0x5f8] sm:$0xff]
    %v2559 = vld [vmem:[#allocation11 + $0x600] sm:$0xf]
    %v2560 = vld [vmem:[#allocation11 + $0x604] sm:$0xff]
    %v2561 = vld [vmem:[#allocation11 + $0x60c] sm:$0xff]
    %v2562 = vld [vmem:[#allocation11 + $0x614] sm:$0xff]
    %v2563 = vld [vmem:[#allocation11 + $0x61c] sm:$0xf]
    %v2564 = vld [vmem:[#allocation11 + $0x620] sm:$0xff]
    %v2565 = vld [vmem:[#allocation11 + $0x628] sm:$0xff]
    %v2566 = vld [vmem:[#allocation11 + $0x630] sm:$0xff]
    %v2567 = vld [vmem:[#allocation11 + $0x638] sm:$0xf]
    %v2568 = vld [vmem:[#allocation11 + $0x63c] sm:$0xff]
    %v2569 = vld [vmem:[#allocation11 + $0x644] sm:$0xff]
    %v2570 = vld [vmem:[#allocation11 + $0x64c] sm:$0xff]
    %v2571 = vld [vmem:[#allocation11 + $0x654] sm:$0xf]
    %v2572 = vld [vmem:[#allocation11 + $0x658] sm:$0xff]
    %v2573 = vld [vmem:[#allocation11 + $0x660] sm:$0xff]
    %v2574 = vld [vmem:[#allocation11 + $0x668] sm:$0xff]
    %v2575 = vld [vmem:[#allocation11 + $0x670] sm:$0xf]
    %v2576 = vld [vmem:[#allocation11 + $0x674] sm:$0xff]
    %v2577 = vld [vmem:[#allocation11 + $0x67c] sm:$0xff]
    %v2578 = vld [vmem:[#allocation11 + $0x684] sm:$0xff]
    %v2579 = vld [vmem:[#allocation11 + $0x68c] sm:$0xf]
    %v2580 = vld [vmem:[#allocation11 + $0x690] sm:$0xff]
    %v2581 = vld [vmem:[#allocation11 + $0x698] sm:$0xff]
    %v2582 = vld [vmem:[#allocation11 + $0x6a0] sm:$0xff]
    %v2583 = vld [vmem:[#allocation11 + $0x6a8] sm:$0xf]
    %v2584 = vld [vmem:[#allocation11 + $0x6ac] sm:$0xff]
    %v2585 = vld [vmem:[#allocation11 + $0x6b4] sm:$0xff]
    %v2586 = vld [vmem:[#allocation11 + $0x6bc] sm:$0xff]
    %v2587 = vld [vmem:[#allocation11 + $0x6c4] sm:$0xf]
    %v2588 = vld [vmem:[#allocation11 + $0x6c8] sm:$0xff]
    %v2589 = vld [vmem:[#allocation11 + $0x6d0] sm:$0xff]
    %v2590 = vld [vmem:[#allocation11 + $0x6d8] sm:$0xff]
    %v2591 = vld [vmem:[#allocation11 + $0x6e0] sm:$0xf]
    %v2592 = vld [vmem:[#allocation11 + $0x6e4] sm:$0xff]
    %v2593 = vld [vmem:[#allocation11 + $0x6ec] sm:$0xff]
    %v2594 = vld [vmem:[#allocation11 + $0x6f4] sm:$0xff]
    %v2595 = vld [vmem:[#allocation11 + $0x6fc] sm:$0xf]
    %v2596 = vld [vmem:[#allocation11 + $0x700] sm:$0xff]
    %v2597 = vld [vmem:[#allocation11 + $0x708] sm:$0xff]
    %v2598 = vld [vmem:[#allocation11 + $0x710] sm:$0xff]
    %v2599 = vld [vmem:[#allocation11 + $0x718] sm:$0xf]
    %v2600 = vld [vmem:[#allocation11 + $0x71c] sm:$0xff]
    %v2601 = vld [vmem:[#allocation11 + $0x724] sm:$0xff]
    %v2602 = vld [vmem:[#allocation11 + $0x72c] sm:$0xff]
    %v2603 = vld [vmem:[#allocation11 + $0x734] sm:$0xf]
    %v2604 = vld [vmem:[#allocation11 + $0x738] sm:$0xff]
    %v2605 = vld [vmem:[#allocation11 + $0x740] sm:$0xff]
    %v2606 = vld [vmem:[#allocation11 + $0x748] sm:$0xff]
    %v2607 = vld [vmem:[#allocation11 + $0x750] sm:$0xf]
    %v2608 = vld [vmem:[#allocation11 + $0x754] sm:$0xff]
    %v2609 = vld [vmem:[#allocation11 + $0x75c] sm:$0xff]
    %v2610 = vld [vmem:[#allocation11 + $0x764] sm:$0xff]
    %v2611 = vld [vmem:[#allocation11 + $0x76c] sm:$0xf]
    %v2612 = vld [vmem:[#allocation11 + $0x770] sm:$0xff]
    %v2613 = vld [vmem:[#allocation11 + $0x778] sm:$0xff]
    %v2614 = vld [vmem:[#allocation11 + $0x780] sm:$0xff]
    %v2615 = vld [vmem:[#allocation11 + $0x788] sm:$0xf]
    %v2616 = vld [vmem:[#allocation11 + $0x78c] sm:$0xff]
    %v2617 = vld [vmem:[#allocation11 + $0x794] sm:$0xff]
    %v2618 = vld [vmem:[#allocation11 + $0x79c] sm:$0xff]
    %v2619 = vld [vmem:[#allocation11 + $0x7a4] sm:$0xf]
    %v2620 = vld [vmem:[#allocation11 + $0x7a8] sm:$0xff]
    %v2621 = vld [vmem:[#allocation11 + $0x7b0] sm:$0xff]
    %v2622 = vld [vmem:[#allocation11 + $0x7b8] sm:$0xff]
    %v2623 = vld [vmem:[#allocation11 + $0x7c0] sm:$0xf]
    %v2624 = vld [vmem:[#allocation11 + $0x7c4] sm:$0xff]
    %v2625 = vld [vmem:[#allocation11 + $0x7cc] sm:$0xff]
    %v2626 = vld [vmem:[#allocation11 + $0x7d4] sm:$0xff]
    %v2627 = vld [vmem:[#allocation11 + $0x7dc] sm:$0xf]
    %v2628 = vld [vmem:[#allocation11 + $0x7e0] sm:$0xff]
    %v2629 = vld [vmem:[#allocation11 + $0x7e8] sm:$0xff]
    %v2630 = vld [vmem:[#allocation11 + $0x7f0] sm:$0xff]
    %v2631 = vld [vmem:[#allocation11 + $0x7f8] sm:$0xf]
    %v2632 = vld [vmem:[#allocation11 + $0x7fc] sm:$0xff]
    %v2633 = vld [vmem:[#allocation11 + $0x804] sm:$0xff]
    %v2634 = vld [vmem:[#allocation11 + $0x80c] sm:$0xff]
    %v2635 = vld [vmem:[#allocation11 + $0x814] sm:$0xf]
    %v2636 = vld [vmem:[#allocation11 + $0x818] sm:$0xff]
    %v2637 = vld [vmem:[#allocation11 + $0x820] sm:$0xff]
    %v2638 = vld [vmem:[#allocation11 + $0x828] sm:$0xff]
    %v2639 = vld [vmem:[#allocation11 + $0x830] sm:$0xf]
    %v2640 = vld [vmem:[#allocation11 + $0x834] sm:$0xff]
    %v2641 = vld [vmem:[#allocation11 + $0x83c] sm:$0xff]
    %v2642 = vld [vmem:[#allocation11 + $0x844] sm:$0xff]
    %v2643 = vld [vmem:[#allocation11 + $0x84c] sm:$0xf]
    %v2644 = vld [vmem:[#allocation11 + $0x850] sm:$0xff]
    %v2645 = vld [vmem:[#allocation11 + $0x858] sm:$0xff]
    %v2646 = vld [vmem:[#allocation11 + $0x860] sm:$0xff]
    %v2647 = vld [vmem:[#allocation11 + $0x868] sm:$0xf]
    %v2648 = vld [vmem:[#allocation11 + $0x86c] sm:$0xff]
    %v2649 = vld [vmem:[#allocation11 + $0x874] sm:$0xff]
    %v2650 = vld [vmem:[#allocation11 + $0x87c] sm:$0xff]
    %v2651 = vld [vmem:[#allocation11 + $0x884] sm:$0xf]
    %v2652 = vld [vmem:[#allocation11 + $0x888] sm:$0xff]
    %v2653 = vld [vmem:[#allocation11 + $0x890] sm:$0xff]
    %v2654 = vld [vmem:[#allocation11 + $0x898] sm:$0xff]
    %v2655 = vld [vmem:[#allocation11 + $0x8a0] sm:$0xf]
    %v2656 = vld [vmem:[#allocation11 + $0x8a4] sm:$0xff]
    %v2657 = vld [vmem:[#allocation11 + $0x8ac] sm:$0xff]
    %v2658 = vld [vmem:[#allocation11 + $0x8b4] sm:$0xff]
    %v2659 = vld [vmem:[#allocation11 + $0x8bc] sm:$0xf]
    %v2660 = vld [vmem:[#allocation11 + $0x8c0] sm:$0xff]
    %v2661 = vld [vmem:[#allocation11 + $0x8c8] sm:$0xff]
    %v2662 = vld [vmem:[#allocation11 + $0x8d0] sm:$0xff]
    %v2663 = vld [vmem:[#allocation11 + $0x8d8] sm:$0xf]
    %v2664 = vld [vmem:[#allocation11 + $0x8dc] sm:$0xff]
    %v2665 = vld [vmem:[#allocation11 + $0x8e4] sm:$0xff]
    %v2666 = vld [vmem:[#allocation11 + $0x8ec] sm:$0xff]
    %v2667 = vld [vmem:[#allocation11 + $0x8f4] sm:$0xf]
    %v2668 = vld [vmem:[#allocation11 + $0x8f8] sm:$0xff]
    %v2669 = vld [vmem:[#allocation11 + $0x900] sm:$0xff]
    %v2670 = vld [vmem:[#allocation11 + $0x908] sm:$0xff]
    %v2671 = vld [vmem:[#allocation11 + $0x910] sm:$0xf]
    %v2672 = vld [vmem:[#allocation11 + $0x914] sm:$0xff]
    %v2673 = vld [vmem:[#allocation11 + $0x91c] sm:$0xff]
    %v2674 = vld [vmem:[#allocation11 + $0x924] sm:$0xff]
    %v2675 = vld [vmem:[#allocation11 + $0x92c] sm:$0xf]
    %v2676 = vld [vmem:[#allocation11 + $0x930] sm:$0xff]
    %v2677 = vld [vmem:[#allocation11 + $0x938] sm:$0xff]
    %v2678 = vld [vmem:[#allocation11 + $0x940] sm:$0xff]
    %v2679 = vld [vmem:[#allocation11 + $0x948] sm:$0xf]
    %v2680 = vld [vmem:[#allocation11 + $0x94c] sm:$0xff]
    %v2681 = vld [vmem:[#allocation11 + $0x954] sm:$0xff]
    %v2682 = vld [vmem:[#allocation11 + $0x95c] sm:$0xff]
    %v2683 = vld [vmem:[#allocation11 + $0x964] sm:$0xf]
    %v2684 = vld [vmem:[#allocation11 + $0x968] sm:$0xff]
    %v2685 = vld [vmem:[#allocation11 + $0x970] sm:$0xff]
    %v2686 = vld [vmem:[#allocation11 + $0x978] sm:$0xff]
    %v2687 = vld [vmem:[#allocation11 + $0x980] sm:$0xf]
    %v2688 = vld [vmem:[#allocation11 + $0x984] sm:$0xff]
    %v2689 = vld [vmem:[#allocation11 + $0x98c] sm:$0xff]
    %v2690 = vld [vmem:[#allocation11 + $0x994] sm:$0xff]
    %v2691 = vld [vmem:[#allocation11 + $0x99c] sm:$0xf]
    %v2692 = vld [vmem:[#allocation11 + $0x9a0] sm:$0xff]
    %v2693 = vld [vmem:[#allocation11 + $0x9a8] sm:$0xff]
    %v2694 = vld [vmem:[#allocation11 + $0x9b0] sm:$0xff]
    %v2695 = vld [vmem:[#allocation11 + $0x9b8] sm:$0xf]
    %v2696 = vld [vmem:[#allocation11 + $0x9bc] sm:$0xff]
    %v2697 = vld [vmem:[#allocation11 + $0x9c4] sm:$0xff]
    %v2698 = vld [vmem:[#allocation11 + $0x9cc] sm:$0xff]
    %v2699 = vld [vmem:[#allocation11 + $0x9d4] sm:$0xf]
    %v2700 = vld [vmem:[#allocation11 + $0x9d8] sm:$0xff]
    %v2701 = vld [vmem:[#allocation11 + $0x9e0] sm:$0xff]
    %v2702 = vld [vmem:[#allocation11 + $0x9e8] sm:$0xff]
    %v2703 = vld [vmem:[#allocation11 + $0x9f0] sm:$0xf]
    %v2704 = vld [vmem:[#allocation11 + $0x9f4] sm:$0xff]
    %v2705 = vld [vmem:[#allocation11 + $0x9fc] sm:$0xff]
    %v2706 = vld [vmem:[#allocation11 + $0xa04] sm:$0xff]
    %v2707 = vld [vmem:[#allocation11 + $0xa0c] sm:$0xf]
    %v2708 = vld [vmem:[#allocation11 + $0xa10] sm:$0xff]
    %v2709 = vld [vmem:[#allocation11 + $0xa18] sm:$0xff]
    %v2710 = vld [vmem:[#allocation11 + $0xa20] sm:$0xff]
    %v2711 = vld [vmem:[#allocation11 + $0xa28] sm:$0xf]
    %v2712 = vld [vmem:[#allocation11 + $0xa2c] sm:$0xff]
    %v2713 = vld [vmem:[#allocation11 + $0xa34] sm:$0xff]
    %v2714 = vld [vmem:[#allocation11 + $0xa3c] sm:$0xff]
    %v2715 = vld [vmem:[#allocation11 + $0xa44] sm:$0xf]
    %v2716 = vld [vmem:[#allocation11 + $0xa48] sm:$0xff]
    %v2717 = vld [vmem:[#allocation11 + $0xa50] sm:$0xff]
    %v2718 = vld [vmem:[#allocation11 + $0xa58] sm:$0xff]
    %v2719 = vld [vmem:[#allocation11 + $0xa60] sm:$0xf]
    %v2720 = vld [vmem:[#allocation11 + $0xa64] sm:$0xff]
    %v2721 = vld [vmem:[#allocation11 + $0xa6c] sm:$0xff]
    %v2722 = vld [vmem:[#allocation11 + $0xa74] sm:$0xff]
    %v2723 = vld [vmem:[#allocation11 + $0xa7c] sm:$0xf]
    %v2724 = vld [vmem:[#allocation6] sm:$0xf]
    %v2725 = vld [vmem:[#allocation6 + $0x4] sm:$0xf]
    %v2726 = vld [vmem:[#allocation12] sm:$0xff]
    %v2727 = vld [vmem:[#allocation12 + $0x8] sm:$0xff]
    %v2728 = vld [vmem:[#allocation12 + $0x10] sm:$0xff]
    %v2729 = vld [vmem:[#allocation12 + $0x18] sm:$0xf]
    %v2730 = vld [vmem:[#allocation12 + $0x1c] sm:$0xff]
    %v2731 = vld [vmem:[#allocation12 + $0x24] sm:$0xff]
    %v2732 = vld [vmem:[#allocation12 + $0x2c] sm:$0xff]
    %v2733 = vld [vmem:[#allocation12 + $0x34] sm:$0xf]
    %v2734 = vld [vmem:[#allocation12 + $0x38] sm:$0xff]
    %v2735 = vld [vmem:[#allocation12 + $0x40] sm:$0xff]
    %v2736 = vld [vmem:[#allocation12 + $0x48] sm:$0xff]
    %v2737 = vld [vmem:[#allocation12 + $0x50] sm:$0xf]
    %v2738 = vld [vmem:[#allocation12 + $0x54] sm:$0xff]
    %v2739 = vld [vmem:[#allocation12 + $0x5c] sm:$0xff]
    %v2740 = vld [vmem:[#allocation12 + $0x64] sm:$0xff]
    %v2741 = vld [vmem:[#allocation12 + $0x6c] sm:$0xf]
    %v2742 = vld [vmem:[#allocation12 + $0x70] sm:$0xff]
    %v2743 = vld [vmem:[#allocation12 + $0x78] sm:$0xff]
    %v2744 = vld [vmem:[#allocation12 + $0x80] sm:$0xff]
    %v2745 = vld [vmem:[#allocation12 + $0x88] sm:$0xf]
    %v2746 = vld [vmem:[#allocation12 + $0x8c] sm:$0xff]
    %v2747 = vld [vmem:[#allocation12 + $0x94] sm:$0xff]
    %v2748 = vld [vmem:[#allocation12 + $0x9c] sm:$0xff]
    %v2749 = vld [vmem:[#allocation12 + $0xa4] sm:$0xf]
    %v2750 = vld [vmem:[#allocation12 + $0xa8] sm:$0xff]
    %v2751 = vld [vmem:[#allocation12 + $0xb0] sm:$0xff]
    %v2752 = vld [vmem:[#allocation12 + $0xb8] sm:$0xff]
    %v2753 = vld [vmem:[#allocation12 + $0xc0] sm:$0xf]
    %v2754 = vld [vmem:[#allocation12 + $0xc4] sm:$0xff]
    %v2755 = vld [vmem:[#allocation12 + $0xcc] sm:$0xff]
    %v2756 = vld [vmem:[#allocation12 + $0xd4] sm:$0xff]
    %v2757 = vld [vmem:[#allocation12 + $0xdc] sm:$0xf]
    %v2758 = vld [vmem:[#allocation12 + $0xe0] sm:$0xff]
    %v2759 = vld [vmem:[#allocation12 + $0xe8] sm:$0xff]
    %v2760 = vld [vmem:[#allocation12 + $0xf0] sm:$0xff]
    %v2761 = vld [vmem:[#allocation12 + $0xf8] sm:$0xf]
    %v2762 = vld [vmem:[#allocation12 + $0xfc] sm:$0xff]
    %v2763 = vld [vmem:[#allocation12 + $0x104] sm:$0xff]
    %v2764 = vld [vmem:[#allocation12 + $0x10c] sm:$0xff]
    %v2765 = vld [vmem:[#allocation12 + $0x114] sm:$0xf]
    %v2766 = vld [vmem:[#allocation12 + $0x118] sm:$0xff]
    %v2767 = vld [vmem:[#allocation12 + $0x120] sm:$0xff]
    %v2768 = vld [vmem:[#allocation12 + $0x128] sm:$0xff]
    %v2769 = vld [vmem:[#allocation12 + $0x130] sm:$0xf]
    %v2770 = vld [vmem:[#allocation12 + $0x134] sm:$0xff]
    %v2771 = vld [vmem:[#allocation12 + $0x13c] sm:$0xff]
    %v2772 = vld [vmem:[#allocation12 + $0x144] sm:$0xff]
    %v2773 = vld [vmem:[#allocation12 + $0x14c] sm:$0xf]
    %v2774 = vld [vmem:[#allocation12 + $0x150] sm:$0xff]
    %v2775 = vld [vmem:[#allocation12 + $0x158] sm:$0xff]
    %v2776 = vld [vmem:[#allocation12 + $0x160] sm:$0xff]
    %v2777 = vld [vmem:[#allocation12 + $0x168] sm:$0xf]
    %v2778 = vld [vmem:[#allocation12 + $0x16c] sm:$0xff]
    %v2779 = vld [vmem:[#allocation12 + $0x174] sm:$0xff]
    %v2780 = vld [vmem:[#allocation12 + $0x17c] sm:$0xff]
    %v2781 = vld [vmem:[#allocation12 + $0x184] sm:$0xf]
    %v2782 = vld [vmem:[#allocation12 + $0x188] sm:$0xff]
    %v2783 = vld [vmem:[#allocation12 + $0x190] sm:$0xff]
    %v2784 = vld [vmem:[#allocation12 + $0x198] sm:$0xff]
    %v2785 = vld [vmem:[#allocation12 + $0x1a0] sm:$0xf]
    %v2786 = vld [vmem:[#allocation12 + $0x1a4] sm:$0xff]
    %v2787 = vld [vmem:[#allocation12 + $0x1ac] sm:$0xff]
    %v2788 = vld [vmem:[#allocation12 + $0x1b4] sm:$0xff]
    %v2789 = vld [vmem:[#allocation12 + $0x1bc] sm:$0xf]
    %v2792 = vunpack.c.l.b16 %v2724
    %v2793 = vunpack.c.l.b16 %v2725
    %v2794 = vpack.c.b16 %v2793, %v2792
    %v2860 = vunpack.c.l.b16 %v2726
    %v2861 = vunpack.c.h.b16 %v2726
    %v2862 = vunpack.c.l.b16 %v2727
    %v2863 = vunpack.c.h.b16 %v2727
    %v2864 = vunpack.c.l.b16 %v2728
    %v2865 = vunpack.c.h.b16 %v2728
    %v2866 = vunpack.c.l.b16 %v2729
    %v2867 = vunpack.c.l.b16 %v2730
    %v2868 = vunpack.c.h.b16 %v2730
    %v2869 = vunpack.c.l.b16 %v2731
    %v2870 = vunpack.c.h.b16 %v2731
    %v2871 = vunpack.c.l.b16 %v2732
    %v2872 = vunpack.c.h.b16 %v2732
    %v2873 = vunpack.c.l.b16 %v2733
    %v2874 = vunpack.c.l.b16 %v2734
    %v2875 = vunpack.c.h.b16 %v2734
    %v2876 = vunpack.c.l.b16 %v2735
    %v2877 = vunpack.c.h.b16 %v2735
    %v2878 = vunpack.c.l.b16 %v2736
    %v2879 = vunpack.c.h.b16 %v2736
    %v2880 = vunpack.c.l.b16 %v2737
    %v2881 = vunpack.c.l.b16 %v2738
    %v2882 = vunpack.c.h.b16 %v2738
    %v2883 = vunpack.c.l.b16 %v2739
    %v2884 = vunpack.c.h.b16 %v2739
    %v2885 = vunpack.c.l.b16 %v2740
    %v2886 = vunpack.c.h.b16 %v2740
    %v2887 = vunpack.c.l.b16 %v2741
    %v2888 = vunpack.c.l.b16 %v2742
    %v2889 = vunpack.c.h.b16 %v2742
    %v2890 = vunpack.c.l.b16 %v2743
    %v2891 = vunpack.c.h.b16 %v2743
    %v2892 = vunpack.c.l.b16 %v2744
    %v2893 = vunpack.c.h.b16 %v2744
    %v2894 = vunpack.c.l.b16 %v2745
    %v2895 = vunpack.c.l.b16 %v2746
    %v2896 = vunpack.c.h.b16 %v2746
    %v2897 = vunpack.c.l.b16 %v2747
    %v2898 = vunpack.c.h.b16 %v2747
    %v2899 = vunpack.c.l.b16 %v2748
    %v2900 = vunpack.c.h.b16 %v2748
    %v2901 = vunpack.c.l.b16 %v2749
    %v2902 = vunpack.c.l.b16 %v2750
    %v2903 = vunpack.c.h.b16 %v2750
    %v2904 = vunpack.c.l.b16 %v2751
    %v2905 = vunpack.c.h.b16 %v2751
    %v2906 = vunpack.c.l.b16 %v2752
    %v2907 = vunpack.c.h.b16 %v2752
    %v2908 = vunpack.c.l.b16 %v2753
    %v2909 = vunpack.c.l.b16 %v2754
    %v2910 = vunpack.c.h.b16 %v2754
    %v2911 = vunpack.c.l.b16 %v2755
    %v2912 = vunpack.c.h.b16 %v2755
    %v2913 = vunpack.c.l.b16 %v2756
    %v2914 = vunpack.c.h.b16 %v2756
    %v2915 = vunpack.c.l.b16 %v2757
    %v2916 = vunpack.c.l.b16 %v2758
    %v2917 = vunpack.c.h.b16 %v2758
    %v2918 = vunpack.c.l.b16 %v2759
    %v2919 = vunpack.c.h.b16 %v2759
    %v2920 = vunpack.c.l.b16 %v2760
    %v2921 = vunpack.c.h.b16 %v2760
    %v2922 = vunpack.c.l.b16 %v2761
    %v2923 = vunpack.c.l.b16 %v2762
    %v2924 = vunpack.c.h.b16 %v2762
    %v2925 = vunpack.c.l.b16 %v2763
    %v2926 = vunpack.c.h.b16 %v2763
    %v2927 = vunpack.c.l.b16 %v2764
    %v2928 = vunpack.c.h.b16 %v2764
    %v2929 = vunpack.c.l.b16 %v2765
    %v2930 = vunpack.c.l.b16 %v2766
    %v2931 = vunpack.c.h.b16 %v2766
    %v2932 = vunpack.c.l.b16 %v2767
    %v2933 = vunpack.c.h.b16 %v2767
    %v2934 = vunpack.c.l.b16 %v2768
    %v2935 = vunpack.c.h.b16 %v2768
    %v2936 = vunpack.c.l.b16 %v2769
    %v2937 = vunpack.c.l.b16 %v2770
    %v2938 = vunpack.c.h.b16 %v2770
    %v2939 = vunpack.c.l.b16 %v2771
    %v2940 = vunpack.c.h.b16 %v2771
    %v2941 = vunpack.c.l.b16 %v2772
    %v2942 = vunpack.c.h.b16 %v2772
    %v2943 = vunpack.c.l.b16 %v2773
    %v2944 = vunpack.c.l.b16 %v2774
    %v2945 = vunpack.c.h.b16 %v2774
    %v2946 = vunpack.c.l.b16 %v2775
    %v2947 = vunpack.c.h.b16 %v2775
    %v2948 = vunpack.c.l.b16 %v2776
    %v2949 = vunpack.c.h.b16 %v2776
    %v2950 = vunpack.c.l.b16 %v2777
    %v2951 = vunpack.c.l.b16 %v2778
    %v2952 = vunpack.c.h.b16 %v2778
    %v2953 = vunpack.c.l.b16 %v2779
    %v2954 = vunpack.c.h.b16 %v2779
    %v2955 = vunpack.c.l.b16 %v2780
    %v2956 = vunpack.c.h.b16 %v2780
    %v2957 = vunpack.c.l.b16 %v2781
    %v2958 = vunpack.c.l.b16 %v2782
    %v2959 = vunpack.c.h.b16 %v2782
    %v2960 = vunpack.c.l.b16 %v2783
    %v2961 = vunpack.c.h.b16 %v2783
    %v2962 = vunpack.c.l.b16 %v2784
    %v2963 = vunpack.c.h.b16 %v2784
    %v2964 = vunpack.c.l.b16 %v2785
    %v2965 = vunpack.c.l.b16 %v2786
    %v2966 = vunpack.c.h.b16 %v2786
    %v2967 = vunpack.c.l.b16 %v2787
    %v2968 = vunpack.c.h.b16 %v2787
    %v2969 = vunpack.c.l.b16 %v2788
    %v2970 = vunpack.c.h.b16 %v2788
    %v2971 = vunpack.c.l.b16 %v2789
    %v2972 = vpack.c.b16 %v2867, %v2860
    %v2973 = vpack.c.b16 %v2868, %v2861
    %v2974 = vpack.c.b16 %v2869, %v2862
    %v2975 = vpack.c.b16 %v2870, %v2863
    %v2976 = vpack.c.b16 %v2871, %v2864
    %v2977 = vpack.c.b16 %v2872, %v2865
    %v2978 = vpack.c.b16 %v2873, %v2866
    %v2979 = vpack.c.b16 %v2881, %v2874
    %v2980 = vpack.c.b16 %v2882, %v2875
    %v2981 = vpack.c.b16 %v2883, %v2876
    %v2982 = vpack.c.b16 %v2884, %v2877
    %v2983 = vpack.c.b16 %v2885, %v2878
    %v2984 = vpack.c.b16 %v2886, %v2879
    %v2985 = vpack.c.b16 %v2887, %v2880
    %v2986 = vpack.c.b16 %v2895, %v2888
    %v2987 = vpack.c.b16 %v2896, %v2889
    %v2988 = vpack.c.b16 %v2897, %v2890
    %v2989 = vpack.c.b16 %v2898, %v2891
    %v2990 = vpack.c.b16 %v2899, %v2892
    %v2991 = vpack.c.b16 %v2900, %v2893
    %v2992 = vpack.c.b16 %v2901, %v2894
    %v2993 = vpack.c.b16 %v2909, %v2902
    %v2994 = vpack.c.b16 %v2910, %v2903
    %v2995 = vpack.c.b16 %v2911, %v2904
    %v2996 = vpack.c.b16 %v2912, %v2905
    %v2997 = vpack.c.b16 %v2913, %v2906
    %v2998 = vpack.c.b16 %v2914, %v2907
    %v2999 = vpack.c.b16 %v2915, %v2908
    %v3000 = vpack.c.b16 %v2923, %v2916
    %v3001 = vpack.c.b16 %v2924, %v2917
    %v3002 = vpack.c.b16 %v2925, %v2918
    %v3003 = vpack.c.b16 %v2926, %v2919
    %v3004 = vpack.c.b16 %v2927, %v2920
    %v3005 = vpack.c.b16 %v2928, %v2921
    %v3006 = vpack.c.b16 %v2929, %v2922
    %v3007 = vpack.c.b16 %v2937, %v2930
    %v3008 = vpack.c.b16 %v2938, %v2931
    %v3009 = vpack.c.b16 %v2939, %v2932
    %v3010 = vpack.c.b16 %v2940, %v2933
    %v3011 = vpack.c.b16 %v2941, %v2934
    %v3012 = vpack.c.b16 %v2942, %v2935
    %v3013 = vpack.c.b16 %v2943, %v2936
    %v3014 = vpack.c.b16 %v2951, %v2944
    %v3015 = vpack.c.b16 %v2952, %v2945
    %v3016 = vpack.c.b16 %v2953, %v2946
    %v3017 = vpack.c.b16 %v2954, %v2947
    %v3018 = vpack.c.b16 %v2955, %v2948
    %v3019 = vpack.c.b16 %v2956, %v2949
    %v3020 = vpack.c.b16 %v2957, %v2950
    %v3021 = vpack.c.b16 %v2965, %v2958
    %v3022 = vpack.c.b16 %v2966, %v2959
    %v3023 = vpack.c.b16 %v2967, %v2960
    %v3024 = vpack.c.b16 %v2968, %v2961
    %v3025 = vpack.c.b16 %v2969, %v2962
    %v3026 = vpack.c.b16 %v2970, %v2963
    %v3027 = vpack.c.b16 %v2971, %v2964
    %3084 = vmatprep.subr.bf16.mxu0 %v2973
    %3085 = vmatpush1.bf16.msra.mxu0 %v2972
    %3086 = vmatprep.subr.bf16.mxu0 %v2980
    %3087 = vmatpush1.bf16.msra.mxu0 %v2979
    %3088 = vmatprep.subr.bf16.mxu0 %v2987
    %3089 = vmatpush1.bf16.msra.mxu0 %v2986
    %3090 = vmatprep.subr.bf16.mxu0 %v2994
    %3091 = vmatpush1.bf16.msra.mxu0 %v2993
    %3092 = vmatprep.subr.bf16.mxu0 %v3001
    %3093 = vmatpush1.bf16.msra.mxu0 %v3000
    %3094 = vmatprep.subr.bf16.mxu0 %v3008
    %3095 = vmatpush1.bf16.msra.mxu0 %v3007
    %3096 = vmatprep.subr.bf16.mxu0 %v3015
    %3097 = vmatpush1.bf16.msra.mxu0 %v3014
    %3098 = vmatprep.subr.bf16.mxu0 %v3022
    %3099 = vmatpush1.bf16.msra.mxu0 %v3021
    %3100 = vmatprep.subr.bf16.mxu0 0
    %3101 = vmatpush1.bf16.msra.mxu0 0
    %3102 = vmatprep.subr.bf16.mxu0 0
    %3103 = vmatpush1.bf16.msra.mxu0 0
    %3104 = vmatprep.subr.bf16.mxu0 0
    %3105 = vmatpush1.bf16.msra.mxu0 0
    %3106 = vmatprep.subr.bf16.mxu0 0
    %3107 = vmatpush1.bf16.msra.mxu0 0
    %3108 = vmatprep.subr.bf16.mxu0 0
    %3109 = vmatpush1.bf16.msra.mxu0 0
    %3110 = vmatprep.subr.bf16.mxu0 0
    %3111 = vmatpush1.bf16.msra.mxu0 0
    %3112 = vmatprep.subr.bf16.mxu0 0
    %3113 = vmatpush1.bf16.msra.mxu0 0
    %3114 = vmatprep.subr.bf16.mxu0 0
    %3115 = vmatpush1.bf16.msra.mxu0 0
    %3116 = vmatprep.mubr.bf16.mxu0 0
    %3117 = vmatmul.mubr.bf16.gmra.mrb[0].mxu0 %v2794
    %v3118 = vpop.f32.mrb[0].mxu0
    %v3119 = vadd.f32 0.0, %v3118
    %v3120 = vpop.f32.mrb[0].mxu0
    %v3121 = vadd.f32 0.0, %v3120
    %v3122 = vpop.f32.mrb[0].mxu0
    %v3123 = vadd.f32 0.0, %v3122
    %v3124 = vpop.f32.mrb[0].mxu0
    %v3125 = vadd.f32 0.0, %v3124
    %3126 = vdwg.mxu0
    %3127 = vmatprep.subr.bf16.mxu0 %v2975
    %3128 = vmatpush1.bf16.msra.mxu0 %v2974
    %3129 = vmatprep.subr.bf16.mxu0 %v2982
    %3130 = vmatpush1.bf16.msra.mxu0 %v2981
    %3131 = vmatprep.subr.bf16.mxu0 %v2989
    %3132 = vmatpush1.bf16.msra.mxu0 %v2988
    %3133 = vmatprep.subr.bf16.mxu0 %v2996
    %3134 = vmatpush1.bf16.msra.mxu0 %v2995
    %3135 = vmatprep.subr.bf16.mxu0 %v3003
    %3136 = vmatpush1.bf16.msra.mxu0 %v3002
    %3137 = vmatprep.subr.bf16.mxu0 %v3010
    %3138 = vmatpush1.bf16.msra.mxu0 %v3009
    %3139 = vmatprep.subr.bf16.mxu0 %v3017
    %3140 = vmatpush1.bf16.msra.mxu0 %v3016
    %3141 = vmatprep.subr.bf16.mxu0 %v3024
    %3142 = vmatpush1.bf16.msra.mxu0 %v3023
    %3143 = vmatprep.subr.bf16.mxu0 0
    %3144 = vmatpush1.bf16.msra.mxu0 0
    %3145 = vmatprep.subr.bf16.mxu0 0
    %3146 = vmatpush1.bf16.msra.mxu0 0
    %3147 = vmatprep.subr.bf16.mxu0 0
    %3148 = vmatpush1.bf16.msra.mxu0 0
    %3149 = vmatprep.subr.bf16.mxu0 0
    %3150 = vmatpush1.bf16.msra.mxu0 0
    %3151 = vmatprep.subr.bf16.mxu0 0
    %3152 = vmatpush1.bf16.msra.mxu0 0
    %3153 = vmatprep.subr.bf16.mxu0 0
    %3154 = vmatpush1.bf16.msra.mxu0 0
    %3155 = vmatprep.subr.bf16.mxu0 0
    %3156 = vmatpush1.bf16.msra.mxu0 0
    %3157 = vmatprep.subr.bf16.mxu0 0
    %3158 = vmatpush1.bf16.msra.mxu0 0
    %3159 = vmatprep.mubr.bf16.mxu0 0
    %3160 = vmatmul.mubr.bf16.gmra.mrb[0].mxu0 %v2794
    %v3161 = vpop.f32.mrb[0].mxu0
    %v3162 = vadd.f32 0.0, %v3161
    %v3163 = vpop.f32.mrb[0].mxu0
    %v3164 = vadd.f32 0.0, %v3163
    %v3165 = vpop.f32.mrb[0].mxu0
    %v3166 = vadd.f32 0.0, %v3165
    %v3167 = vpop.f32.mrb[0].mxu0
    %v3168 = vadd.f32 0.0, %v3167
    %3169 = vdwg.mxu0
    %3170 = vmatprep.subr.bf16.mxu0 %v2977
    %3171 = vmatpush1.bf16.msra.mxu0 %v2976
    %3172 = vmatprep.subr.bf16.mxu0 %v2984
    %3173 = vmatpush1.bf16.msra.mxu0 %v2983
    %3174 = vmatprep.subr.bf16.mxu0 %v2991
    %3175 = vmatpush1.bf16.msra.mxu0 %v2990
    %3176 = vmatprep.subr.bf16.mxu0 %v2998
    %3177 = vmatpush1.bf16.msra.mxu0 %v2997
    %3178 = vmatprep.subr.bf16.mxu0 %v3005
    %3179 = vmatpush1.bf16.msra.mxu0 %v3004
    %3180 = vmatprep.subr.bf16.mxu0 %v3012
    %3181 = vmatpush1.bf16.msra.mxu0 %v3011
    %3182 = vmatprep.subr.bf16.mxu0 %v3019
    %3183 = vmatpush1.bf16.msra.mxu0 %v3018
    %3184 = vmatprep.subr.bf16.mxu0 %v3026
    %3185 = vmatpush1.bf16.msra.mxu0 %v3025
    %3186 = vmatprep.subr.bf16.mxu0 0
    %3187 = vmatpush1.bf16.msra.mxu0 0
    %3188 = vmatprep.subr.bf16.mxu0 0
    %3189 = vmatpush1.bf16.msra.mxu0 0
    %3190 = vmatprep.subr.bf16.mxu0 0
    %3191 = vmatpush1.bf16.msra.mxu0 0
    %3192 = vmatprep.subr.bf16.mxu0 0
    %3193 = vmatpush1.bf16.msra.mxu0 0
    %3194 = vmatprep.subr.bf16.mxu0 0
    %3195 = vmatpush1.bf16.msra.mxu0 0
    %3196 = vmatprep.subr.bf16.mxu0 0
    %3197 = vmatpush1.bf16.msra.mxu0 0
    %3198 = vmatprep.subr.bf16.mxu0 0
    %3199 = vmatpush1.bf16.msra.mxu0 0
    %3200 = vmatprep.subr.bf16.mxu0 0
    %3201 = vmatpush1.bf16.msra.mxu0 0
    %3202 = vmatprep.mubr.bf16.mxu0 0
    %3203 = vmatmul.mubr.bf16.gmra.mrb[0].mxu0 %v2794
    %v3204 = vpop.f32.mrb[0].mxu0
    %v3205 = vadd.f32 0.0, %v3204
    %v3206 = vpop.f32.mrb[0].mxu0
    %v3207 = vadd.f32 0.0, %v3206
    %v3208 = vpop.f32.mrb[0].mxu0
    %v3209 = vadd.f32 0.0, %v3208
    %v3210 = vpop.f32.mrb[0].mxu0
    %v3211 = vadd.f32 0.0, %v3210
    %3212 = vdwg.mxu0
    %3213 = vmatprep.subr.bf16.mxu0 0
    %3214 = vmatpush1.bf16.msra.mxu0 %v2978
    %3215 = vmatprep.subr.bf16.mxu0 0
    %3216 = vmatpush1.bf16.msra.mxu0 %v2985
    %3217 = vmatprep.subr.bf16.mxu0 0
    %3218 = vmatpush1.bf16.msra.mxu0 %v2992
    %3219 = vmatprep.subr.bf16.mxu0 0
    %3220 = vmatpush1.bf16.msra.mxu0 %v2999
    %3221 = vmatprep.subr.bf16.mxu0 0
    %3222 = vmatpush1.bf16.msra.mxu0 %v3006
    %3223 = vmatprep.subr.bf16.mxu0 0
    %3224 = vmatpush1.bf16.msra.mxu0 %v3013
    %3225 = vmatprep.subr.bf16.mxu0 0
    %3226 = vmatpush1.bf16.msra.mxu0 %v3020
    %3227 = vmatprep.subr.bf16.mxu0 0
    %3228 = vmatpush1.bf16.msra.mxu0 %v3027
    %3229 = vmatprep.subr.bf16.mxu0 0
    %3230 = vmatpush1.bf16.msra.mxu0 0
    %3231 = vmatprep.subr.bf16.mxu0 0
    %3232 = vmatpush1.bf16.msra.mxu0 0
    %3233 = vmatprep.subr.bf16.mxu0 0
    %3234 = vmatpush1.bf16.msra.mxu0 0
    %3235 = vmatprep.subr.bf16.mxu0 0
    %3236 = vmatpush1.bf16.msra.mxu0 0
    %3237 = vmatprep.subr.bf16.mxu0 0
    %3238 = vmatpush1.bf16.msra.mxu0 0
    %3239 = vmatprep.subr.bf16.mxu0 0
    %3240 = vmatpush1.bf16.msra.mxu0 0
    %3241 = vmatprep.subr.bf16.mxu0 0
    %3242 = vmatpush1.bf16.msra.mxu0 0
    %3243 = vmatprep.subr.bf16.mxu0 0
    %3244 = vmatpush1.bf16.msra.mxu0 0
    %3245 = vmatprep.mubr.bf16.mxu0 0
    %3246 = vmatmul.mubr.bf16.gmra.mrb[0].mxu0 %v2794
    %v3247 = vpop.f32.mrb[0].mxu0
    %v3248 = vadd.f32 0.0, %v3247
    %v3249 = vpop.f32.mrb[0].mxu0
    %v3250 = vpop.f32.mrb[0].mxu0
    %v3251 = vadd.f32 0.0, %v3250
    %v3252 = vpop.f32.mrb[0].mxu0
    %3253 = vdwg.mxu0
    %v3638 = vunpack.c.l.b16 %v2340
    %v3639 = vunpack.c.h.b16 %v2340
    %v3640 = vunpack.c.l.b16 %v2341
    %v3641 = vunpack.c.h.b16 %v2341
    %v3642 = vunpack.c.l.b16 %v2342
    %v3643 = vunpack.c.h.b16 %v2342
    %v3644 = vunpack.c.l.b16 %v2343
    %v3645 = vunpack.c.l.b16 %v2344
    %v3646 = vunpack.c.h.b16 %v2344
    %v3647 = vunpack.c.l.b16 %v2345
    %v3648 = vunpack.c.h.b16 %v2345
    %v3649 = vunpack.c.l.b16 %v2346
    %v3650 = vunpack.c.h.b16 %v2346
    %v3651 = vunpack.c.l.b16 %v2347
    %v3652 = vunpack.c.l.b16 %v2348
    %v3653 = vunpack.c.h.b16 %v2348
    %v3654 = vunpack.c.l.b16 %v2349
    %v3655 = vunpack.c.h.b16 %v2349
    %v3656 = vunpack.c.l.b16 %v2350
    %v3657 = vunpack.c.h.b16 %v2350
    %v3658 = vunpack.c.l.b16 %v2351
    %v3659 = vunpack.c.l.b16 %v2352
    %v3660 = vunpack.c.h.b16 %v2352
    %v3661 = vunpack.c.l.b16 %v2353
    %v3662 = vunpack.c.h.b16 %v2353
    %v3663 = vunpack.c.l.b16 %v2354
    %v3664 = vunpack.c.h.b16 %v2354
    %v3665 = vunpack.c.l.b16 %v2355
    %v3666 = vunpack.c.l.b16 %v2356
    %v3667 = vunpack.c.h.b16 %v2356
    %v3668 = vunpack.c.l.b16 %v2357
    %v3669 = vunpack.c.h.b16 %v2357
    %v3670 = vunpack.c.l.b16 %v2358
    %v3671 = vunpack.c.h.b16 %v2358
    %v3672 = vunpack.c.l.b16 %v2359
    %v3673 = vunpack.c.l.b16 %v2360
    %v3674 = vunpack.c.h.b16 %v2360
    %v3675 = vunpack.c.l.b16 %v2361
    %v3676 = vunpack.c.h.b16 %v2361
    %v3677 = vunpack.c.l.b16 %v2362
    %v3678 = vunpack.c.h.b16 %v2362
    %v3679 = vunpack.c.l.b16 %v2363
    %v3680 = vunpack.c.l.b16 %v2364
    %v3681 = vunpack.c.h.b16 %v2364
    %v3682 = vunpack.c.l.b16 %v2365
    %v3683 = vunpack.c.h.b16 %v2365
    %v3684 = vunpack.c.l.b16 %v2366
    %v3685 = vunpack.c.h.b16 %v2366
    %v3686 = vunpack.c.l.b16 %v2367
    %v3687 = vunpack.c.l.b16 %v2368
    %v3688 = vunpack.c.h.b16 %v2368
    %v3689 = vunpack.c.l.b16 %v2369
    %v3690 = vunpack.c.h.b16 %v2369
    %v3691 = vunpack.c.l.b16 %v2370
    %v3692 = vunpack.c.h.b16 %v2370
    %v3693 = vunpack.c.l.b16 %v2371
    %v3694 = vunpack.c.l.b16 %v2372
    %v3695 = vunpack.c.h.b16 %v2372
    %v3696 = vunpack.c.l.b16 %v2373
    %v3697 = vunpack.c.h.b16 %v2373
    %v3698 = vunpack.c.l.b16 %v2374
    %v3699 = vunpack.c.h.b16 %v2374
    %v3700 = vunpack.c.l.b16 %v2375
    %v3701 = vunpack.c.l.b16 %v2376
    %v3702 = vunpack.c.h.b16 %v2376
    %v3703 = vunpack.c.l.b16 %v2377
    %v3704 = vunpack.c.h.b16 %v2377
    %v3705 = vunpack.c.l.b16 %v2378
    %v3706 = vunpack.c.h.b16 %v2378
    %v3707 = vunpack.c.l.b16 %v2379
    %v3708 = vunpack.c.l.b16 %v2380
    %v3709 = vunpack.c.h.b16 %v2380
    %v3710 = vunpack.c.l.b16 %v2381
    %v3711 = vunpack.c.h.b16 %v2381
    %v3712 = vunpack.c.l.b16 %v2382
    %v3713 = vunpack.c.h.b16 %v2382
    %v3714 = vunpack.c.l.b16 %v2383
    %v3715 = vunpack.c.l.b16 %v2384
    %v3716 = vunpack.c.h.b16 %v2384
    %v3717 = vunpack.c.l.b16 %v2385
    %v3718 = vunpack.c.h.b16 %v2385
    %v3719 = vunpack.c.l.b16 %v2386
    %v3720 = vunpack.c.h.b16 %v2386
    %v3721 = vunpack.c.l.b16 %v2387
    %v3722 = vunpack.c.l.b16 %v2388
    %v3723 = vunpack.c.h.b16 %v2388
    %v3724 = vunpack.c.l.b16 %v2389
    %v3725 = vunpack.c.h.b16 %v2389
    %v3726 = vunpack.c.l.b16 %v2390
    %v3727 = vunpack.c.h.b16 %v2390
    %v3728 = vunpack.c.l.b16 %v2391
    %v3729 = vunpack.c.l.b16 %v2392
    %v3730 = vunpack.c.h.b16 %v2392
    %v3731 = vunpack.c.l.b16 %v2393
    %v3732 = vunpack.c.h.b16 %v2393
    %v3733 = vunpack.c.l.b16 %v2394
    %v3734 = vunpack.c.h.b16 %v2394
    %v3735 = vunpack.c.l.b16 %v2395
    %v3736 = vunpack.c.l.b16 %v2396
    %v3737 = vunpack.c.h.b16 %v2396
    %v3738 = vunpack.c.l.b16 %v2397
    %v3739 = vunpack.c.h.b16 %v2397
    %v3740 = vunpack.c.l.b16 %v2398
    %v3741 = vunpack.c.h.b16 %v2398
    %v3742 = vunpack.c.l.b16 %v2399
    %v3743 = vunpack.c.l.b16 %v2400
    %v3744 = vunpack.c.h.b16 %v2400
    %v3745 = vunpack.c.l.b16 %v2401
    %v3746 = vunpack.c.h.b16 %v2401
    %v3747 = vunpack.c.l.b16 %v2402
    %v3748 = vunpack.c.h.b16 %v2402
    %v3749 = vunpack.c.l.b16 %v2403
    %v3750 = vunpack.c.l.b16 %v2404
    %v3751 = vunpack.c.h.b16 %v2404
    %v3752 = vunpack.c.l.b16 %v2405
    %v3753 = vunpack.c.h.b16 %v2405
    %v3754 = vunpack.c.l.b16 %v2406
    %v3755 = vunpack.c.h.b16 %v2406
    %v3756 = vunpack.c.l.b16 %v2407
    %v3757 = vunpack.c.l.b16 %v2408
    %v3758 = vunpack.c.h.b16 %v2408
    %v3759 = vunpack.c.l.b16 %v2409
    %v3760 = vunpack.c.h.b16 %v2409
    %v3761 = vunpack.c.l.b16 %v2410
    %v3762 = vunpack.c.h.b16 %v2410
    %v3763 = vunpack.c.l.b16 %v2411
    %v3764 = vunpack.c.l.b16 %v2412
    %v3765 = vunpack.c.h.b16 %v2412
    %v3766 = vunpack.c.l.b16 %v2413
    %v3767 = vunpack.c.h.b16 %v2413
    %v3768 = vunpack.c.l.b16 %v2414
    %v3769 = vunpack.c.h.b16 %v2414
    %v3770 = vunpack.c.l.b16 %v2415
    %v3771 = vunpack.c.l.b16 %v2416
    %v3772 = vunpack.c.h.b16 %v2416
    %v3773 = vunpack.c.l.b16 %v2417
    %v3774 = vunpack.c.h.b16 %v2417
    %v3775 = vunpack.c.l.b16 %v2418
    %v3776 = vunpack.c.h.b16 %v2418
    %v3777 = vunpack.c.l.b16 %v2419
    %v3778 = vunpack.c.l.b16 %v2420
    %v3779 = vunpack.c.h.b16 %v2420
    %v3780 = vunpack.c.l.b16 %v2421
    %v3781 = vunpack.c.h.b16 %v2421
    %v3782 = vunpack.c.l.b16 %v2422
    %v3783 = vunpack.c.h.b16 %v2422
    %v3784 = vunpack.c.l.b16 %v2423
    %v3785 = vunpack.c.l.b16 %v2424
    %v3786 = vunpack.c.h.b16 %v2424
    %v3787 = vunpack.c.l.b16 %v2425
    %v3788 = vunpack.c.h.b16 %v2425
    %v3789 = vunpack.c.l.b16 %v2426
    %v3790 = vunpack.c.h.b16 %v2426
    %v3791 = vunpack.c.l.b16 %v2427
    %v3792 = vunpack.c.l.b16 %v2428
    %v3793 = vunpack.c.h.b16 %v2428
    %v3794 = vunpack.c.l.b16 %v2429
    %v3795 = vunpack.c.h.b16 %v2429
    %v3796 = vunpack.c.l.b16 %v2430
    %v3797 = vunpack.c.h.b16 %v2430
    %v3798 = vunpack.c.l.b16 %v2431
    %v3799 = vunpack.c.l.b16 %v2432
    %v3800 = vunpack.c.h.b16 %v2432
    %v3801 = vunpack.c.l.b16 %v2433
    %v3802 = vunpack.c.h.b16 %v2433
    %v3803 = vunpack.c.l.b16 %v2434
    %v3804 = vunpack.c.h.b16 %v2434
    %v3805 = vunpack.c.l.b16 %v2435
    %v3806 = vunpack.c.l.b16 %v2436
    %v3807 = vunpack.c.h.b16 %v2436
    %v3808 = vunpack.c.l.b16 %v2437
    %v3809 = vunpack.c.h.b16 %v2437
    %v3810 = vunpack.c.l.b16 %v2438
    %v3811 = vunpack.c.h.b16 %v2438
    %v3812 = vunpack.c.l.b16 %v2439
    %v3813 = vunpack.c.l.b16 %v2440
    %v3814 = vunpack.c.h.b16 %v2440
    %v3815 = vunpack.c.l.b16 %v2441
    %v3816 = vunpack.c.h.b16 %v2441
    %v3817 = vunpack.c.l.b16 %v2442
    %v3818 = vunpack.c.h.b16 %v2442
    %v3819 = vunpack.c.l.b16 %v2443
    %v3820 = vunpack.c.l.b16 %v2444
    %v3821 = vunpack.c.h.b16 %v2444
    %v3822 = vunpack.c.l.b16 %v2445
    %v3823 = vunpack.c.h.b16 %v2445
    %v3824 = vunpack.c.l.b16 %v2446
    %v3825 = vunpack.c.h.b16 %v2446
    %v3826 = vunpack.c.l.b16 %v2447
    %v3827 = vunpack.c.l.b16 %v2448
    %v3828 = vunpack.c.h.b16 %v2448
    %v3829 = vunpack.c.l.b16 %v2449
    %v3830 = vunpack.c.h.b16 %v2449
    %v3831 = vunpack.c.l.b16 %v2450
    %v3832 = vunpack.c.h.b16 %v2450
    %v3833 = vunpack.c.l.b16 %v2451
    %v3834 = vunpack.c.l.b16 %v2452
    %v3835 = vunpack.c.h.b16 %v2452
    %v3836 = vunpack.c.l.b16 %v2453
    %v3837 = vunpack.c.h.b16 %v2453
    %v3838 = vunpack.c.l.b16 %v2454
    %v3839 = vunpack.c.h.b16 %v2454
    %v3840 = vunpack.c.l.b16 %v2455
    %v3841 = vunpack.c.l.b16 %v2456
    %v3842 = vunpack.c.h.b16 %v2456
    %v3843 = vunpack.c.l.b16 %v2457
    %v3844 = vunpack.c.h.b16 %v2457
    %v3845 = vunpack.c.l.b16 %v2458
    %v3846 = vunpack.c.h.b16 %v2458
    %v3847 = vunpack.c.l.b16 %v2459
    %v3848 = vunpack.c.l.b16 %v2460
    %v3849 = vunpack.c.h.b16 %v2460
    %v3850 = vunpack.c.l.b16 %v2461
    %v3851 = vunpack.c.h.b16 %v2461
    %v3852 = vunpack.c.l.b16 %v2462
    %v3853 = vunpack.c.h.b16 %v2462
    %v3854 = vunpack.c.l.b16 %v2463
    %v3855 = vunpack.c.l.b16 %v2464
    %v3856 = vunpack.c.h.b16 %v2464
    %v3857 = vunpack.c.l.b16 %v2465
    %v3858 = vunpack.c.h.b16 %v2465
    %v3859 = vunpack.c.l.b16 %v2466
    %v3860 = vunpack.c.h.b16 %v2466
    %v3861 = vunpack.c.l.b16 %v2467
    %v3862 = vunpack.c.l.b16 %v2468
    %v3863 = vunpack.c.h.b16 %v2468
    %v3864 = vunpack.c.l.b16 %v2469
    %v3865 = vunpack.c.h.b16 %v2469
    %v3866 = vunpack.c.l.b16 %v2470
    %v3867 = vunpack.c.h.b16 %v2470
    %v3868 = vunpack.c.l.b16 %v2471
    %v3869 = vunpack.c.l.b16 %v2472
    %v3870 = vunpack.c.h.b16 %v2472
    %v3871 = vunpack.c.l.b16 %v2473
    %v3872 = vunpack.c.h.b16 %v2473
    %v3873 = vunpack.c.l.b16 %v2474
    %v3874 = vunpack.c.h.b16 %v2474
    %v3875 = vunpack.c.l.b16 %v2475
    %v3876 = vunpack.c.l.b16 %v2476
    %v3877 = vunpack.c.h.b16 %v2476
    %v3878 = vunpack.c.l.b16 %v2477
    %v3879 = vunpack.c.h.b16 %v2477
    %v3880 = vunpack.c.l.b16 %v2478
    %v3881 = vunpack.c.h.b16 %v2478
    %v3882 = vunpack.c.l.b16 %v2479
    %v3883 = vunpack.c.l.b16 %v2480
    %v3884 = vunpack.c.h.b16 %v2480
    %v3885 = vunpack.c.l.b16 %v2481
    %v3886 = vunpack.c.h.b16 %v2481
    %v3887 = vunpack.c.l.b16 %v2482
    %v3888 = vunpack.c.h.b16 %v2482
    %v3889 = vunpack.c.l.b16 %v2483
    %v3890 = vunpack.c.l.b16 %v2484
    %v3891 = vunpack.c.h.b16 %v2484
    %v3892 = vunpack.c.l.b16 %v2485
    %v3893 = vunpack.c.h.b16 %v2485
    %v3894 = vunpack.c.l.b16 %v2486
    %v3895 = vunpack.c.h.b16 %v2486
    %v3896 = vunpack.c.l.b16 %v2487
    %v3897 = vunpack.c.l.b16 %v2488
    %v3898 = vunpack.c.h.b16 %v2488
    %v3899 = vunpack.c.l.b16 %v2489
    %v3900 = vunpack.c.h.b16 %v2489
    %v3901 = vunpack.c.l.b16 %v2490
    %v3902 = vunpack.c.h.b16 %v2490
    %v3903 = vunpack.c.l.b16 %v2491
    %v3904 = vunpack.c.l.b16 %v2492
    %v3905 = vunpack.c.h.b16 %v2492
    %v3906 = vunpack.c.l.b16 %v2493
    %v3907 = vunpack.c.h.b16 %v2493
    %v3908 = vunpack.c.l.b16 %v2494
    %v3909 = vunpack.c.h.b16 %v2494
    %v3910 = vunpack.c.l.b16 %v2495
    %v3911 = vunpack.c.l.b16 %v2496
    %v3912 = vunpack.c.h.b16 %v2496
    %v3913 = vunpack.c.l.b16 %v2497
    %v3914 = vunpack.c.h.b16 %v2497
    %v3915 = vunpack.c.l.b16 %v2498
    %v3916 = vunpack.c.h.b16 %v2498
    %v3917 = vunpack.c.l.b16 %v2499
    %v3918 = vunpack.c.l.b16 %v2500
    %v3919 = vunpack.c.h.b16 %v2500
    %v3920 = vunpack.c.l.b16 %v2501
    %v3921 = vunpack.c.h.b16 %v2501
    %v3922 = vunpack.c.l.b16 %v2502
    %v3923 = vunpack.c.h.b16 %v2502
    %v3924 = vunpack.c.l.b16 %v2503
    %v3925 = vunpack.c.l.b16 %v2504
    %v3926 = vunpack.c.h.b16 %v2504
    %v3927 = vunpack.c.l.b16 %v2505
    %v3928 = vunpack.c.h.b16 %v2505
    %v3929 = vunpack.c.l.b16 %v2506
    %v3930 = vunpack.c.h.b16 %v2506
    %v3931 = vunpack.c.l.b16 %v2507
    %v3932 = vunpack.c.l.b16 %v2508
    %v3933 = vunpack.c.h.b16 %v2508
    %v3934 = vunpack.c.l.b16 %v2509
    %v3935 = vunpack.c.h.b16 %v2509
    %v3936 = vunpack.c.l.b16 %v2510
    %v3937 = vunpack.c.h.b16 %v2510
    %v3938 = vunpack.c.l.b16 %v2511
    %v3939 = vunpack.c.l.b16 %v2512
    %v3940 = vunpack.c.h.b16 %v2512
    %v3941 = vunpack.c.l.b16 %v2513
    %v3942 = vunpack.c.h.b16 %v2513
    %v3943 = vunpack.c.l.b16 %v2514
    %v3944 = vunpack.c.h.b16 %v2514
    %v3945 = vunpack.c.l.b16 %v2515
    %v3946 = vunpack.c.l.b16 %v2516
    %v3947 = vunpack.c.h.b16 %v2516
    %v3948 = vunpack.c.l.b16 %v2517
    %v3949 = vunpack.c.h.b16 %v2517
    %v3950 = vunpack.c.l.b16 %v2518
    %v3951 = vunpack.c.h.b16 %v2518
    %v3952 = vunpack.c.l.b16 %v2519
    %v3953 = vunpack.c.l.b16 %v2520
    %v3954 = vunpack.c.h.b16 %v2520
    %v3955 = vunpack.c.l.b16 %v2521
    %v3956 = vunpack.c.h.b16 %v2521
    %v3957 = vunpack.c.l.b16 %v2522
    %v3958 = vunpack.c.h.b16 %v2522
    %v3959 = vunpack.c.l.b16 %v2523
    %v3960 = vunpack.c.l.b16 %v2524
    %v3961 = vunpack.c.h.b16 %v2524
    %v3962 = vunpack.c.l.b16 %v2525
    %v3963 = vunpack.c.h.b16 %v2525
    %v3964 = vunpack.c.l.b16 %v2526
    %v3965 = vunpack.c.h.b16 %v2526
    %v3966 = vunpack.c.l.b16 %v2527
    %v3967 = vunpack.c.l.b16 %v2528
    %v3968 = vunpack.c.h.b16 %v2528
    %v3969 = vunpack.c.l.b16 %v2529
    %v3970 = vunpack.c.h.b16 %v2529
    %v3971 = vunpack.c.l.b16 %v2530
    %v3972 = vunpack.c.h.b16 %v2530
    %v3973 = vunpack.c.l.b16 %v2531
    %v3974 = vunpack.c.l.b16 %v2532
    %v3975 = vunpack.c.h.b16 %v2532
    %v3976 = vunpack.c.l.b16 %v2533
    %v3977 = vunpack.c.h.b16 %v2533
    %v3978 = vunpack.c.l.b16 %v2534
    %v3979 = vunpack.c.h.b16 %v2534
    %v3980 = vunpack.c.l.b16 %v2535
    %v3981 = vunpack.c.l.b16 %v2536
    %v3982 = vunpack.c.h.b16 %v2536
    %v3983 = vunpack.c.l.b16 %v2537
    %v3984 = vunpack.c.h.b16 %v2537
    %v3985 = vunpack.c.l.b16 %v2538
    %v3986 = vunpack.c.h.b16 %v2538
    %v3987 = vunpack.c.l.b16 %v2539
    %v3988 = vunpack.c.l.b16 %v2540
    %v3989 = vunpack.c.h.b16 %v2540
    %v3990 = vunpack.c.l.b16 %v2541
    %v3991 = vunpack.c.h.b16 %v2541
    %v3992 = vunpack.c.l.b16 %v2542
    %v3993 = vunpack.c.h.b16 %v2542
    %v3994 = vunpack.c.l.b16 %v2543
    %v3995 = vunpack.c.l.b16 %v2544
    %v3996 = vunpack.c.h.b16 %v2544
    %v3997 = vunpack.c.l.b16 %v2545
    %v3998 = vunpack.c.h.b16 %v2545
    %v3999 = vunpack.c.l.b16 %v2546
    %v4000 = vunpack.c.h.b16 %v2546
    %v4001 = vunpack.c.l.b16 %v2547
    %v4002 = vunpack.c.l.b16 %v2548
    %v4003 = vunpack.c.h.b16 %v2548
    %v4004 = vunpack.c.l.b16 %v2549
    %v4005 = vunpack.c.h.b16 %v2549
    %v4006 = vunpack.c.l.b16 %v2550
    %v4007 = vunpack.c.h.b16 %v2550
    %v4008 = vunpack.c.l.b16 %v2551
    %v4009 = vunpack.c.l.b16 %v2552
    %v4010 = vunpack.c.h.b16 %v2552
    %v4011 = vunpack.c.l.b16 %v2553
    %v4012 = vunpack.c.h.b16 %v2553
    %v4013 = vunpack.c.l.b16 %v2554
    %v4014 = vunpack.c.h.b16 %v2554
    %v4015 = vunpack.c.l.b16 %v2555
    %v4016 = vunpack.c.l.b16 %v2556
    %v4017 = vunpack.c.h.b16 %v2556
    %v4018 = vunpack.c.l.b16 %v2557
    %v4019 = vunpack.c.h.b16 %v2557
    %v4020 = vunpack.c.l.b16 %v2558
    %v4021 = vunpack.c.h.b16 %v2558
    %v4022 = vunpack.c.l.b16 %v2559
    %v4023 = vunpack.c.l.b16 %v2560
    %v4024 = vunpack.c.h.b16 %v2560
    %v4025 = vunpack.c.l.b16 %v2561
    %v4026 = vunpack.c.h.b16 %v2561
    %v4027 = vunpack.c.l.b16 %v2562
    %v4028 = vunpack.c.h.b16 %v2562
    %v4029 = vunpack.c.l.b16 %v2563
    %v4030 = vunpack.c.l.b16 %v2564
    %v4031 = vunpack.c.h.b16 %v2564
    %v4032 = vunpack.c.l.b16 %v2565
    %v4033 = vunpack.c.h.b16 %v2565
    %v4034 = vunpack.c.l.b16 %v2566
    %v4035 = vunpack.c.h.b16 %v2566
    %v4036 = vunpack.c.l.b16 %v2567
    %v4037 = vunpack.c.l.b16 %v2568
    %v4038 = vunpack.c.h.b16 %v2568
    %v4039 = vunpack.c.l.b16 %v2569
    %v4040 = vunpack.c.h.b16 %v2569
    %v4041 = vunpack.c.l.b16 %v2570
    %v4042 = vunpack.c.h.b16 %v2570
    %v4043 = vunpack.c.l.b16 %v2571
    %v4044 = vunpack.c.l.b16 %v2572
    %v4045 = vunpack.c.h.b16 %v2572
    %v4046 = vunpack.c.l.b16 %v2573
    %v4047 = vunpack.c.h.b16 %v2573
    %v4048 = vunpack.c.l.b16 %v2574
    %v4049 = vunpack.c.h.b16 %v2574
    %v4050 = vunpack.c.l.b16 %v2575
    %v4051 = vunpack.c.l.b16 %v2576
    %v4052 = vunpack.c.h.b16 %v2576
    %v4053 = vunpack.c.l.b16 %v2577
    %v4054 = vunpack.c.h.b16 %v2577
    %v4055 = vunpack.c.l.b16 %v2578
    %v4056 = vunpack.c.h.b16 %v2578
    %v4057 = vunpack.c.l.b16 %v2579
    %v4058 = vunpack.c.l.b16 %v2580
    %v4059 = vunpack.c.h.b16 %v2580
    %v4060 = vunpack.c.l.b16 %v2581
    %v4061 = vunpack.c.h.b16 %v2581
    %v4062 = vunpack.c.l.b16 %v2582
    %v4063 = vunpack.c.h.b16 %v2582
    %v4064 = vunpack.c.l.b16 %v2583
    %v4065 = vunpack.c.l.b16 %v2584
    %v4066 = vunpack.c.h.b16 %v2584
    %v4067 = vunpack.c.l.b16 %v2585
    %v4068 = vunpack.c.h.b16 %v2585
    %v4069 = vunpack.c.l.b16 %v2586
    %v4070 = vunpack.c.h.b16 %v2586
    %v4071 = vunpack.c.l.b16 %v2587
    %v4072 = vunpack.c.l.b16 %v2588
    %v4073 = vunpack.c.h.b16 %v2588
    %v4074 = vunpack.c.l.b16 %v2589
    %v4075 = vunpack.c.h.b16 %v2589
    %v4076 = vunpack.c.l.b16 %v2590
    %v4077 = vunpack.c.h.b16 %v2590
    %v4078 = vunpack.c.l.b16 %v2591
    %v4079 = vunpack.c.l.b16 %v2592
    %v4080 = vunpack.c.h.b16 %v2592
    %v4081 = vunpack.c.l.b16 %v2593
    %v4082 = vunpack.c.h.b16 %v2593
    %v4083 = vunpack.c.l.b16 %v2594
    %v4084 = vunpack.c.h.b16 %v2594
    %v4085 = vunpack.c.l.b16 %v2595
    %v4086 = vunpack.c.l.b16 %v2596
    %v4087 = vunpack.c.h.b16 %v2596
    %v4088 = vunpack.c.l.b16 %v2597
    %v4089 = vunpack.c.h.b16 %v2597
    %v4090 = vunpack.c.l.b16 %v2598
    %v4091 = vunpack.c.h.b16 %v2598
    %v4092 = vunpack.c.l.b16 %v2599
    %v4093 = vunpack.c.l.b16 %v2600
    %v4094 = vunpack.c.h.b16 %v2600
    %v4095 = vunpack.c.l.b16 %v2601
    %v4096 = vunpack.c.h.b16 %v2601
    %v4097 = vunpack.c.l.b16 %v2602
    %v4098 = vunpack.c.h.b16 %v2602
    %v4099 = vunpack.c.l.b16 %v2603
    %v4100 = vunpack.c.l.b16 %v2604
    %v4101 = vunpack.c.h.b16 %v2604
    %v4102 = vunpack.c.l.b16 %v2605
    %v4103 = vunpack.c.h.b16 %v2605
    %v4104 = vunpack.c.l.b16 %v2606
    %v4105 = vunpack.c.h.b16 %v2606
    %v4106 = vunpack.c.l.b16 %v2607
    %v4107 = vunpack.c.l.b16 %v2608
    %v4108 = vunpack.c.h.b16 %v2608
    %v4109 = vunpack.c.l.b16 %v2609
    %v4110 = vunpack.c.h.b16 %v2609
    %v4111 = vunpack.c.l.b16 %v2610
    %v4112 = vunpack.c.h.b16 %v2610
    %v4113 = vunpack.c.l.b16 %v2611
    %v4114 = vunpack.c.l.b16 %v2612
    %v4115 = vunpack.c.h.b16 %v2612
    %v4116 = vunpack.c.l.b16 %v2613
    %v4117 = vunpack.c.h.b16 %v2613
    %v4118 = vunpack.c.l.b16 %v2614
    %v4119 = vunpack.c.h.b16 %v2614
    %v4120 = vunpack.c.l.b16 %v2615
    %v4121 = vunpack.c.l.b16 %v2616
    %v4122 = vunpack.c.h.b16 %v2616
    %v4123 = vunpack.c.l.b16 %v2617
    %v4124 = vunpack.c.h.b16 %v2617
    %v4125 = vunpack.c.l.b16 %v2618
    %v4126 = vunpack.c.h.b16 %v2618
    %v4127 = vunpack.c.l.b16 %v2619
    %v4128 = vunpack.c.l.b16 %v2620
    %v4129 = vunpack.c.h.b16 %v2620
    %v4130 = vunpack.c.l.b16 %v2621
    %v4131 = vunpack.c.h.b16 %v2621
    %v4132 = vunpack.c.l.b16 %v2622
    %v4133 = vunpack.c.h.b16 %v2622
    %v4134 = vunpack.c.l.b16 %v2623
    %v4135 = vunpack.c.l.b16 %v2624
    %v4136 = vunpack.c.h.b16 %v2624
    %v4137 = vunpack.c.l.b16 %v2625
    %v4138 = vunpack.c.h.b16 %v2625
    %v4139 = vunpack.c.l.b16 %v2626
    %v4140 = vunpack.c.h.b16 %v2626
    %v4141 = vunpack.c.l.b16 %v2627
    %v4142 = vunpack.c.l.b16 %v2628
    %v4143 = vunpack.c.h.b16 %v2628
    %v4144 = vunpack.c.l.b16 %v2629
    %v4145 = vunpack.c.h.b16 %v2629
    %v4146 = vunpack.c.l.b16 %v2630
    %v4147 = vunpack.c.h.b16 %v2630
    %v4148 = vunpack.c.l.b16 %v2631
    %v4149 = vunpack.c.l.b16 %v2632
    %v4150 = vunpack.c.h.b16 %v2632
    %v4151 = vunpack.c.l.b16 %v2633
    %v4152 = vunpack.c.h.b16 %v2633
    %v4153 = vunpack.c.l.b16 %v2634
    %v4154 = vunpack.c.h.b16 %v2634
    %v4155 = vunpack.c.l.b16 %v2635
    %v4156 = vunpack.c.l.b16 %v2636
    %v4157 = vunpack.c.h.b16 %v2636
    %v4158 = vunpack.c.l.b16 %v2637
    %v4159 = vunpack.c.h.b16 %v2637
    %v4160 = vunpack.c.l.b16 %v2638
    %v4161 = vunpack.c.h.b16 %v2638
    %v4162 = vunpack.c.l.b16 %v2639
    %v4163 = vunpack.c.l.b16 %v2640
    %v4164 = vunpack.c.h.b16 %v2640
    %v4165 = vunpack.c.l.b16 %v2641
    %v4166 = vunpack.c.h.b16 %v2641
    %v4167 = vunpack.c.l.b16 %v2642
    %v4168 = vunpack.c.h.b16 %v2642
    %v4169 = vunpack.c.l.b16 %v2643
    %v4170 = vunpack.c.l.b16 %v2644
    %v4171 = vunpack.c.h.b16 %v2644
    %v4172 = vunpack.c.l.b16 %v2645
    %v4173 = vunpack.c.h.b16 %v2645
    %v4174 = vunpack.c.l.b16 %v2646
    %v4175 = vunpack.c.h.b16 %v2646
    %v4176 = vunpack.c.l.b16 %v2647
    %v4177 = vunpack.c.l.b16 %v2648
    %v4178 = vunpack.c.h.b16 %v2648
    %v4179 = vunpack.c.l.b16 %v2649
    %v4180 = vunpack.c.h.b16 %v2649
    %v4181 = vunpack.c.l.b16 %v2650
    %v4182 = vunpack.c.h.b16 %v2650
    %v4183 = vunpack.c.l.b16 %v2651
    %v4184 = vunpack.c.l.b16 %v2652
    %v4185 = vunpack.c.h.b16 %v2652
    %v4186 = vunpack.c.l.b16 %v2653
    %v4187 = vunpack.c.h.b16 %v2653
    %v4188 = vunpack.c.l.b16 %v2654
    %v4189 = vunpack.c.h.b16 %v2654
    %v4190 = vunpack.c.l.b16 %v2655
    %v4191 = vunpack.c.l.b16 %v2656
    %v4192 = vunpack.c.h.b16 %v2656
    %v4193 = vunpack.c.l.b16 %v2657
    %v4194 = vunpack.c.h.b16 %v2657
    %v4195 = vunpack.c.l.b16 %v2658
    %v4196 = vunpack.c.h.b16 %v2658
    %v4197 = vunpack.c.l.b16 %v2659
    %v4198 = vunpack.c.l.b16 %v2660
    %v4199 = vunpack.c.h.b16 %v2660
    %v4200 = vunpack.c.l.b16 %v2661
    %v4201 = vunpack.c.h.b16 %v2661
    %v4202 = vunpack.c.l.b16 %v2662
    %v4203 = vunpack.c.h.b16 %v2662
    %v4204 = vunpack.c.l.b16 %v2663
    %v4205 = vunpack.c.l.b16 %v2664
    %v4206 = vunpack.c.h.b16 %v2664
    %v4207 = vunpack.c.l.b16 %v2665
    %v4208 = vunpack.c.h.b16 %v2665
    %v4209 = vunpack.c.l.b16 %v2666
    %v4210 = vunpack.c.h.b16 %v2666
    %v4211 = vunpack.c.l.b16 %v2667
    %v4212 = vunpack.c.l.b16 %v2668
    %v4213 = vunpack.c.h.b16 %v2668
    %v4214 = vunpack.c.l.b16 %v2669
    %v4215 = vunpack.c.h.b16 %v2669
    %v4216 = vunpack.c.l.b16 %v2670
    %v4217 = vunpack.c.h.b16 %v2670
    %v4218 = vunpack.c.l.b16 %v2671
    %v4219 = vunpack.c.l.b16 %v2672
    %v4220 = vunpack.c.h.b16 %v2672
    %v4221 = vunpack.c.l.b16 %v2673
    %v4222 = vunpack.c.h.b16 %v2673
    %v4223 = vunpack.c.l.b16 %v2674
    %v4224 = vunpack.c.h.b16 %v2674
    %v4225 = vunpack.c.l.b16 %v2675
    %v4226 = vunpack.c.l.b16 %v2676
    %v4227 = vunpack.c.h.b16 %v2676
    %v4228 = vunpack.c.l.b16 %v2677
    %v4229 = vunpack.c.h.b16 %v2677
    %v4230 = vunpack.c.l.b16 %v2678
    %v4231 = vunpack.c.h.b16 %v2678
    %v4232 = vunpack.c.l.b16 %v2679
    %v4233 = vunpack.c.l.b16 %v2680
    %v4234 = vunpack.c.h.b16 %v2680
    %v4235 = vunpack.c.l.b16 %v2681
    %v4236 = vunpack.c.h.b16 %v2681
    %v4237 = vunpack.c.l.b16 %v2682
    %v4238 = vunpack.c.h.b16 %v2682
    %v4239 = vunpack.c.l.b16 %v2683
    %v4240 = vunpack.c.l.b16 %v2684
    %v4241 = vunpack.c.h.b16 %v2684
    %v4242 = vunpack.c.l.b16 %v2685
    %v4243 = vunpack.c.h.b16 %v2685
    %v4244 = vunpack.c.l.b16 %v2686
    %v4245 = vunpack.c.h.b16 %v2686
    %v4246 = vunpack.c.l.b16 %v2687
    %v4247 = vunpack.c.l.b16 %v2688
    %v4248 = vunpack.c.h.b16 %v2688
    %v4249 = vunpack.c.l.b16 %v2689
    %v4250 = vunpack.c.h.b16 %v2689
    %v4251 = vunpack.c.l.b16 %v2690
    %v4252 = vunpack.c.h.b16 %v2690
    %v4253 = vunpack.c.l.b16 %v2691
    %v4254 = vunpack.c.l.b16 %v2692
    %v4255 = vunpack.c.h.b16 %v2692
    %v4256 = vunpack.c.l.b16 %v2693
    %v4257 = vunpack.c.h.b16 %v2693
    %v4258 = vunpack.c.l.b16 %v2694
    %v4259 = vunpack.c.h.b16 %v2694
    %v4260 = vunpack.c.l.b16 %v2695
    %v4261 = vunpack.c.l.b16 %v2696
    %v4262 = vunpack.c.h.b16 %v2696
    %v4263 = vunpack.c.l.b16 %v2697
    %v4264 = vunpack.c.h.b16 %v2697
    %v4265 = vunpack.c.l.b16 %v2698
    %v4266 = vunpack.c.h.b16 %v2698
    %v4267 = vunpack.c.l.b16 %v2699
    %v4268 = vunpack.c.l.b16 %v2700
    %v4269 = vunpack.c.h.b16 %v2700
    %v4270 = vunpack.c.l.b16 %v2701
    %v4271 = vunpack.c.h.b16 %v2701
    %v4272 = vunpack.c.l.b16 %v2702
    %v4273 = vunpack.c.h.b16 %v2702
    %v4274 = vunpack.c.l.b16 %v2703
    %v4275 = vunpack.c.l.b16 %v2704
    %v4276 = vunpack.c.h.b16 %v2704
    %v4277 = vunpack.c.l.b16 %v2705
    %v4278 = vunpack.c.h.b16 %v2705
    %v4279 = vunpack.c.l.b16 %v2706
    %v4280 = vunpack.c.h.b16 %v2706
    %v4281 = vunpack.c.l.b16 %v2707
    %v4282 = vunpack.c.l.b16 %v2708
    %v4283 = vunpack.c.h.b16 %v2708
    %v4284 = vunpack.c.l.b16 %v2709
    %v4285 = vunpack.c.h.b16 %v2709
    %v4286 = vunpack.c.l.b16 %v2710
    %v4287 = vunpack.c.h.b16 %v2710
    %v4288 = vunpack.c.l.b16 %v2711
    %v4289 = vunpack.c.l.b16 %v2712
    %v4290 = vunpack.c.h.b16 %v2712
    %v4291 = vunpack.c.l.b16 %v2713
    %v4292 = vunpack.c.h.b16 %v2713
    %v4293 = vunpack.c.l.b16 %v2714
    %v4294 = vunpack.c.h.b16 %v2714
    %v4295 = vunpack.c.l.b16 %v2715
    %v4296 = vunpack.c.l.b16 %v2716
    %v4297 = vunpack.c.h.b16 %v2716
    %v4298 = vunpack.c.l.b16 %v2717
    %v4299 = vunpack.c.h.b16 %v2717
    %v4300 = vunpack.c.l.b16 %v2718
    %v4301 = vunpack.c.h.b16 %v2718
    %v4302 = vunpack.c.l.b16 %v2719
    %v4303 = vunpack.c.l.b16 %v2720
    %v4304 = vunpack.c.h.b16 %v2720
    %v4305 = vunpack.c.l.b16 %v2721
    %v4306 = vunpack.c.h.b16 %v2721
    %v4307 = vunpack.c.l.b16 %v2722
    %v4308 = vunpack.c.h.b16 %v2722
    %v4309 = vunpack.c.l.b16 %v2723
    %v4310 = vpack.c.b16 %v3645, %v3638
    %v4311 = vpack.c.b16 %v3646, %v3639
    %v4312 = vpack.c.b16 %v3647, %v3640
    %v4313 = vpack.c.b16 %v3648, %v3641
    %v4314 = vpack.c.b16 %v3649, %v3642
    %v4315 = vpack.c.b16 %v3650, %v3643
    %v4316 = vpack.c.b16 %v3651, %v3644
    %v4317 = vpack.c.b16 %v3659, %v3652
    %v4318 = vpack.c.b16 %v3660, %v3653
    %v4319 = vpack.c.b16 %v3661, %v3654
    %v4320 = vpack.c.b16 %v3662, %v3655
    %v4321 = vpack.c.b16 %v3663, %v3656
    %v4322 = vpack.c.b16 %v3664, %v3657
    %v4323 = vpack.c.b16 %v3665, %v3658
    %v4324 = vpack.c.b16 %v3673, %v3666
    %v4325 = vpack.c.b16 %v3674, %v3667
    %v4326 = vpack.c.b16 %v3675, %v3668
    %v4327 = vpack.c.b16 %v3676, %v3669
    %v4328 = vpack.c.b16 %v3677, %v3670
    %v4329 = vpack.c.b16 %v3678, %v3671
    %v4330 = vpack.c.b16 %v3679, %v3672
    %v4331 = vpack.c.b16 %v3687, %v3680
    %v4332 = vpack.c.b16 %v3688, %v3681
    %v4333 = vpack.c.b16 %v3689, %v3682
    %v4334 = vpack.c.b16 %v3690, %v3683
    %v4335 = vpack.c.b16 %v3691, %v3684
    %v4336 = vpack.c.b16 %v3692, %v3685
    %v4337 = vpack.c.b16 %v3693, %v3686
    %v4338 = vpack.c.b16 %v3701, %v3694
    %v4339 = vpack.c.b16 %v3702, %v3695
    %v4340 = vpack.c.b16 %v3703, %v3696
    %v4341 = vpack.c.b16 %v3704, %v3697
    %v4342 = vpack.c.b16 %v3705, %v3698
    %v4343 = vpack.c.b16 %v3706, %v3699
    %v4344 = vpack.c.b16 %v3707, %v3700
    %v4345 = vpack.c.b16 %v3715, %v3708
    %v4346 = vpack.c.b16 %v3716, %v3709
    %v4347 = vpack.c.b16 %v3717, %v3710
    %v4348 = vpack.c.b16 %v3718, %v3711
    %v4349 = vpack.c.b16 %v3719, %v3712
    %v4350 = vpack.c.b16 %v3720, %v3713
    %v4351 = vpack.c.b16 %v3721, %v3714
    %v4352 = vpack.c.b16 %v3729, %v3722
    %v4353 = vpack.c.b16 %v3730, %v3723
    %v4354 = vpack.c.b16 %v3731, %v3724
    %v4355 = vpack.c.b16 %v3732, %v3725
    %v4356 = vpack.c.b16 %v3733, %v3726
    %v4357 = vpack.c.b16 %v3734, %v3727
    %v4358 = vpack.c.b16 %v3735, %v3728
    %v4359 = vpack.c.b16 %v3743, %v3736
    %v4360 = vpack.c.b16 %v3744, %v3737
    %v4361 = vpack.c.b16 %v3745, %v3738
    %v4362 = vpack.c.b16 %v3746, %v3739
    %v4363 = vpack.c.b16 %v3747, %v3740
    %v4364 = vpack.c.b16 %v3748, %v3741
    %v4365 = vpack.c.b16 %v3749, %v3742
    %v4366 = vpack.c.b16 %v3757, %v3750
    %v4367 = vpack.c.b16 %v3758, %v3751
    %v4368 = vpack.c.b16 %v3759, %v3752
    %v4369 = vpack.c.b16 %v3760, %v3753
    %v4370 = vpack.c.b16 %v3761, %v3754
    %v4371 = vpack.c.b16 %v3762, %v3755
    %v4372 = vpack.c.b16 %v3763, %v3756
    %v4373 = vpack.c.b16 %v3771, %v3764
    %v4374 = vpack.c.b16 %v3772, %v3765
    %v4375 = vpack.c.b16 %v3773, %v3766
    %v4376 = vpack.c.b16 %v3774, %v3767
    %v4377 = vpack.c.b16 %v3775, %v3768
    %v4378 = vpack.c.b16 %v3776, %v3769
    %v4379 = vpack.c.b16 %v3777, %v3770
    %v4380 = vpack.c.b16 %v3785, %v3778
    %v4381 = vpack.c.b16 %v3786, %v3779
    %v4382 = vpack.c.b16 %v3787, %v3780
    %v4383 = vpack.c.b16 %v3788, %v3781
    %v4384 = vpack.c.b16 %v3789, %v3782
    %v4385 = vpack.c.b16 %v3790, %v3783
    %v4386 = vpack.c.b16 %v3791, %v3784
    %v4387 = vpack.c.b16 %v3799, %v3792
    %v4388 = vpack.c.b16 %v3800, %v3793
    %v4389 = vpack.c.b16 %v3801, %v3794
    %v4390 = vpack.c.b16 %v3802, %v3795
    %v4391 = vpack.c.b16 %v3803, %v3796
    %v4392 = vpack.c.b16 %v3804, %v3797
    %v4393 = vpack.c.b16 %v3805, %v3798
    %v4394 = vpack.c.b16 %v3813, %v3806
    %v4395 = vpack.c.b16 %v3814, %v3807
    %v4396 = vpack.c.b16 %v3815, %v3808
    %v4397 = vpack.c.b16 %v3816, %v3809
    %v4398 = vpack.c.b16 %v3817, %v3810
    %v4399 = vpack.c.b16 %v3818, %v3811
    %v4400 = vpack.c.b16 %v3819, %v3812
    %v4401 = vpack.c.b16 %v3827, %v3820
    %v4402 = vpack.c.b16 %v3828, %v3821
    %v4403 = vpack.c.b16 %v3829, %v3822
    %v4404 = vpack.c.b16 %v3830, %v3823
    %v4405 = vpack.c.b16 %v3831, %v3824
    %v4406 = vpack.c.b16 %v3832, %v3825
    %v4407 = vpack.c.b16 %v3833, %v3826
    %v4408 = vpack.c.b16 %v3841, %v3834
    %v4409 = vpack.c.b16 %v3842, %v3835
    %v4410 = vpack.c.b16 %v3843, %v3836
    %v4411 = vpack.c.b16 %v3844, %v3837
    %v4412 = vpack.c.b16 %v3845, %v3838
    %v4413 = vpack.c.b16 %v3846, %v3839
    %v4414 = vpack.c.b16 %v3847, %v3840
    %v4415 = vpack.c.b16 %v3855, %v3848
    %v4416 = vpack.c.b16 %v3856, %v3849
    %v4417 = vpack.c.b16 %v3857, %v3850
    %v4418 = vpack.c.b16 %v3858, %v3851
    %v4419 = vpack.c.b16 %v3859, %v3852
    %v4420 = vpack.c.b16 %v3860, %v3853
    %v4421 = vpack.c.b16 %v3861, %v3854
    %v4422 = vpack.c.b16 %v3869, %v3862
    %v4423 = vpack.c.b16 %v3870, %v3863
    %v4424 = vpack.c.b16 %v3871, %v3864
    %v4425 = vpack.c.b16 %v3872, %v3865
    %v4426 = vpack.c.b16 %v3873, %v3866
    %v4427 = vpack.c.b16 %v3874, %v3867
    %v4428 = vpack.c.b16 %v3875, %v3868
    %v4429 = vpack.c.b16 %v3883, %v3876
    %v4430 = vpack.c.b16 %v3884, %v3877
    %v4431 = vpack.c.b16 %v3885, %v3878
    %v4432 = vpack.c.b16 %v3886, %v3879
    %v4433 = vpack.c.b16 %v3887, %v3880
    %v4434 = vpack.c.b16 %v3888, %v3881
    %v4435 = vpack.c.b16 %v3889, %v3882
    %v4436 = vpack.c.b16 %v3897, %v3890
    %v4437 = vpack.c.b16 %v3898, %v3891
    %v4438 = vpack.c.b16 %v3899, %v3892
    %v4439 = vpack.c.b16 %v3900, %v3893
    %v4440 = vpack.c.b16 %v3901, %v3894
    %v4441 = vpack.c.b16 %v3902, %v3895
    %v4442 = vpack.c.b16 %v3903, %v3896
    %v4443 = vpack.c.b16 %v3911, %v3904
    %v4444 = vpack.c.b16 %v3912, %v3905
    %v4445 = vpack.c.b16 %v3913, %v3906
    %v4446 = vpack.c.b16 %v3914, %v3907
    %v4447 = vpack.c.b16 %v3915, %v3908
    %v4448 = vpack.c.b16 %v3916, %v3909
    %v4449 = vpack.c.b16 %v3917, %v3910
    %v4450 = vpack.c.b16 %v3925, %v3918
    %v4451 = vpack.c.b16 %v3926, %v3919
    %v4452 = vpack.c.b16 %v3927, %v3920
    %v4453 = vpack.c.b16 %v3928, %v3921
    %v4454 = vpack.c.b16 %v3929, %v3922
    %v4455 = vpack.c.b16 %v3930, %v3923
    %v4456 = vpack.c.b16 %v3931, %v3924
    %v4457 = vpack.c.b16 %v3939, %v3932
    %v4458 = vpack.c.b16 %v3940, %v3933
    %v4459 = vpack.c.b16 %v3941, %v3934
    %v4460 = vpack.c.b16 %v3942, %v3935
    %v4461 = vpack.c.b16 %v3943, %v3936
    %v4462 = vpack.c.b16 %v3944, %v3937
    %v4463 = vpack.c.b16 %v3945, %v3938
    %v4464 = vpack.c.b16 %v3953, %v3946
    %v4465 = vpack.c.b16 %v3954, %v3947
    %v4466 = vpack.c.b16 %v3955, %v3948
    %v4467 = vpack.c.b16 %v3956, %v3949
    %v4468 = vpack.c.b16 %v3957, %v3950
    %v4469 = vpack.c.b16 %v3958, %v3951
    %v4470 = vpack.c.b16 %v3959, %v3952
    %v4471 = vpack.c.b16 %v3967, %v3960
    %v4472 = vpack.c.b16 %v3968, %v3961
    %v4473 = vpack.c.b16 %v3969, %v3962
    %v4474 = vpack.c.b16 %v3970, %v3963
    %v4475 = vpack.c.b16 %v3971, %v3964
    %v4476 = vpack.c.b16 %v3972, %v3965
    %v4477 = vpack.c.b16 %v3973, %v3966
    %v4478 = vpack.c.b16 %v3981, %v3974
    %v4479 = vpack.c.b16 %v3982, %v3975
    %v4480 = vpack.c.b16 %v3983, %v3976
    %v4481 = vpack.c.b16 %v3984, %v3977
    %v4482 = vpack.c.b16 %v3985, %v3978
    %v4483 = vpack.c.b16 %v3986, %v3979
    %v4484 = vpack.c.b16 %v3987, %v3980
    %v4485 = vpack.c.b16 %v3995, %v3988
    %v4486 = vpack.c.b16 %v3996, %v3989
    %v4487 = vpack.c.b16 %v3997, %v3990
    %v4488 = vpack.c.b16 %v3998, %v3991
    %v4489 = vpack.c.b16 %v3999, %v3992
    %v4490 = vpack.c.b16 %v4000, %v3993
    %v4491 = vpack.c.b16 %v4001, %v3994
    %v4492 = vpack.c.b16 %v4009, %v4002
    %v4493 = vpack.c.b16 %v4010, %v4003
    %v4494 = vpack.c.b16 %v4011, %v4004
    %v4495 = vpack.c.b16 %v4012, %v4005
    %v4496 = vpack.c.b16 %v4013, %v4006
    %v4497 = vpack.c.b16 %v4014, %v4007
    %v4498 = vpack.c.b16 %v4015, %v4008
    %v4499 = vpack.c.b16 %v4023, %v4016
    %v4500 = vpack.c.b16 %v4024, %v4017
    %v4501 = vpack.c.b16 %v4025, %v4018
    %v4502 = vpack.c.b16 %v4026, %v4019
    %v4503 = vpack.c.b16 %v4027, %v4020
    %v4504 = vpack.c.b16 %v4028, %v4021
    %v4505 = vpack.c.b16 %v4029, %v4022
    %v4506 = vpack.c.b16 %v4037, %v4030
    %v4507 = vpack.c.b16 %v4038, %v4031
    %v4508 = vpack.c.b16 %v4039, %v4032
    %v4509 = vpack.c.b16 %v4040, %v4033
    %v4510 = vpack.c.b16 %v4041, %v4034
    %v4511 = vpack.c.b16 %v4042, %v4035
    %v4512 = vpack.c.b16 %v4043, %v4036
    %v4513 = vpack.c.b16 %v4051, %v4044
    %v4514 = vpack.c.b16 %v4052, %v4045
    %v4515 = vpack.c.b16 %v4053, %v4046
    %v4516 = vpack.c.b16 %v4054, %v4047
    %v4517 = vpack.c.b16 %v4055, %v4048
    %v4518 = vpack.c.b16 %v4056, %v4049
    %v4519 = vpack.c.b16 %v4057, %v4050
    %v4520 = vpack.c.b16 %v4065, %v4058
    %v4521 = vpack.c.b16 %v4066, %v4059
    %v4522 = vpack.c.b16 %v4067, %v4060
    %v4523 = vpack.c.b16 %v4068, %v4061
    %v4524 = vpack.c.b16 %v4069, %v4062
    %v4525 = vpack.c.b16 %v4070, %v4063
    %v4526 = vpack.c.b16 %v4071, %v4064
    %v4527 = vpack.c.b16 %v4079, %v4072
    %v4528 = vpack.c.b16 %v4080, %v4073
    %v4529 = vpack.c.b16 %v4081, %v4074
    %v4530 = vpack.c.b16 %v4082, %v4075
    %v4531 = vpack.c.b16 %v4083, %v4076
    %v4532 = vpack.c.b16 %v4084, %v4077
    %v4533 = vpack.c.b16 %v4085, %v4078
    %v4534 = vpack.c.b16 %v4093, %v4086
    %v4535 = vpack.c.b16 %v4094, %v4087
    %v4536 = vpack.c.b16 %v4095, %v4088
    %v4537 = vpack.c.b16 %v4096, %v4089
    %v4538 = vpack.c.b16 %v4097, %v4090
    %v4539 = vpack.c.b16 %v4098, %v4091
    %v4540 = vpack.c.b16 %v4099, %v4092
    %v4541 = vpack.c.b16 %v4107, %v4100
    %v4542 = vpack.c.b16 %v4108, %v4101
    %v4543 = vpack.c.b16 %v4109, %v4102
    %v4544 = vpack.c.b16 %v4110, %v4103
    %v4545 = vpack.c.b16 %v4111, %v4104
    %v4546 = vpack.c.b16 %v4112, %v4105
    %v4547 = vpack.c.b16 %v4113, %v4106
    %v4548 = vpack.c.b16 %v4121, %v4114
    %v4549 = vpack.c.b16 %v4122, %v4115
    %v4550 = vpack.c.b16 %v4123, %v4116
    %v4551 = vpack.c.b16 %v4124, %v4117
    %v4552 = vpack.c.b16 %v4125, %v4118
    %v4553 = vpack.c.b16 %v4126, %v4119
    %v4554 = vpack.c.b16 %v4127, %v4120
    %v4555 = vpack.c.b16 %v4135, %v4128
    %v4556 = vpack.c.b16 %v4136, %v4129
    %v4557 = vpack.c.b16 %v4137, %v4130
    %v4558 = vpack.c.b16 %v4138, %v4131
    %v4559 = vpack.c.b16 %v4139, %v4132
    %v4560 = vpack.c.b16 %v4140, %v4133
    %v4561 = vpack.c.b16 %v4141, %v4134
    %v4562 = vpack.c.b16 %v4149, %v4142
    %v4563 = vpack.c.b16 %v4150, %v4143
    %v4564 = vpack.c.b16 %v4151, %v4144
    %v4565 = vpack.c.b16 %v4152, %v4145
    %v4566 = vpack.c.b16 %v4153, %v4146
    %v4567 = vpack.c.b16 %v4154, %v4147
    %v4568 = vpack.c.b16 %v4155, %v4148
    %v4569 = vpack.c.b16 %v4163, %v4156
    %v4570 = vpack.c.b16 %v4164, %v4157
    %v4571 = vpack.c.b16 %v4165, %v4158
    %v4572 = vpack.c.b16 %v4166, %v4159
    %v4573 = vpack.c.b16 %v4167, %v4160
    %v4574 = vpack.c.b16 %v4168, %v4161
    %v4575 = vpack.c.b16 %v4169, %v4162
    %v4576 = vpack.c.b16 %v4177, %v4170
    %v4577 = vpack.c.b16 %v4178, %v4171
    %v4578 = vpack.c.b16 %v4179, %v4172
    %v4579 = vpack.c.b16 %v4180, %v4173
    %v4580 = vpack.c.b16 %v4181, %v4174
    %v4581 = vpack.c.b16 %v4182, %v4175
    %v4582 = vpack.c.b16 %v4183, %v4176
    %v4583 = vpack.c.b16 %v4191, %v4184
    %v4584 = vpack.c.b16 %v4192, %v4185
    %v4585 = vpack.c.b16 %v4193, %v4186
    %v4586 = vpack.c.b16 %v4194, %v4187
    %v4587 = vpack.c.b16 %v4195, %v4188
    %v4588 = vpack.c.b16 %v4196, %v4189
    %v4589 = vpack.c.b16 %v4197, %v4190
    %v4590 = vpack.c.b16 %v4205, %v4198
    %v4591 = vpack.c.b16 %v4206, %v4199
    %v4592 = vpack.c.b16 %v4207, %v4200
    %v4593 = vpack.c.b16 %v4208, %v4201
    %v4594 = vpack.c.b16 %v4209, %v4202
    %v4595 = vpack.c.b16 %v4210, %v4203
    %v4596 = vpack.c.b16 %v4211, %v4204
    %v4597 = vpack.c.b16 %v4219, %v4212
    %v4598 = vpack.c.b16 %v4220, %v4213
    %v4599 = vpack.c.b16 %v4221, %v4214
    %v4600 = vpack.c.b16 %v4222, %v4215
    %v4601 = vpack.c.b16 %v4223, %v4216
    %v4602 = vpack.c.b16 %v4224, %v4217
    %v4603 = vpack.c.b16 %v4225, %v4218
    %v4604 = vpack.c.b16 %v4233, %v4226
    %v4605 = vpack.c.b16 %v4234, %v4227
    %v4606 = vpack.c.b16 %v4235, %v4228
    %v4607 = vpack.c.b16 %v4236, %v4229
    %v4608 = vpack.c.b16 %v4237, %v4230
    %v4609 = vpack.c.b16 %v4238, %v4231
    %v4610 = vpack.c.b16 %v4239, %v4232
    %v4611 = vpack.c.b16 %v4247, %v4240
    %v4612 = vpack.c.b16 %v4248, %v4241
    %v4613 = vpack.c.b16 %v4249, %v4242
    %v4614 = vpack.c.b16 %v4250, %v4243
    %v4615 = vpack.c.b16 %v4251, %v4244
    %v4616 = vpack.c.b16 %v4252, %v4245
    %v4617 = vpack.c.b16 %v4253, %v4246
    %v4618 = vpack.c.b16 %v4261, %v4254
    %v4619 = vpack.c.b16 %v4262, %v4255
    %v4620 = vpack.c.b16 %v4263, %v4256
    %v4621 = vpack.c.b16 %v4264, %v4257
    %v4622 = vpack.c.b16 %v4265, %v4258
    %v4623 = vpack.c.b16 %v4266, %v4259
    %v4624 = vpack.c.b16 %v4267, %v4260
    %v4625 = vpack.c.b16 %v4275, %v4268
    %v4626 = vpack.c.b16 %v4276, %v4269
    %v4627 = vpack.c.b16 %v4277, %v4270
    %v4628 = vpack.c.b16 %v4278, %v4271
    %v4629 = vpack.c.b16 %v4279, %v4272
    %v4630 = vpack.c.b16 %v4280, %v4273
    %v4631 = vpack.c.b16 %v4281, %v4274
    %v4632 = vpack.c.b16 %v4289, %v4282
    %v4633 = vpack.c.b16 %v4290, %v4283
    %v4634 = vpack.c.b16 %v4291, %v4284
    %v4635 = vpack.c.b16 %v4292, %v4285
    %v4636 = vpack.c.b16 %v4293, %v4286
    %v4637 = vpack.c.b16 %v4294, %v4287
    %v4638 = vpack.c.b16 %v4295, %v4288
    %v4639 = vpack.c.b16 %v4303, %v4296
    %v4640 = vpack.c.b16 %v4304, %v4297
    %v4641 = vpack.c.b16 %v4305, %v4298
    %v4642 = vpack.c.b16 %v4306, %v4299
    %v4643 = vpack.c.b16 %v4307, %v4300
    %v4644 = vpack.c.b16 %v4308, %v4301
    %v4645 = vpack.c.b16 %v4309, %v4302
    %4982 = vmatprep.subr.bf16.mxu0 %v4311
    %4983 = vmatpush1.bf16.msra.mxu0 %v4310
    %4984 = vmatprep.subr.bf16.mxu0 %v4318
    %4985 = vmatpush1.bf16.msra.mxu0 %v4317
    %4986 = vmatprep.subr.bf16.mxu0 %v4325
    %4987 = vmatpush1.bf16.msra.mxu0 %v4324
    %4988 = vmatprep.subr.bf16.mxu0 %v4332
    %4989 = vmatpush1.bf16.msra.mxu0 %v4331
    %4990 = vmatprep.subr.bf16.mxu0 %v4339
    %4991 = vmatpush1.bf16.msra.mxu0 %v4338
    %4992 = vmatprep.subr.bf16.mxu0 %v4346
    %4993 = vmatpush1.bf16.msra.mxu0 %v4345
    %4994 = vmatprep.subr.bf16.mxu0 %v4353
    %4995 = vmatpush1.bf16.msra.mxu0 %v4352
    %4996 = vmatprep.subr.bf16.mxu0 %v4360
    %4997 = vmatpush1.bf16.msra.mxu0 %v4359
    %4998 = vmatprep.subr.bf16.mxu0 %v4367
    %4999 = vmatpush1.bf16.msra.mxu0 %v4366
    %5000 = vmatprep.subr.bf16.mxu0 %v4374
    %5001 = vmatpush1.bf16.msra.mxu0 %v4373
    %5002 = vmatprep.subr.bf16.mxu0 %v4381
    %5003 = vmatpush1.bf16.msra.mxu0 %v4380
    %5004 = vmatprep.subr.bf16.mxu0 %v4388
    %5005 = vmatpush1.bf16.msra.mxu0 %v4387
    %5006 = vmatprep.subr.bf16.mxu0 %v4395
    %5007 = vmatpush1.bf16.msra.mxu0 %v4394
    %5008 = vmatprep.subr.bf16.mxu0 %v4402
    %5009 = vmatpush1.bf16.msra.mxu0 %v4401
    %5010 = vmatprep.subr.bf16.mxu0 %v4409
    %5011 = vmatpush1.bf16.msra.mxu0 %v4408
    %5012 = vmatprep.subr.bf16.mxu0 %v4416
    %5013 = vmatpush1.bf16.msra.mxu0 %v4415
    %5014 = vmatprep.mubr.bf16.mxu0 %v2335
    %5015 = vmatmul.mubr.bf16.gmra.mrb[0].mxu0 %v2334
    %v5016 = vpop.f32.mrb[0].mxu0
    %v5017 = vadd.f32 %v3119, %v5016
    %v5018 = vpop.f32.mrb[0].mxu0
    %v5019 = vadd.f32 %v3121, %v5018
    %v5020 = vpop.f32.mrb[0].mxu0
    %v5021 = vadd.f32 %v3123, %v5020
    %v5022 = vpop.f32.mrb[0].mxu0
    %v5023 = vadd.f32 %v3125, %v5022
    %5024 = vdwg.mxu0
    %5025 = vmatprep.subr.bf16.mxu0 %v4423
    %5026 = vmatpush1.bf16.msra.mxu0 %v4422
    %5027 = vmatprep.subr.bf16.mxu0 %v4430
    %5028 = vmatpush1.bf16.msra.mxu0 %v4429
    %5029 = vmatprep.subr.bf16.mxu0 %v4437
    %5030 = vmatpush1.bf16.msra.mxu0 %v4436
    %5031 = vmatprep.subr.bf16.mxu0 %v4444
    %5032 = vmatpush1.bf16.msra.mxu0 %v4443
    %5033 = vmatprep.subr.bf16.mxu0 %v4451
    %5034 = vmatpush1.bf16.msra.mxu0 %v4450
    %5035 = vmatprep.subr.bf16.mxu0 %v4458
    %5036 = vmatpush1.bf16.msra.mxu0 %v4457
    %5037 = vmatprep.subr.bf16.mxu0 %v4465
    %5038 = vmatpush1.bf16.msra.mxu0 %v4464
    %5039 = vmatprep.subr.bf16.mxu0 %v4472
    %5040 = vmatpush1.bf16.msra.mxu0 %v4471
    %5041 = vmatprep.subr.bf16.mxu0 %v4479
    %5042 = vmatpush1.bf16.msra.mxu0 %v4478
    %5043 = vmatprep.subr.bf16.mxu0 %v4486
    %5044 = vmatpush1.bf16.msra.mxu0 %v4485
    %5045 = vmatprep.subr.bf16.mxu0 %v4493
    %5046 = vmatpush1.bf16.msra.mxu0 %v4492
    %5047 = vmatprep.subr.bf16.mxu0 %v4500
    %5048 = vmatpush1.bf16.msra.mxu0 %v4499
    %5049 = vmatprep.subr.bf16.mxu0 %v4507
    %5050 = vmatpush1.bf16.msra.mxu0 %v4506
    %5051 = vmatprep.subr.bf16.mxu0 %v4514
    %5052 = vmatpush1.bf16.msra.mxu0 %v4513
    %5053 = vmatprep.subr.bf16.mxu0 %v4521
    %5054 = vmatpush1.bf16.msra.mxu0 %v4520
    %5055 = vmatprep.subr.bf16.mxu0 %v4528
    %5056 = vmatpush1.bf16.msra.mxu0 %v4527
    %5057 = vmatprep.mubr.bf16.mxu0 %v2337
    %5058 = vmatmul.mubr.bf16.gmra.mrb[0].mxu0 %v2336
    %v5059 = vpop.f32.mrb[0].mxu0
    %v5060 = vadd.f32 %v5017, %v5059
    %v5061 = vpop.f32.mrb[0].mxu0
    %v5062 = vadd.f32 %v5019, %v5061
    %v5063 = vpop.f32.mrb[0].mxu0
    %v5064 = vadd.f32 %v5021, %v5063
    %v5065 = vpop.f32.mrb[0].mxu0
    %v5066 = vadd.f32 %v5023, %v5065
    %5067 = vdwg.mxu0
    %5068 = vmatprep.subr.bf16.mxu0 %v4535
    %5069 = vmatpush1.bf16.msra.mxu0 %v4534
    %5070 = vmatprep.subr.bf16.mxu0 %v4542
    %5071 = vmatpush1.bf16.msra.mxu0 %v4541
    %5072 = vmatprep.subr.bf16.mxu0 %v4549
    %5073 = vmatpush1.bf16.msra.mxu0 %v4548
    %5074 = vmatprep.subr.bf16.mxu0 %v4556
    %5075 = vmatpush1.bf16.msra.mxu0 %v4555
    %5076 = vmatprep.subr.bf16.mxu0 %v4563
    %5077 = vmatpush1.bf16.msra.mxu0 %v4562
    %5078 = vmatprep.subr.bf16.mxu0 %v4570
    %5079 = vmatpush1.bf16.msra.mxu0 %v4569
    %5080 = vmatprep.subr.bf16.mxu0 %v4577
    %5081 = vmatpush1.bf16.msra.mxu0 %v4576
    %5082 = vmatprep.subr.bf16.mxu0 %v4584
    %5083 = vmatpush1.bf16.msra.mxu0 %v4583
    %5084 = vmatprep.subr.bf16.mxu0 %v4591
    %5085 = vmatpush1.bf16.msra.mxu0 %v4590
    %5086 = vmatprep.subr.bf16.mxu0 %v4598
    %5087 = vmatpush1.bf16.msra.mxu0 %v4597
    %5088 = vmatprep.subr.bf16.mxu0 %v4605
    %5089 = vmatpush1.bf16.msra.mxu0 %v4604
    %5090 = vmatprep.subr.bf16.mxu0 %v4612
    %5091 = vmatpush1.bf16.msra.mxu0 %v4611
    %5092 = vmatprep.subr.bf16.mxu0 %v4619
    %5093 = vmatpush1.bf16.msra.mxu0 %v4618
    %5094 = vmatprep.subr.bf16.mxu0 %v4626
    %5095 = vmatpush1.bf16.msra.mxu0 %v4625
    %5096 = vmatprep.subr.bf16.mxu0 %v4633
    %5097 = vmatpush1.bf16.msra.mxu0 %v4632
    %5098 = vmatprep.subr.bf16.mxu0 %v4640
    %5099 = vmatpush1.bf16.msra.mxu0 %v4639
    %5100 = vmatprep.mubr.bf16.mxu0 %v2339
    %5101 = vmatmul.mubr.bf16.gmra.mrb[0].mxu0 %v2338
    %v5102 = vpop.f32.mrb[0].mxu0
    %v5103 = vadd.f32 %v5060, %v5102
    %v5104 = vpop.f32.mrb[0].mxu0
    %v5105 = vadd.f32 %v5062, %v5104
    %v5106 = vpop.f32.mrb[0].mxu0
    %v5107 = vadd.f32 %v5064, %v5106
    %v5108 = vpop.f32.mrb[0].mxu0
    %v5109 = vadd.f32 %v5066, %v5108
    %5110 = vdwg.mxu0
    %5111 = vmatprep.subr.bf16.mxu0 %v4313
    %5112 = vmatpush1.bf16.msra.mxu0 %v4312
    %5113 = vmatprep.subr.bf16.mxu0 %v4320
    %5114 = vmatpush1.bf16.msra.mxu0 %v4319
    %5115 = vmatprep.subr.bf16.mxu0 %v4327
    %5116 = vmatpush1.bf16.msra.mxu0 %v4326
    %5117 = vmatprep.subr.bf16.mxu0 %v4334
    %5118 = vmatpush1.bf16.msra.mxu0 %v4333
    %5119 = vmatprep.subr.bf16.mxu0 %v4341
    %5120 = vmatpush1.bf16.msra.mxu0 %v4340
    %5121 = vmatprep.subr.bf16.mxu0 %v4348
    %5122 = vmatpush1.bf16.msra.mxu0 %v4347
    %5123 = vmatprep.subr.bf16.mxu0 %v4355
    %5124 = vmatpush1.bf16.msra.mxu0 %v4354
    %5125 = vmatprep.subr.bf16.mxu0 %v4362
    %5126 = vmatpush1.bf16.msra.mxu0 %v4361
    %5127 = vmatprep.subr.bf16.mxu0 %v4369
    %5128 = vmatpush1.bf16.msra.mxu0 %v4368
    %5129 = vmatprep.subr.bf16.mxu0 %v4376
    %5130 = vmatpush1.bf16.msra.mxu0 %v4375
    %5131 = vmatprep.subr.bf16.mxu0 %v4383
    %5132 = vmatpush1.bf16.msra.mxu0 %v4382
    %5133 = vmatprep.subr.bf16.mxu0 %v4390
    %5134 = vmatpush1.bf16.msra.mxu0 %v4389
    %5135 = vmatprep.subr.bf16.mxu0 %v4397
    %5136 = vmatpush1.bf16.msra.mxu0 %v4396
    %5137 = vmatprep.subr.bf16.mxu0 %v4404
    %5138 = vmatpush1.bf16.msra.mxu0 %v4403
    %5139 = vmatprep.subr.bf16.mxu0 %v4411
    %5140 = vmatpush1.bf16.msra.mxu0 %v4410
    %5141 = vmatprep.subr.bf16.mxu0 %v4418
    %5142 = vmatpush1.bf16.msra.mxu0 %v4417
    %5143 = vmatprep.mubr.bf16.mxu0 %v2335
    %5144 = vmatmul.mubr.bf16.gmra.mrb[0].mxu0 %v2334
    %v5145 = vpop.f32.mrb[0].mxu0
    %v5146 = vadd.f32 %v3162, %v5145
    %v5147 = vpop.f32.mrb[0].mxu0
    %v5148 = vadd.f32 %v3164, %v5147
    %v5149 = vpop.f32.mrb[0].mxu0
    %v5150 = vadd.f32 %v3166, %v5149
    %v5151 = vpop.f32.mrb[0].mxu0
    %v5152 = vadd.f32 %v3168, %v5151
    %5153 = vdwg.mxu0
    %5154 = vmatprep.subr.bf16.mxu0 %v4425
    %5155 = vmatpush1.bf16.msra.mxu0 %v4424
    %5156 = vmatprep.subr.bf16.mxu0 %v4432
    %5157 = vmatpush1.bf16.msra.mxu0 %v4431
    %5158 = vmatprep.subr.bf16.mxu0 %v4439
    %5159 = vmatpush1.bf16.msra.mxu0 %v4438
    %5160 = vmatprep.subr.bf16.mxu0 %v4446
    %5161 = vmatpush1.bf16.msra.mxu0 %v4445
    %5162 = vmatprep.subr.bf16.mxu0 %v4453
    %5163 = vmatpush1.bf16.msra.mxu0 %v4452
    %5164 = vmatprep.subr.bf16.mxu0 %v4460
    %5165 = vmatpush1.bf16.msra.mxu0 %v4459
    %5166 = vmatprep.subr.bf16.mxu0 %v4467
    %5167 = vmatpush1.bf16.msra.mxu0 %v4466
    %5168 = vmatprep.subr.bf16.mxu0 %v4474
    %5169 = vmatpush1.bf16.msra.mxu0 %v4473
    %5170 = vmatprep.subr.bf16.mxu0 %v4481
    %5171 = vmatpush1.bf16.msra.mxu0 %v4480
    %5172 = vmatprep.subr.bf16.mxu0 %v4488
    %5173 = vmatpush1.bf16.msra.mxu0 %v4487
    %5174 = vmatprep.subr.bf16.mxu0 %v4495
    %5175 = vmatpush1.bf16.msra.mxu0 %v4494
    %5176 = vmatprep.subr.bf16.mxu0 %v4502
    %5177 = vmatpush1.bf16.msra.mxu0 %v4501
    %5178 = vmatprep.subr.bf16.mxu0 %v4509
    %5179 = vmatpush1.bf16.msra.mxu0 %v4508
    %5180 = vmatprep.subr.bf16.mxu0 %v4516
    %5181 = vmatpush1.bf16.msra.mxu0 %v4515
    %5182 = vmatprep.subr.bf16.mxu0 %v4523
    %5183 = vmatpush1.bf16.msra.mxu0 %v4522
    %5184 = vmatprep.subr.bf16.mxu0 %v4530
    %5185 = vmatpush1.bf16.msra.mxu0 %v4529
    %5186 = vmatprep.mubr.bf16.mxu0 %v2337
    %5187 = vmatmul.mubr.bf16.gmra.mrb[0].mxu0 %v2336
    %v5188 = vpop.f32.mrb[0].mxu0
    %v5189 = vadd.f32 %v5146, %v5188
    %v5190 = vpop.f32.mrb[0].mxu0
    %v5191 = vadd.f32 %v5148, %v5190
    %v5192 = vpop.f32.mrb[0].mxu0
    %v5193 = vadd.f32 %v5150, %v5192
    %v5194 = vpop.f32.mrb[0].mxu0
    %v5195 = vadd.f32 %v5152, %v5194
    %5196 = vdwg.mxu0
    %5197 = vmatprep.subr.bf16.mxu0 %v4537
    %5198 = vmatpush1.bf16.msra.mxu0 %v4536
    %5199 = vmatprep.subr.bf16.mxu0 %v4544
    %5200 = vmatpush1.bf16.msra.mxu0 %v4543
    %5201 = vmatprep.subr.bf16.mxu0 %v4551
    %5202 = vmatpush1.bf16.msra.mxu0 %v4550
    %5203 = vmatprep.subr.bf16.mxu0 %v4558
    %5204 = vmatpush1.bf16.msra.mxu0 %v4557
    %5205 = vmatprep.subr.bf16.mxu0 %v4565
    %5206 = vmatpush1.bf16.msra.mxu0 %v4564
    %5207 = vmatprep.subr.bf16.mxu0 %v4572
    %5208 = vmatpush1.bf16.msra.mxu0 %v4571
    %5209 = vmatprep.subr.bf16.mxu0 %v4579
    %5210 = vmatpush1.bf16.msra.mxu0 %v4578
    %5211 = vmatprep.subr.bf16.mxu0 %v4586
    %5212 = vmatpush1.bf16.msra.mxu0 %v4585
    %5213 = vmatprep.subr.bf16.mxu0 %v4593
    %5214 = vmatpush1.bf16.msra.mxu0 %v4592
    %5215 = vmatprep.subr.bf16.mxu0 %v4600
    %5216 = vmatpush1.bf16.msra.mxu0 %v4599
    %5217 = vmatprep.subr.bf16.mxu0 %v4607
    %5218 = vmatpush1.bf16.msra.mxu0 %v4606
    %5219 = vmatprep.subr.bf16.mxu0 %v4614
    %5220 = vmatpush1.bf16.msra.mxu0 %v4613
    %5221 = vmatprep.subr.bf16.mxu0 %v4621
    %5222 = vmatpush1.bf16.msra.mxu0 %v4620
    %5223 = vmatprep.subr.bf16.mxu0 %v4628
    %5224 = vmatpush1.bf16.msra.mxu0 %v4627
    %5225 = vmatprep.subr.bf16.mxu0 %v4635
    %5226 = vmatpush1.bf16.msra.mxu0 %v4634
    %5227 = vmatprep.subr.bf16.mxu0 %v4642
    %5228 = vmatpush1.bf16.msra.mxu0 %v4641
    %5229 = vmatprep.mubr.bf16.mxu0 %v2339
    %5230 = vmatmul.mubr.bf16.gmra.mrb[0].mxu0 %v2338
    %v5231 = vpop.f32.mrb[0].mxu0
    %v5232 = vadd.f32 %v5189, %v5231
    %v5233 = vpop.f32.mrb[0].mxu0
    %v5234 = vadd.f32 %v5191, %v5233
    %v5235 = vpop.f32.mrb[0].mxu0
    %v5236 = vadd.f32 %v5193, %v5235
    %v5237 = vpop.f32.mrb[0].mxu0
    %v5238 = vadd.f32 %v5195, %v5237
    %5239 = vdwg.mxu0
    %5240 = vmatprep.subr.bf16.mxu0 %v4315
    %5241 = vmatpush1.bf16.msra.mxu0 %v4314
    %5242 = vmatprep.subr.bf16.mxu0 %v4322
    %5243 = vmatpush1.bf16.msra.mxu0 %v4321
    %5244 = vmatprep.subr.bf16.mxu0 %v4329
    %5245 = vmatpush1.bf16.msra.mxu0 %v4328
    %5246 = vmatprep.subr.bf16.mxu0 %v4336
    %5247 = vmatpush1.bf16.msra.mxu0 %v4335
    %5248 = vmatprep.subr.bf16.mxu0 %v4343
    %5249 = vmatpush1.bf16.msra.mxu0 %v4342
    %5250 = vmatprep.subr.bf16.mxu0 %v4350
    %5251 = vmatpush1.bf16.msra.mxu0 %v4349
    %5252 = vmatprep.subr.bf16.mxu0 %v4357
    %5253 = vmatpush1.bf16.msra.mxu0 %v4356
    %5254 = vmatprep.subr.bf16.mxu0 %v4364
    %5255 = vmatpush1.bf16.msra.mxu0 %v4363
    %5256 = vmatprep.subr.bf16.mxu0 %v4371
    %5257 = vmatpush1.bf16.msra.mxu0 %v4370
    %5258 = vmatprep.subr.bf16.mxu0 %v4378
    %5259 = vmatpush1.bf16.msra.mxu0 %v4377
    %5260 = vmatprep.subr.bf16.mxu0 %v4385
    %5261 = vmatpush1.bf16.msra.mxu0 %v4384
    %5262 = vmatprep.subr.bf16.mxu0 %v4392
    %5263 = vmatpush1.bf16.msra.mxu0 %v4391
    %5264 = vmatprep.subr.bf16.mxu0 %v4399
    %5265 = vmatpush1.bf16.msra.mxu0 %v4398
    %5266 = vmatprep.subr.bf16.mxu0 %v4406
    %5267 = vmatpush1.bf16.msra.mxu0 %v4405
    %5268 = vmatprep.subr.bf16.mxu0 %v4413
    %5269 = vmatpush1.bf16.msra.mxu0 %v4412
    %5270 = vmatprep.subr.bf16.mxu0 %v4420
    %5271 = vmatpush1.bf16.msra.mxu0 %v4419
    %5272 = vmatprep.mubr.bf16.mxu0 %v2335
    %5273 = vmatmul.mubr.bf16.gmra.mrb[0].mxu0 %v2334
    %v5274 = vpop.f32.mrb[0].mxu0
    %v5275 = vadd.f32 %v3205, %v5274
    %v5276 = vpop.f32.mrb[0].mxu0
    %v5277 = vadd.f32 %v3207, %v5276
    %v5278 = vpop.f32.mrb[0].mxu0
    %v5279 = vadd.f32 %v3209, %v5278
    %v5280 = vpop.f32.mrb[0].mxu0
    %v5281 = vadd.f32 %v3211, %v5280
    %5282 = vdwg.mxu0
    %5283 = vmatprep.subr.bf16.mxu0 %v4427
    %5284 = vmatpush1.bf16.msra.mxu0 %v4426
    %5285 = vmatprep.subr.bf16.mxu0 %v4434
    %5286 = vmatpush1.bf16.msra.mxu0 %v4433
    %5287 = vmatprep.subr.bf16.mxu0 %v4441
    %5288 = vmatpush1.bf16.msra.mxu0 %v4440
    %5289 = vmatprep.subr.bf16.mxu0 %v4448
    %5290 = vmatpush1.bf16.msra.mxu0 %v4447
    %5291 = vmatprep.subr.bf16.mxu0 %v4455
    %5292 = vmatpush1.bf16.msra.mxu0 %v4454
    %5293 = vmatprep.subr.bf16.mxu0 %v4462
    %5294 = vmatpush1.bf16.msra.mxu0 %v4461
    %5295 = vmatprep.subr.bf16.mxu0 %v4469
    %5296 = vmatpush1.bf16.msra.mxu0 %v4468
    %5297 = vmatprep.subr.bf16.mxu0 %v4476
    %5298 = vmatpush1.bf16.msra.mxu0 %v4475
    %5299 = vmatprep.subr.bf16.mxu0 %v4483
    %5300 = vmatpush1.bf16.msra.mxu0 %v4482
    %5301 = vmatprep.subr.bf16.mxu0 %v4490
    %5302 = vmatpush1.bf16.msra.mxu0 %v4489
    %5303 = vmatprep.subr.bf16.mxu0 %v4497
    %5304 = vmatpush1.bf16.msra.mxu0 %v4496
    %5305 = vmatprep.subr.bf16.mxu0 %v4504
    %5306 = vmatpush1.bf16.msra.mxu0 %v4503
    %5307 = vmatprep.subr.bf16.mxu0 %v4511
    %5308 = vmatpush1.bf16.msra.mxu0 %v4510
    %5309 = vmatprep.subr.bf16.mxu0 %v4518
    %5310 = vmatpush1.bf16.msra.mxu0 %v4517
    %5311 = vmatprep.subr.bf16.mxu0 %v4525
    %5312 = vmatpush1.bf16.msra.mxu0 %v4524
    %5313 = vmatprep.subr.bf16.mxu0 %v4532
    %5314 = vmatpush1.bf16.msra.mxu0 %v4531
    %5315 = vmatprep.mubr.bf16.mxu0 %v2337
    %5316 = vmatmul.mubr.bf16.gmra.mrb[0].mxu0 %v2336
    %v5317 = vpop.f32.mrb[0].mxu0
    %v5318 = vadd.f32 %v5275, %v5317
    %v5319 = vpop.f32.mrb[0].mxu0
    %v5320 = vadd.f32 %v5277, %v5319
    %v5321 = vpop.f32.mrb[0].mxu0
    %v5322 = vadd.f32 %v5279, %v5321
    %v5323 = vpop.f32.mrb[0].mxu0
    %v5324 = vadd.f32 %v5281, %v5323
    %5325 = vdwg.mxu0
    %5326 = vmatprep.subr.bf16.mxu0 %v4539
    %5327 = vmatpush1.bf16.msra.mxu0 %v4538
    %5328 = vmatprep.subr.bf16.mxu0 %v4546
    %5329 = vmatpush1.bf16.msra.mxu0 %v4545
    %5330 = vmatprep.subr.bf16.mxu0 %v4553
    %5331 = vmatpush1.bf16.msra.mxu0 %v4552
    %5332 = vmatprep.subr.bf16.mxu0 %v4560
    %5333 = vmatpush1.bf16.msra.mxu0 %v4559
    %5334 = vmatprep.subr.bf16.mxu0 %v4567
    %5335 = vmatpush1.bf16.msra.mxu0 %v4566
    %5336 = vmatprep.subr.bf16.mxu0 %v4574
    %5337 = vmatpush1.bf16.msra.mxu0 %v4573
    %5338 = vmatprep.subr.bf16.mxu0 %v4581
    %5339 = vmatpush1.bf16.msra.mxu0 %v4580
    %5340 = vmatprep.subr.bf16.mxu0 %v4588
    %5341 = vmatpush1.bf16.msra.mxu0 %v4587
    %5342 = vmatprep.subr.bf16.mxu0 %v4595
    %5343 = vmatpush1.bf16.msra.mxu0 %v4594
    %5344 = vmatprep.subr.bf16.mxu0 %v4602
    %5345 = vmatpush1.bf16.msra.mxu0 %v4601
    %5346 = vmatprep.subr.bf16.mxu0 %v4609
    %5347 = vmatpush1.bf16.msra.mxu0 %v4608
    %5348 = vmatprep.subr.bf16.mxu0 %v4616
    %5349 = vmatpush1.bf16.msra.mxu0 %v4615
    %5350 = vmatprep.subr.bf16.mxu0 %v4623
    %5351 = vmatpush1.bf16.msra.mxu0 %v4622
    %5352 = vmatprep.subr.bf16.mxu0 %v4630
    %5353 = vmatpush1.bf16.msra.mxu0 %v4629
    %5354 = vmatprep.subr.bf16.mxu0 %v4637
    %5355 = vmatpush1.bf16.msra.mxu0 %v4636
    %5356 = vmatprep.subr.bf16.mxu0 %v4644
    %5357 = vmatpush1.bf16.msra.mxu0 %v4643
    %5358 = vmatprep.mubr.bf16.mxu0 %v2339
    %5359 = vmatmul.mubr.bf16.gmra.mrb[0].mxu0 %v2338
    %v5360 = vpop.f32.mrb[0].mxu0
    %v5361 = vadd.f32 %v5318, %v5360
    %v5362 = vpop.f32.mrb[0].mxu0
    %v5363 = vadd.f32 %v5320, %v5362
    %v5364 = vpop.f32.mrb[0].mxu0
    %v5365 = vadd.f32 %v5322, %v5364
    %v5366 = vpop.f32.mrb[0].mxu0
    %v5367 = vadd.f32 %v5324, %v5366
    %5368 = vdwg.mxu0
    %5369 = vmatprep.subr.bf16.mxu0 0
    %5370 = vmatpush1.bf16.msra.mxu0 %v4316
    %5371 = vmatprep.subr.bf16.mxu0 0
    %5372 = vmatpush1.bf16.msra.mxu0 %v4323
    %5373 = vmatprep.subr.bf16.mxu0 0
    %5374 = vmatpush1.bf16.msra.mxu0 %v4330
    %5375 = vmatprep.subr.bf16.mxu0 0
    %5376 = vmatpush1.bf16.msra.mxu0 %v4337
    %5377 = vmatprep.subr.bf16.mxu0 0
    %5378 = vmatpush1.bf16.msra.mxu0 %v4344
    %5379 = vmatprep.subr.bf16.mxu0 0
    %5380 = vmatpush1.bf16.msra.mxu0 %v4351
    %5381 = vmatprep.subr.bf16.mxu0 0
    %5382 = vmatpush1.bf16.msra.mxu0 %v4358
    %5383 = vmatprep.subr.bf16.mxu0 0
    %5384 = vmatpush1.bf16.msra.mxu0 %v4365
    %5385 = vmatprep.subr.bf16.mxu0 0
    %5386 = vmatpush1.bf16.msra.mxu0 %v4372
    %5387 = vmatprep.subr.bf16.mxu0 0
    %5388 = vmatpush1.bf16.msra.mxu0 %v4379
    %5389 = vmatprep.subr.bf16.mxu0 0
    %5390 = vmatpush1.bf16.msra.mxu0 %v4386
    %5391 = vmatprep.subr.bf16.mxu0 0
    %5392 = vmatpush1.bf16.msra.mxu0 %v4393
    %5393 = vmatprep.subr.bf16.mxu0 0
    %5394 = vmatpush1.bf16.msra.mxu0 %v4400
    %5395 = vmatprep.subr.bf16.mxu0 0
    %5396 = vmatpush1.bf16.msra.mxu0 %v4407
    %5397 = vmatprep.subr.bf16.mxu0 0
    %5398 = vmatpush1.bf16.msra.mxu0 %v4414
    %5399 = vmatprep.subr.bf16.mxu0 0
    %5400 = vmatpush1.bf16.msra.mxu0 %v4421
    %5401 = vmatprep.mubr.bf16.mxu0 %v2335
    %5402 = vmatmul.mubr.bf16.gmra.mrb[0].mxu0 %v2334
    %v5403 = vpop.f32.mrb[0].mxu0
    %v5404 = vadd.f32 %v3248, %v5403
    %v5405 = vpop.f32.mrb[0].mxu0
    %v5406 = vpop.f32.mrb[0].mxu0
    %v5407 = vadd.f32 %v3251, %v5406
    %v5408 = vpop.f32.mrb[0].mxu0
    %5409 = vdwg.mxu0
    %5410 = vmatprep.subr.bf16.mxu0 0
    %5411 = vmatpush1.bf16.msra.mxu0 %v4428
    %5412 = vmatprep.subr.bf16.mxu0 0
    %5413 = vmatpush1.bf16.msra.mxu0 %v4435
    %5414 = vmatprep.subr.bf16.mxu0 0
    %5415 = vmatpush1.bf16.msra.mxu0 %v4442
    %5416 = vmatprep.subr.bf16.mxu0 0
    %5417 = vmatpush1.bf16.msra.mxu0 %v4449
    %5418 = vmatprep.subr.bf16.mxu0 0
    %5419 = vmatpush1.bf16.msra.mxu0 %v4456
    %5420 = vmatprep.subr.bf16.mxu0 0
    %5421 = vmatpush1.bf16.msra.mxu0 %v4463
    %5422 = vmatprep.subr.bf16.mxu0 0
    %5423 = vmatpush1.bf16.msra.mxu0 %v4470
    %5424 = vmatprep.subr.bf16.mxu0 0
    %5425 = vmatpush1.bf16.msra.mxu0 %v4477
    %5426 = vmatprep.subr.bf16.mxu0 0
    %5427 = vmatpush1.bf16.msra.mxu0 %v4484
    %5428 = vmatprep.subr.bf16.mxu0 0
    %5429 = vmatpush1.bf16.msra.mxu0 %v4491
    %5430 = vmatprep.subr.bf16.mxu0 0
    %5431 = vmatpush1.bf16.msra.mxu0 %v4498
    %5432 = vmatprep.subr.bf16.mxu0 0
    %5433 = vmatpush1.bf16.msra.mxu0 %v4505
    %5434 = vmatprep.subr.bf16.mxu0 0
    %5435 = vmatpush1.bf16.msra.mxu0 %v4512
    %5436 = vmatprep.subr.bf16.mxu0 0
    %5437 = vmatpush1.bf16.msra.mxu0 %v4519
    %5438 = vmatprep.subr.bf16.mxu0 0
    %5439 = vmatpush1.bf16.msra.mxu0 %v4526
    %5440 = vmatprep.subr.bf16.mxu0 0
    %5441 = vmatpush1.bf16.msra.mxu0 %v4533
    %5442 = vmatprep.mubr.bf16.mxu0 %v2337
    %5443 = vmatmul.mubr.bf16.gmra.mrb[0].mxu0 %v2336
    %v5444 = vpop.f32.mrb[0].mxu0
    %v5445 = vadd.f32 %v5404, %v5444
    %v5446 = vpop.f32.mrb[0].mxu0
    %v5447 = vpop.f32.mrb[0].mxu0
    %v5448 = vadd.f32 %v5407, %v5447
    %v5449 = vpop.f32.mrb[0].mxu0
    %5450 = vdwg.mxu0
    %5451 = vmatprep.subr.bf16.mxu0 0
    %5452 = vmatpush1.bf16.msra.mxu0 %v4540
    %5453 = vmatprep.subr.bf16.mxu0 0
    %5454 = vmatpush1.bf16.msra.mxu0 %v4547
    %5455 = vmatprep.subr.bf16.mxu0 0
    %5456 = vmatpush1.bf16.msra.mxu0 %v4554
    %5457 = vmatprep.subr.bf16.mxu0 0
    %5458 = vmatpush1.bf16.msra.mxu0 %v4561
    %5459 = vmatprep.subr.bf16.mxu0 0
    %5460 = vmatpush1.bf16.msra.mxu0 %v4568
    %5461 = vmatprep.subr.bf16.mxu0 0
    %5462 = vmatpush1.bf16.msra.mxu0 %v4575
    %5463 = vmatprep.subr.bf16.mxu0 0
    %5464 = vmatpush1.bf16.msra.mxu0 %v4582
    %5465 = vmatprep.subr.bf16.mxu0 0
    %5466 = vmatpush1.bf16.msra.mxu0 %v4589
    %5467 = vmatprep.subr.bf16.mxu0 0
    %5468 = vmatpush1.bf16.msra.mxu0 %v4596
    %5469 = vmatprep.subr.bf16.mxu0 0
    %5470 = vmatpush1.bf16.msra.mxu0 %v4603
    %5471 = vmatprep.subr.bf16.mxu0 0
    %5472 = vmatpush1.bf16.msra.mxu0 %v4610
    %5473 = vmatprep.subr.bf16.mxu0 0
    %5474 = vmatpush1.bf16.msra.mxu0 %v4617
    %5475 = vmatprep.subr.bf16.mxu0 0
    %5476 = vmatpush1.bf16.msra.mxu0 %v4624
    %5477 = vmatprep.subr.bf16.mxu0 0
    %5478 = vmatpush1.bf16.msra.mxu0 %v4631
    %5479 = vmatprep.subr.bf16.mxu0 0
    %5480 = vmatpush1.bf16.msra.mxu0 %v4638
    %5481 = vmatprep.subr.bf16.mxu0 0
    %5482 = vmatpush1.bf16.msra.mxu0 %v4645
    %5483 = vmatprep.mubr.bf16.mxu0 %v2339
    %5484 = vmatmul.mubr.bf16.gmra.mrb[0].mxu0 %v2338
    %v5485 = vpop.f32.mrb[0].mxu0
    %v5486 = vadd.f32 %v5445, %v5485
    %v5487 = vpop.f32.mrb[0].mxu0
    %v5488 = vpop.f32.mrb[0].mxu0
    %v5489 = vadd.f32 %v5448, %v5488
    %v5490 = vpop.f32.mrb[0].mxu0
    %5491 = vdwg.mxu0
    %v5492 = vld [vmem:[#allocation14] sm:$0xff]
    %v5494 = vlaneseq
    %v5495 = vshrl.u32 %v5494, 7
    %v5496 = vsub.s32 0, %v5495
    %v5497 = vrot.slane %v5492, %v5496
    %v5498 = vlaneseq
    %v5499 = vshrl.u32 %v5498, 7
    %v5500 = vsub.s32 1, %v5499
    %v5501 = vrot.slane %v5492, %v5500
    %v5502 = vlaneseq
    %v5503 = vshrl.u32 %v5502, 7
    %v5504 = vsub.s32 2, %v5503
    %v5505 = vrot.slane %v5492, %v5504
    %v5506 = vlaneseq
    %v5507 = vshrl.u32 %v5506, 7
    %v5508 = vsub.s32 3, %v5507
    %v5509 = vrot.slane %v5492, %v5508
    %v5510 = vlaneseq
    %v5511 = vshrl.u32 %v5510, 7
    %v5512 = vsub.s32 4, %v5511
    %v5513 = vrot.slane %v5492, %v5512
    %v5514 = vlaneseq
    %v5515 = vshrl.u32 %v5514, 7
    %v5516 = vsub.s32 5, %v5515
    %v5517 = vrot.slane %v5492, %v5516
    %v5518 = vlaneseq
    %v5519 = vshrl.u32 %v5518, 7
    %v5520 = vsub.s32 6, %v5519
    %v5521 = vrot.slane %v5492, %v5520
    %v5529 = vadd.f32 %v5103, %v5497
    %v5530 = vadd.f32 %v5105, %v5501
    %v5531 = vadd.f32 %v5232, %v5505
    %v5532 = vadd.f32 %v5234, %v5509
    %v5533 = vadd.f32 %v5361, %v5513
    %v5534 = vadd.f32 %v5363, %v5517
    %v5535 = vadd.f32 %v5486, %v5521
    %v5536 = vadd.f32 %v5107, %v5497
    %v5537 = vadd.f32 %v5109, %v5501
    %v5538 = vadd.f32 %v5236, %v5505
    %v5539 = vadd.f32 %v5238, %v5509
    %v5540 = vadd.f32 %v5365, %v5513
    %v5541 = vadd.f32 %v5367, %v5517
    %v5542 = vadd.f32 %v5489, %v5521
    %v5543 = vmax.f32 %v5529, 0.0
    %v5544 = vmax.f32 %v5530, 0.0
    %v5545 = vmax.f32 %v5531, 0.0
    %v5546 = vmax.f32 %v5532, 0.0
    %v5547 = vmax.f32 %v5533, 0.0
    %v5548 = vmax.f32 %v5534, 0.0
    %v5549 = vmax.f32 %v5535, 0.0
    %v5550 = vmax.f32 %v5536, 0.0
    %v5551 = vmax.f32 %v5537, 0.0
    %v5552 = vmax.f32 %v5538, 0.0
    %v5553 = vmax.f32 %v5539, 0.0
    %v5554 = vmax.f32 %v5540, 0.0
    %v5555 = vmax.f32 %v5541, 0.0
    %v5556 = vmax.f32 %v5542, 0.0
    %v5557 = vld [vmem:[#allocation15] sm:$0xff]
    %v5559 = vlaneseq
    %v5560 = vshrl.u32 %v5559, 7
    %v5561 = vsub.s32 0, %v5560
    %v5562 = vrot.slane %v5557, %v5561
    %v5563 = vlaneseq
    %v5564 = vshrl.u32 %v5563, 7
    %v5565 = vsub.s32 1, %v5564
    %v5566 = vrot.slane %v5557, %v5565
    %v5567 = vlaneseq
    %v5568 = vshrl.u32 %v5567, 7
    %v5569 = vsub.s32 2, %v5568
    %v5570 = vrot.slane %v5557, %v5569
    %v5571 = vlaneseq
    %v5572 = vshrl.u32 %v5571, 7
    %v5573 = vsub.s32 3, %v5572
    %v5574 = vrot.slane %v5557, %v5573
    %v5575 = vlaneseq
    %v5576 = vshrl.u32 %v5575, 7
    %v5577 = vsub.s32 4, %v5576
    %v5578 = vrot.slane %v5557, %v5577
    %v5579 = vlaneseq
    %v5580 = vshrl.u32 %v5579, 7
    %v5581 = vsub.s32 5, %v5580
    %v5582 = vrot.slane %v5557, %v5581
    %v5583 = vlaneseq
    %v5584 = vshrl.u32 %v5583, 7
    %v5585 = vsub.s32 6, %v5584
    %v5586 = vrot.slane %v5557, %v5585
    %v5594 = vmul.f32 %v5543, %v5562
    %v5595 = vmul.f32 %v5544, %v5566
    %v5596 = vmul.f32 %v5545, %v5570
    %v5597 = vmul.f32 %v5546, %v5574
    %v5598 = vmul.f32 %v5547, %v5578
    %v5599 = vmul.f32 %v5548, %v5582
    %v5600 = vmul.f32 %v5549, %v5586
    %v5601 = vmul.f32 %v5550, %v5562
    %v5602 = vmul.f32 %v5551, %v5566
    %v5603 = vmul.f32 %v5552, %v5570
    %v5604 = vmul.f32 %v5553, %v5574
    %v5605 = vmul.f32 %v5554, %v5578
    %v5606 = vmul.f32 %v5555, %v5582
    %v5607 = vmul.f32 %v5556, %v5586
    %v5608 = vadd.f32 %v5594, %v5595
    %v5609 = vadd.f32 %v5608, %v5596
    %v5610 = vadd.f32 %v5609, %v5597
    %v5611 = vadd.f32 %v5610, %v5598
    %v5612 = vadd.f32 %v5611, %v5599
    %v5613 = vadd.f32 %v5612, %v5600
    %5614 = vadd.xlane.f32.xlu0 %v5613
    %v5615 = vpop.xlane.xlu0 %5614
    %v5616 = vadd.f32 %v5601, %v5602
    %v5617 = vadd.f32 %v5616, %v5603
    %v5618 = vadd.f32 %v5617, %v5604
    %v5619 = vadd.f32 %v5618, %v5605
    %v5620 = vadd.f32 %v5619, %v5606
    %v5621 = vadd.f32 %v5620, %v5607
    %5622 = vadd.xlane.f32.xlu0 %v5621
    %v5623 = vpop.xlane.xlu0 %5622
    %5624 = vxpose.xlu0.b32.start [1/16] %v5615, 128
    %5625 = vxpose.xlu0.b32.cont [2/16] %v5623, 128
    %5626 = vxpose.xlu0.b32.cont [3/16] 0.0, 128
    %5627 = vxpose.xlu0.b32.cont [4/16] 0.0, 128
    %5628 = vxpose.xlu0.b32.cont [5/16] 0.0, 128
    %5629 = vxpose.xlu0.b32.cont [6/16] 0.0, 128
    %5630 = vxpose.xlu0.b32.cont [7/16] 0.0, 128
    %5631 = vxpose.xlu0.b32.cont [8/16] 0.0, 128
    %5632 = vxpose.xlu0.b32.cont [9/16] 0.0, 128
    %5633 = vxpose.xlu0.b32.cont [10/16] 0.0, 128
    %5634 = vxpose.xlu0.b32.cont [11/16] 0.0, 128
    %5635 = vxpose.xlu0.b32.cont [12/16] 0.0, 128
    %5636 = vxpose.xlu0.b32.cont [13/16] 0.0, 128
    %5637 = vxpose.xlu0.b32.cont [14/16] 0.0, 128
    %5638 = vxpose.xlu0.b32.cont [15/16] 0.0, 128
    %5639 = vxpose.xlu0.b32.end [16/16] 0.0, 128
    %v5640 = vpop.trf.xlu0
    %v5641 = vpop.trf.xlu0
    %v5642 = vpop.trf.xlu0
    %v5643 = vpop.trf.xlu0
    %v5644 = vpop.trf.xlu0
    %v5645 = vpop.trf.xlu0
    %v5646 = vpop.trf.xlu0
    %v5647 = vpop.trf.xlu0
    %v5648 = vpop.trf.xlu0
    %v5649 = vpop.trf.xlu0
    %v5650 = vpop.trf.xlu0
    %v5651 = vpop.trf.xlu0
    %v5652 = vpop.trf.xlu0
    %v5653 = vpop.trf.xlu0
    %v5654 = vpop.trf.xlu0
    %v5655 = vpop.trf.xlu0
    %v5656 = vld [vmem:[#allocation2] sm:$0x1]
    %5658 = vset.pattern.permute.xlu0 0
    %5659 = vperm.xlu0 %5658, %v5656
    %v5660 = vpop.permute.xlu0 %5659
    %v5662 = vlaneseq
    %v5663 = vshrl.u32 %v5662, 7
    %v5664 = vsub.s32 0, %v5663
    %v5665 = vrot.slane %v5660, %v5664
    %v5666 = vadd.f32 %v5640, %v5665
    %vm5667 = vcmask 122880
    %5668 = vst.msk [vmem:[#allocation17] sm:$0x1] %vm5667, %v5666
    // Predicated region
    $region70: #{tpu_custom_call.1} parent=1 // pred_check
      _
    $region71: #{tpu_custom_call.1} parent=1 // pred_check_branch
      %5670 = sbr.rel (0) target = $region73
    $region72: #{tpu_custom_call.1} parent=1 // pred_region
      %s5672 = ssub.s32 16, 16
      %5673 = vsyncadd [#allocation5], %s5672
      %s5675 = sshll.u32 [#allocation17], 4
      %s5676 = int_to_ptr.vmem [resolvable:$true] %s5675
      %5678 = dma.vmem_to_hbm [thread:$0]  %s5676, 16, %s9, [#allocation5]
    $region73: #{tpu_custom_call.1} parent=1 // pred_fallthru
      _
    // Predicated region
    $region74: #{tpu_custom_call.1} parent=1 // pred_check
      _
    $region75: #{tpu_custom_call.1} parent=1 // pred_check_branch
      %5680 = sbr.rel (0) target = $region77
    $region76: #{tpu_custom_call.1} parent=1 // pred_region
      %5681 = dma.done [#allocation5], 16
    $region77: #{tpu_custom_call.1} parent=1 // pred_fallthru
      _
    %5682 = vsyncpa [#allocation4], 1
    %5683 = vsyncpa [#allocation7], 1
    %5684 = vsyncpa [#allocation10], 1
    %5685 = vsyncpa [#allocation13], 1
    %5686 = vsyncpa [#allocation16], 1
    %5687 = vsyncpa [#allocation5], 1

</llo_original>
